<compile_context>
chip_gen: v6e
topology: v6e:2x2x1
jax: 0.10.0
libtpu: 0.0.40
codegen_flags: <defaults>
</compile_context>

<pallas_src>
import functools

import jax
import jax.numpy as jnp
from jax.experimental import pallas as pl
from jax.experimental.pallas import tpu as pltpu
import numpy as np

HIDDEN = 50
INPUT_SIZE = 12
NUM_LAYERS = 2          # fixed at 2 (matches the module default)
GP = 128                # lanes per gate (lane-aligned gate blocks)
G4 = 4 * GP


def _lstm_kernel(x_ref,      # (1, T*Bt, I)   time-major, flattened per batch tile
                 wih0_ref,   # (I, 4*GP)      layer-0 W_ih^T, gates [i,f,o,g], ifo pre-*0.5
                 wf_ref,     # (2*GP, 8*GP)   fused [[W_ih1^T;W_hh1^T] | [W_hh0^T;0]]
                 b0_ref,     # (1, 4*GP)      layer-0 (b_ih+b_hh), ifo pre-*0.5
                 b1_ref,     # (1, 4*GP)      layer-1 (b_ih+b_hh), ifo pre-*0.5
                 wout_ref,   # (1, GP)        output linear row, pre-*0.5
                 bout_ref,   # (1, 1)         output linear bias, pre-*0.5
                 out_ref,    # (Bt, 1)        sigmoid(Linear(h1_T))
                 gx0_ref):   # (T*Bt, 4*GP)   f32 scratch: hoisted input projection
    B = out_ref.shape[0]                      # batch tile (multiple of 8)
    T = x_ref.shape[1] // B                   # static sequence length
    cdt = wih0_ref.dtype                      # MXU weight dtype (bf16 or f32)

    # --- Hoisted layer-0 input projection for ALL timesteps: one matmul, bias folded,
    #     staged to VMEM scratch (tile-aligned per-step reads, no long-lived vregs).
    x2 = x_ref[0].astype(cdt)                                     # (T*B, I)
    gx0_ref[...] = (jnp.dot(x2, wih0_ref[...], preferred_element_type=jnp.float32)
                    + b0_ref[...])

    # Hoisted bias broadcast (JAX does not CSE broadcast_in_dim).
    b1 = jnp.broadcast_to(b1_ref[...], (B, G4))

    def gates_to_hc(g, c):
        # ifo gate preactivations already carry the 0.5 factor (folded into weights/bias),
        # so ONE tanh over the full 4*GP slab implements sigmoid(i,f,o) and tanh(g).
        t_all = jnp.tanh(g)
        ifo = 0.5 * t_all[:, 0:3 * GP] + 0.5
        gg = t_all[:, 3 * GP:4 * GP]
        i_g = ifo[:, 0:GP]
        f_g = ifo[:, GP:2 * GP]
        o_g = ifo[:, 2 * GP:3 * GP]
        c_new = f_g * c + i_g * gg
        h_new = o_g * jnp.tanh(c_new)
        return h_new, c_new

    zeros = jnp.zeros((B, GP), dtype=jnp.float32)
    h0, c0, h1, c1 = zeros, zeros, zeros, zeros
    rec0 = jnp.zeros((B, G4), dtype=jnp.float32)    # h0(-1) @ W_hh0^T == 0

    # --- Fully unrolled recurrence (T is small & static), ONE MXU op per step on the
    #     serial chain: [h0(t), h1(t-1)] @ wf -> (g1(t) | layer-0 rec term for t+1).
    for t in range(T):
        g0 = gx0_ref[pl.ds(t * B, B), :] + rec0
        h0, c0 = gates_to_hc(g0, c0)

        hcat = jnp.concatenate([h0, h1], axis=1).astype(cdt)      # (B, 2*GP)
        last = (t == T - 1)
        w_cols = G4 if last else 2 * G4          # last step: rec0 output would be dead
        fused = jnp.dot(hcat, wf_ref[:, :w_cols],
                        preferred_element_type=jnp.float32)
        g1 = fused[:, 0:G4] + b1
        if not last:
            rec0 = fused[:, G4:2 * G4]
        h1, c1 = gates_to_hc(g1, c1)

    # --- Output head: N=1 matmul replaced by VPU multiply + XLU lane reduction.
    #     wout/bout pre-scaled by 0.5, so sigmoid(z) == 0.5*tanh(z/2)+0.5.
    half_z = jnp.sum(h1 * wout_ref[...], axis=-1, keepdims=True) + bout_ref[...]
    out_ref[...] = (0.5 * jnp.tanh(half_z) + 0.5).astype(out_ref.dtype)


def _pad_gates_T(w, k_pad, hidden):
    """PyTorch weight (4H, K), gate rows [i,f,g,o] -> transposed (k_pad, 4*GP), gates
    reordered to [i,f,o,g], each in its own 128-lane block, i/f/o columns pre-scaled by
    0.5 (folds sigmoid's z/2 into the weights). Padding is exact zero."""
    w = np.asarray(w, np.float32)
    H, K = hidden, w.shape[1]
    blocks = (w[0:H], w[H:2 * H], w[3 * H:4 * H], w[2 * H:3 * H])   # i, f, o, g
    out = np.zeros((k_pad, G4), np.float32)
    for idx, blk in enumerate(blocks):
        out[:K, idx * GP: idx * GP + H] = blk.T
    out[:, :3 * GP] *= 0.5
    return out


def _pad_gates_bias(bih, bhh, hidden):
    b = np.asarray(bih, np.float32) + np.asarray(bhh, np.float32)
    H = hidden
    blocks = (b[0:H], b[H:2 * H], b[3 * H:4 * H], b[2 * H:3 * H])   # i, f, o, g
    out = np.zeros((1, G4), np.float32)
    for idx, blk in enumerate(blocks):
        out[0, idx * GP: idx * GP + H] = blk
    out[:, :3 * GP] *= 0.5
    return out


def prepare_params(params, input_size=INPUT_SIZE, hidden=HIDDEN,
                   param_dtype=jnp.bfloat16):
    """One-time weight prep (transpose / gate-reorder / 128-lane pad / 0.5 ifo pre-scale /
    bias sum / fuse / dtype cast). Call once at parameter-load time, NOT per forward."""
    wih0, whh0, bih0, bhh0, wih1, whh1, bih1, bhh1, w_out, b_out = params

    wih0_p = _pad_gates_T(wih0, input_size, hidden)                 # (I, 4*GP)
    b0_p = _pad_gates_bias(bih0, bhh0, hidden)                      # (1, 4*GP)

    # Fused per-step weight: [h0(t), h1(t-1)] (B, 2*GP) @ wf (2*GP, 8*GP) ->
    #   cols 0:4GP   layer-1 gates g1(t)            ([W_ih1^T ; W_hh1^T])
    #   cols 4GP:8GP layer-0 recurrent term t+1     ([W_hh0^T ; 0      ])
    wf = np.zeros((2 * GP, 2 * G4), np.float32)
    wf[0:GP, 0:G4] = _pad_gates_T(wih1, GP, hidden)
    wf[GP:2 * GP, 0:G4] = _pad_gates_T(whh1, GP, hidden)
    wf[0:GP, G4:2 * G4] = _pad_gates_T(whh0, GP, hidden)
    b1_p = _pad_gates_bias(bih1, bhh1, hidden)                      # (1, 4*GP)

    # Output head as a VPU row (pre-scaled by 0.5 for the tanh-based sigmoid).
    wout_row = np.zeros((1, GP), np.float32)
    wout_row[0, :hidden] = 0.5 * np.asarray(w_out, np.float32).reshape(-1)
    bout_p = 0.5 * np.asarray(b_out, np.float32).reshape(1, 1)

    return (jnp.asarray(wih0_p, param_dtype),     # MXU weights in param_dtype (bf16)
            jnp.asarray(wf, param_dtype),
            jnp.asarray(b0_p, jnp.float32),       # biases / output head stay f32 (VPU)
            jnp.asarray(b1_p, jnp.float32),
            jnp.asarray(wout_row, jnp.float32),
            jnp.asarray(bout_p, jnp.float32))


def _round_up(n, m):
    return ((n + m - 1) // m) * m


def _const_spec(arr):
    return pl.BlockSpec(arr.shape, lambda i: (0, 0))   # VMEM-resident across grid steps


@functools.partial(jax.jit, static_argnames=("block_b",))
def rnn_forward(x, prepped, block_b=256):
    """x: (B, T, I) batch_first float32; prepped: output of prepare_params. Returns (B,1)."""
    B, T, I = x.shape
    bt = min(block_b, _round_up(B, 8))          # batch tile, multiple of 8 sublanes
    b_pad = _round_up(B, bt)
    num_tiles = b_pad // bt

    # Per-call prep: batch-first -> time-major, pad batch, pre-tile so each grid step
    # gets a contiguous (T*bt, I) slab (no in-kernel reshapes needed).
    xt = jnp.transpose(x, (1, 0, 2))                                  # (T, B, I)
    if b_pad != B:
        xt = jnp.pad(xt, ((0, 0), (0, b_pad - B), (0, 0)))
    x_tiles = xt.reshape(T, num_tiles, bt, I)
    x_tiles = jnp.transpose(x_tiles, (1, 0, 2, 3)).reshape(num_tiles, T * bt, I)

    out = pl.pallas_call(
        _lstm_kernel,
        out_shape=jax.ShapeDtypeStruct((b_pad, 1), jnp.float32),
        grid=(num_tiles,),
        in_specs=[
            pl.BlockSpec((1, T * bt, I), lambda i: (i, 0, 0)),        # x, batch-tiled
            _const_spec(prepped[0]),                                  # wih0
            _const_spec(prepped[1]),                                  # fused weight
            _const_spec(prepped[2]),                                  # b0
            _const_spec(prepped[3]),                                  # b1
            _const_spec(prepped[4]),                                  # wout row
            _const_spec(prepped[5]),                                  # bout
        ],
        out_specs=pl.BlockSpec((bt, 1), lambda i: (i, 0)),
        scratch_shapes=[pltpu.VMEM((T * bt, G4), jnp.float32)],       # staged gx0
        compiler_params=pltpu.CompilerParams(
            dimension_semantics=("parallel",)),   # v7x: batch tiles across both TCs
    )(x_tiles, *prepped)
    return out[:B]


def init_params(key, input_size=INPUT_SIZE, hidden=HIDDEN):
    """Deterministic init mirroring PyTorch's uniform(-1/sqrt(H), 1/sqrt(H))."""
    k = 1.0 / np.sqrt(hidden)
    keys = jax.random.split(key, 10)

    def u(kk, shape):
        return jax.random.uniform(kk, shape, jnp.float32, -k, k)

    wih0 = u(keys[0], (4 * hidden, input_size))
    whh0 = u(keys[1], (4 * hidden, hidden))
    bih0 = u(keys[2], (4 * hidden,))
    bhh0 = u(keys[3], (4 * hidden,))
    wih1 = u(keys[4], (4 * hidden, hidden))
    whh1 = u(keys[5], (4 * hidden, hidden))
    bih1 = u(keys[6], (4 * hidden,))
    bhh1 = u(keys[7], (4 * hidden,))
    w_out = u(keys[8], (1, hidden))
    b_out = u(keys[9], (1,))
    return (wih0, whh0, bih0, bhh0, wih1, whh1, bih1, bhh1, w_out, b_out)


def rnn_forward_ref(x, params):
    """Pure-JAX f32 reference of the same forward (PyTorch layout / gate order)."""
    wih0, whh0, bih0, bhh0, wih1, whh1, bih1, bhh1, w_out, b_out = params
    B, T, _ = x.shape
    H = whh0.shape[1]

    def cell(x_t, h, c, wih, whh, bih, bhh):
        g = x_t @ wih.T + h @ whh.T + bih + bhh
        i = jax.nn.sigmoid(g[:, 0 * H:1 * H])
        f = jax.nn.sigmoid(g[:, 1 * H:2 * H])
        gg = jnp.tanh(g[:, 2 * H:3 * H])
        o = jax.nn.sigmoid(g[:, 3 * H:4 * H])
        c = f * c + i * gg
        h = o * jnp.tanh(c)
        return h, c

    h0 = c0 = h1 = c1 = jnp.zeros((B, H), jnp.float32)
    for t in range(T):
        h0, c0 = cell(x[:, t, :], h0, c0, wih0, whh0, bih0, bhh0)
        h1, c1 = cell(h0, h1, c1, wih1, whh1, bih1, bhh1)
    return jax.nn.sigmoid(h1 @ w_out.T + b_out)


if __name__ == "__main__":
    key = jax.random.PRNGKey(0)
    k_x, k_p = jax.random.split(key)

    B, T, I = 2, 8, INPUT_SIZE
    x = jax.random.normal(k_x, (B, T, I), dtype=jnp.float32)
    params = init_params(k_p)
    ref = rnn_forward_ref(x, params)

    # 1) Exact-path check: f32 weights must match the f32 reference tightly.
    prepped_f32 = prepare_params(params, param_dtype=jnp.float32)
    out_f32 = jax.block_until_ready(rnn_forward(x, prepped_f32))
    np.testing.assert_allclose(np.asarray(out_f32), np.asarray(ref), rtol=5e-4, atol=1e-5)

    # 2) Fast path (default): bf16 MXU weights, f32 accumulation + f32 elementwise.
    prepped_bf16 = prepare_params(params)   # param_dtype=jnp.bfloat16
    out_bf16 = jax.block_until_ready(rnn_forward(x, prepped_bf16))
    np.testing.assert_allclose(np.asarray(out_bf16), np.asarray(ref), rtol=2e-2, atol=1e-2)

    assert out_f32.shape == (B, 1) and out_bf16.shape == (B, 1)
    print("KERNEL_OK")
</pallas_src>

<mosaic_0001>
module attributes {stable_mosaic.version = 11 : i64} {
  func.func @_lstm_kernel(%arg0: i32, %arg1: memref<1x64x12xf32, #tpu.memory_space<vmem>>, %arg2: memref<12x512xf32, #tpu.memory_space<vmem>>, %arg3: memref<256x1024xf32, #tpu.memory_space<vmem>>, %arg4: memref<1x512xf32, #tpu.memory_space<vmem>>, %arg5: memref<1x512xf32, #tpu.memory_space<vmem>>, %arg6: memref<1x128xf32, #tpu.memory_space<vmem>>, %arg7: memref<1x1xf32, #tpu.memory_space<vmem>>, %arg8: memref<8x1xf32, #tpu.memory_space<vmem>>, %arg9: memref<64x512xf32, #tpu.memory_space<vmem>>) attributes {dimension_semantics = [#tpu.dimension_semantics<parallel>], iteration_bounds = array<i64: 1>, scalar_prefetch = 0 : i64, scratch_operands = 1 : i64, tpu.core_type = #tpu.core_type<tc>, window_params = [{transform_indices = @transform_0, window_bounds = array<i64: 1, 64, 12>}, {pipeline_mode = #tpu.pipeline_mode<synchronous>, transform_indices = @transform_1, window_bounds = array<i64: 12, 512>}, {pipeline_mode = #tpu.pipeline_mode<synchronous>, transform_indices = @transform_2, window_bounds = array<i64: 256, 1024>}, {pipeline_mode = #tpu.pipeline_mode<synchronous>, transform_indices = @transform_3, window_bounds = array<i64: 1, 512>}, {pipeline_mode = #tpu.pipeline_mode<synchronous>, transform_indices = @transform_4, window_bounds = array<i64: 1, 512>}, {pipeline_mode = #tpu.pipeline_mode<synchronous>, transform_indices = @transform_5, window_bounds = array<i64: 1, 128>}, {pipeline_mode = #tpu.pipeline_mode<synchronous>, transform_indices = @transform_6, window_bounds = array<i64: 1, 1>}, {transform_indices = @transform_7, window_bounds = array<i64: 8, 1>}]} {
    %c0 = arith.constant 0 : index
    %c0_0 = arith.constant 0 : index
    %c0_1 = arith.constant 0 : index
    %0 = vector.load %arg1[%c0, %c0_0, %c0_1] : memref<1x64x12xf32, #tpu.memory_space<vmem>>, vector<1x64x12xf32>
    %1 = vector.shape_cast %0 : vector<1x64x12xf32> to vector<64x12xf32>
    %c0_2 = arith.constant 0 : index
    %c0_3 = arith.constant 0 : index
    %2 = vector.load %arg2[%c0_2, %c0_3] : memref<12x512xf32, #tpu.memory_space<vmem>>, vector<12x512xf32>
    %cst = arith.constant dense<0.000000e+00> : vector<64x512xf32>
    %3 = tpu.matmul %1, %2, %cst {dimension_numbers = #tpu.dot_dimension_numbers<[1], [0], [0], [1], [0, 0, 1, 1], [], []>} : vector<64x12xf32>, vector<12x512xf32>, vector<64x512xf32> -> vector<64x512xf32>
    %c0_4 = arith.constant 0 : index
    %c0_5 = arith.constant 0 : index
    %4 = vector.load %arg4[%c0_4, %c0_5] : memref<1x512xf32, #tpu.memory_space<vmem>>, vector<1x512xf32>
    %5 = vector.broadcast %4 : vector<1x512xf32> to vector<64x512xf32>
    %6 = arith.addf %3, %5 : vector<64x512xf32>
    %c0_6 = arith.constant 0 : index
    %c0_7 = arith.constant 0 : index
    %7 = vector.load %arg9[%c0_6, %c0_7] : memref<64x512xf32, #tpu.memory_space<vmem>>, vector<64x512xf32>
    tpu.vector_store %arg9[%c0_6, %c0_7], %6 {strides = array<i32>} : memref<64x512xf32, #tpu.memory_space<vmem>>, vector<64x512xf32>,
    %c0_8 = arith.constant 0 : index
    %c0_9 = arith.constant 0 : index
    %8 = vector.load %arg5[%c0_8, %c0_9] : memref<1x512xf32, #tpu.memory_space<vmem>>, vector<1x512xf32>
    %9 = vector.shape_cast %8 : vector<1x512xf32> to vector<1x512xf32>
    %10 = vector.broadcast %9 : vector<1x512xf32> to vector<8x512xf32>
    %cst_10 = arith.constant 0.000000e+00 : f32
    %11 = vector.broadcast %cst_10 : f32 to vector<8x128xf32>
    %cst_11 = arith.constant 0.000000e+00 : f32
    %12 = vector.broadcast %cst_11 : f32 to vector<8x512xf32>
    %c0_12 = arith.constant 0 : index
    %c0_13 = arith.constant 0 : index
    %13 = vector.load %arg9[%c0_12, %c0_13] : memref<64x512xf32, #tpu.memory_space<vmem>>, vector<8x512xf32>
    %14 = arith.addf %13, %12 : vector<8x512xf32>
    %15 = math.tanh %14 : vector<8x512xf32>
    %16 = vector.extract_strided_slice %15 {offsets = [0, 0], sizes = [8, 384], strides = [1, 1]} : vector<8x512xf32> to vector<8x384xf32>
    %cst_14 = arith.constant 5.000000e-01 : f32
    %17 = vector.broadcast %cst_14 : f32 to vector<8x384xf32>
    %18 = arith.mulf %17, %16 : vector<8x384xf32>
    %cst_15 = arith.constant 5.000000e-01 : f32
    %19 = vector.broadcast %cst_15 : f32 to vector<8x384xf32>
    %20 = arith.addf %18, %19 : vector<8x384xf32>
    %21 = vector.extract_strided_slice %15 {offsets = [0, 384], sizes = [8, 128], strides = [1, 1]} : vector<8x512xf32> to vector<8x128xf32>
    %22 = vector.extract_strided_slice %20 {offsets = [0, 0], sizes = [8, 128], strides = [1, 1]} : vector<8x384xf32> to vector<8x128xf32>
    %23 = vector.extract_strided_slice %20 {offsets = [0, 128], sizes = [8, 128], strides = [1, 1]} : vector<8x384xf32> to vector<8x128xf32>
    %24 = vector.extract_strided_slice %20 {offsets = [0, 256], sizes = [8, 128], strides = [1, 1]} : vector<8x384xf32> to vector<8x128xf32>
    %25 = arith.mulf %23, %11 : vector<8x128xf32>
    %26 = arith.mulf %22, %21 : vector<8x128xf32>
    %27 = arith.addf %25, %26 : vector<8x128xf32>
    %28 = math.tanh %27 : vector<8x128xf32>
    %29 = arith.mulf %24, %28 : vector<8x128xf32>
    %30 = tpu.concatenate %29, %11 in 1 : vector<8x128xf32>, vector<8x128xf32> -> vector<8x256xf32>
    %c0_16 = arith.constant 0 : index
    %c0_17 = arith.constant 0 : index
    %31 = vector.load %arg3[%c0_16, %c0_17] : memref<256x1024xf32, #tpu.memory_space<vmem>>, vector<256x1024xf32>
    %cst_18 = arith.constant dense<0.000000e+00> : vector<8x1024xf32>
    %32 = tpu.matmul %30, %31, %cst_18 {dimension_numbers = #tpu.dot_dimension_numbers<[1], [0], [0], [1], [0, 0, 1, 1], [], []>} : vector<8x256xf32>, vector<256x1024xf32>, vector<8x1024xf32> -> vector<8x1024xf32>
    %33 = vector.extract_strided_slice %32 {offsets = [0, 0], sizes = [8, 512], strides = [1, 1]} : vector<8x1024xf32> to vector<8x512xf32>
    %34 = arith.addf %33, %10 : vector<8x512xf32>
    %35 = vector.extract_strided_slice %32 {offsets = [0, 512], sizes = [8, 512], strides = [1, 1]} : vector<8x1024xf32> to vector<8x512xf32>
    %36 = math.tanh %34 : vector<8x512xf32>
    %37 = vector.extract_strided_slice %36 {offsets = [0, 0], sizes = [8, 384], strides = [1, 1]} : vector<8x512xf32> to vector<8x384xf32>
    %cst_19 = arith.constant 5.000000e-01 : f32
    %38 = vector.broadcast %cst_19 : f32 to vector<8x384xf32>
    %39 = arith.mulf %38, %37 : vector<8x384xf32>
    %cst_20 = arith.constant 5.000000e-01 : f32
    %40 = vector.broadcast %cst_20 : f32 to vector<8x384xf32>
    %41 = arith.addf %39, %40 : vector<8x384xf32>
    %42 = vector.extract_strided_slice %36 {offsets = [0, 384], sizes = [8, 128], strides = [1, 1]} : vector<8x512xf32> to vector<8x128xf32>
    %43 = vector.extract_strided_slice %41 {offsets = [0, 0], sizes = [8, 128], strides = [1, 1]} : vector<8x384xf32> to vector<8x128xf32>
    %44 = vector.extract_strided_slice %41 {offsets = [0, 128], sizes = [8, 128], strides = [1, 1]} : vector<8x384xf32> to vector<8x128xf32>
    %45 = vector.extract_strided_slice %41 {offsets = [0, 256], sizes = [8, 128], strides = [1, 1]} : vector<8x384xf32> to vector<8x128xf32>
    %46 = arith.mulf %44, %11 : vector<8x128xf32>
    %47 = arith.mulf %43, %42 : vector<8x128xf32>
    %48 = arith.addf %46, %47 : vector<8x128xf32>
    %49 = math.tanh %48 : vector<8x128xf32>
    %50 = arith.mulf %45, %49 : vector<8x128xf32>
    %c8 = arith.constant 8 : index
    %c0_21 = arith.constant 0 : index
    %51 = vector.load %arg9[%c8, %c0_21] : memref<64x512xf32, #tpu.memory_space<vmem>>, vector<8x512xf32>
    %52 = arith.addf %51, %35 : vector<8x512xf32>
    %53 = math.tanh %52 : vector<8x512xf32>
    %54 = vector.extract_strided_slice %53 {offsets = [0, 0], sizes = [8, 384], strides = [1, 1]} : vector<8x512xf32> to vector<8x384xf32>
    %cst_22 = arith.constant 5.000000e-01 : f32
    %55 = vector.broadcast %cst_22 : f32 to vector<8x384xf32>
    %56 = arith.mulf %55, %54 : vector<8x384xf32>
    %cst_23 = arith.constant 5.000000e-01 : f32
    %57 = vector.broadcast %cst_23 : f32 to vector<8x384xf32>
    %58 = arith.addf %56, %57 : vector<8x384xf32>
    %59 = vector.extract_strided_slice %53 {offsets = [0, 384], sizes = [8, 128], strides = [1, 1]} : vector<8x512xf32> to vector<8x128xf32>
    %60 = vector.extract_strided_slice %58 {offsets = [0, 0], sizes = [8, 128], strides = [1, 1]} : vector<8x384xf32> to vector<8x128xf32>
    %61 = vector.extract_strided_slice %58 {offsets = [0, 128], sizes = [8, 128], strides = [1, 1]} : vector<8x384xf32> to vector<8x128xf32>
    %62 = vector.extract_strided_slice %58 {offsets = [0, 256], sizes = [8, 128], strides = [1, 1]} : vector<8x384xf32> to vector<8x128xf32>
    %63 = arith.mulf %61, %27 : vector<8x128xf32>
    %64 = arith.mulf %60, %59 : vector<8x128xf32>
    %65 = arith.addf %63, %64 : vector<8x128xf32>
    %66 = math.tanh %65 : vector<8x128xf32>
    %67 = arith.mulf %62, %66 : vector<8x128xf32>
    %68 = tpu.concatenate %67, %50 in 1 : vector<8x128xf32>, vector<8x128xf32> -> vector<8x256xf32>
    %c0_24 = arith.constant 0 : index
    %c0_25 = arith.constant 0 : index
    %69 = vector.load %arg3[%c0_24, %c0_25] : memref<256x1024xf32, #tpu.memory_space<vmem>>, vector<256x1024xf32>
    %cst_26 = arith.constant dense<0.000000e+00> : vector<8x1024xf32>
    %70 = tpu.matmul %68, %69, %cst_26 {dimension_numbers = #tpu.dot_dimension_numbers<[1], [0], [0], [1], [0, 0, 1, 1], [], []>} : vector<8x256xf32>, vector<256x1024xf32>, vector<8x1024xf32> -> vector<8x1024xf32>
    %71 = vector.extract_strided_slice %70 {offsets = [0, 0], sizes = [8, 512], strides = [1, 1]} : vector<8x1024xf32> to vector<8x512xf32>
    %72 = arith.addf %71, %10 : vector<8x512xf32>
    %73 = vector.extract_strided_slice %70 {offsets = [0, 512], sizes = [8, 512], strides = [1, 1]} : vector<8x1024xf32> to vector<8x512xf32>
    %74 = math.tanh %72 : vector<8x512xf32>
    %75 = vector.extract_strided_slice %74 {offsets = [0, 0], sizes = [8, 384], strides = [1, 1]} : vector<8x512xf32> to vector<8x384xf32>
    %cst_27 = arith.constant 5.000000e-01 : f32
    %76 = vector.broadcast %cst_27 : f32 to vector<8x384xf32>
    %77 = arith.mulf %76, %75 : vector<8x384xf32>
    %cst_28 = arith.constant 5.000000e-01 : f32
    %78 = vector.broadcast %cst_28 : f32 to vector<8x384xf32>
    %79 = arith.addf %77, %78 : vector<8x384xf32>
    %80 = vector.extract_strided_slice %74 {offsets = [0, 384], sizes = [8, 128], strides = [1, 1]} : vector<8x512xf32> to vector<8x128xf32>
    %81 = vector.extract_strided_slice %79 {offsets = [0, 0], sizes = [8, 128], strides = [1, 1]} : vector<8x384xf32> to vector<8x128xf32>
    %82 = vector.extract_strided_slice %79 {offsets = [0, 128], sizes = [8, 128], strides = [1, 1]} : vector<8x384xf32> to vector<8x128xf32>
    %83 = vector.extract_strided_slice %79 {offsets = [0, 256], sizes = [8, 128], strides = [1, 1]} : vector<8x384xf32> to vector<8x128xf32>
    %84 = arith.mulf %82, %48 : vector<8x128xf32>
    %85 = arith.mulf %81, %80 : vector<8x128xf32>
    %86 = arith.addf %84, %85 : vector<8x128xf32>
    %87 = math.tanh %86 : vector<8x128xf32>
    %88 = arith.mulf %83, %87 : vector<8x128xf32>
    %c16 = arith.constant 16 : index
    %c0_29 = arith.constant 0 : index
    %89 = vector.load %arg9[%c16, %c0_29] : memref<64x512xf32, #tpu.memory_space<vmem>>, vector<8x512xf32>
    %90 = arith.addf %89, %73 : vector<8x512xf32>
    %91 = math.tanh %90 : vector<8x512xf32>
    %92 = vector.extract_strided_slice %91 {offsets = [0, 0], sizes = [8, 384], strides = [1, 1]} : vector<8x512xf32> to vector<8x384xf32>
    %cst_30 = arith.constant 5.000000e-01 : f32
    %93 = vector.broadcast %cst_30 : f32 to vector<8x384xf32>
    %94 = arith.mulf %93, %92 : vector<8x384xf32>
    %cst_31 = arith.constant 5.000000e-01 : f32
    %95 = vector.broadcast %cst_31 : f32 to vector<8x384xf32>
    %96 = arith.addf %94, %95 : vector<8x384xf32>
    %97 = vector.extract_strided_slice %91 {offsets = [0, 384], sizes = [8, 128], strides = [1, 1]} : vector<8x512xf32> to vector<8x128xf32>
    %98 = vector.extract_strided_slice %96 {offsets = [0, 0], sizes = [8, 128], strides = [1, 1]} : vector<8x384xf32> to vector<8x128xf32>
    %99 = vector.extract_strided_slice %96 {offsets = [0, 128], sizes = [8, 128], strides = [1, 1]} : vector<8x384xf32> to vector<8x128xf32>
    %100 = vector.extract_strided_slice %96 {offsets = [0, 256], sizes = [8, 128], strides = [1, 1]} : vector<8x384xf32> to vector<8x128xf32>
    %101 = arith.mulf %99, %65 : vector<8x128xf32>
    %102 = arith.mulf %98, %97 : vector<8x128xf32>
    %103 = arith.addf %101, %102 : vector<8x128xf32>
    %104 = math.tanh %103 : vector<8x128xf32>
    %105 = arith.mulf %100, %104 : vector<8x128xf32>
    %106 = tpu.concatenate %105, %88 in 1 : vector<8x128xf32>, vector<8x128xf32> -> vector<8x256xf32>
    %c0_32 = arith.constant 0 : index
    %c0_33 = arith.constant 0 : index
    %107 = vector.load %arg3[%c0_32, %c0_33] : memref<256x1024xf32, #tpu.memory_space<vmem>>, vector<256x1024xf32>
    %cst_34 = arith.constant dense<0.000000e+00> : vector<8x1024xf32>
    %108 = tpu.matmul %106, %107, %cst_34 {dimension_numbers = #tpu.dot_dimension_numbers<[1], [0], [0], [1], [0, 0, 1, 1], [], []>} : vector<8x256xf32>, vector<256x1024xf32>, vector<8x1024xf32> -> vector<8x1024xf32>
    %109 = vector.extract_strided_slice %108 {offsets = [0, 0], sizes = [8, 512], strides = [1, 1]} : vector<8x1024xf32> to vector<8x512xf32>
    %110 = arith.addf %109, %10 : vector<8x512xf32>
    %111 = vector.extract_strided_slice %108 {offsets = [0, 512], sizes = [8, 512], strides = [1, 1]} : vector<8x1024xf32> to vector<8x512xf32>
    %112 = math.tanh %110 : vector<8x512xf32>
    %113 = vector.extract_strided_slice %112 {offsets = [0, 0], sizes = [8, 384], strides = [1, 1]} : vector<8x512xf32> to vector<8x384xf32>
    %cst_35 = arith.constant 5.000000e-01 : f32
    %114 = vector.broadcast %cst_35 : f32 to vector<8x384xf32>
    %115 = arith.mulf %114, %113 : vector<8x384xf32>
    %cst_36 = arith.constant 5.000000e-01 : f32
    %116 = vector.broadcast %cst_36 : f32 to vector<8x384xf32>
    %117 = arith.addf %115, %116 : vector<8x384xf32>
    %118 = vector.extract_strided_slice %112 {offsets = [0, 384], sizes = [8, 128], strides = [1, 1]} : vector<8x512xf32> to vector<8x128xf32>
    %119 = vector.extract_strided_slice %117 {offsets = [0, 0], sizes = [8, 128], strides = [1, 1]} : vector<8x384xf32> to vector<8x128xf32>
    %120 = vector.extract_strided_slice %117 {offsets = [0, 128], sizes = [8, 128], strides = [1, 1]} : vector<8x384xf32> to vector<8x128xf32>
    %121 = vector.extract_strided_slice %117 {offsets = [0, 256], sizes = [8, 128], strides = [1, 1]} : vector<8x384xf32> to vector<8x128xf32>
    %122 = arith.mulf %120, %86 : vector<8x128xf32>
    %123 = arith.mulf %119, %118 : vector<8x128xf32>
    %124 = arith.addf %122, %123 : vector<8x128xf32>
    %125 = math.tanh %124 : vector<8x128xf32>
    %126 = arith.mulf %121, %125 : vector<8x128xf32>
    %c24 = arith.constant 24 : index
    %c0_37 = arith.constant 0 : index
    %127 = vector.load %arg9[%c24, %c0_37] : memref<64x512xf32, #tpu.memory_space<vmem>>, vector<8x512xf32>
    %128 = arith.addf %127, %111 : vector<8x512xf32>
    %129 = math.tanh %128 : vector<8x512xf32>
    %130 = vector.extract_strided_slice %129 {offsets = [0, 0], sizes = [8, 384], strides = [1, 1]} : vector<8x512xf32> to vector<8x384xf32>
    %cst_38 = arith.constant 5.000000e-01 : f32
    %131 = vector.broadcast %cst_38 : f32 to vector<8x384xf32>
    %132 = arith.mulf %131, %130 : vector<8x384xf32>
    %cst_39 = arith.constant 5.000000e-01 : f32
    %133 = vector.broadcast %cst_39 : f32 to vector<8x384xf32>
    %134 = arith.addf %132, %133 : vector<8x384xf32>
    %135 = vector.extract_strided_slice %129 {offsets = [0, 384], sizes = [8, 128], strides = [1, 1]} : vector<8x512xf32> to vector<8x128xf32>
    %136 = vector.extract_strided_slice %134 {offsets = [0, 0], sizes = [8, 128], strides = [1, 1]} : vector<8x384xf32> to vector<8x128xf32>
    %137 = vector.extract_strided_slice %134 {offsets = [0, 128], sizes = [8, 128], strides = [1, 1]} : vector<8x384xf32> to vector<8x128xf32>
    %138 = vector.extract_strided_slice %134 {offsets = [0, 256], sizes = [8, 128], strides = [1, 1]} : vector<8x384xf32> to vector<8x128xf32>
    %139 = arith.mulf %137, %103 : vector<8x128xf32>
    %140 = arith.mulf %136, %135 : vector<8x128xf32>
    %141 = arith.addf %139, %140 : vector<8x128xf32>
    %142 = math.tanh %141 : vector<8x128xf32>
    %143 = arith.mulf %138, %142 : vector<8x128xf32>
    %144 = tpu.concatenate %143, %126 in 1 : vector<8x128xf32>, vector<8x128xf32> -> vector<8x256xf32>
    %c0_40 = arith.constant 0 : index
    %c0_41 = arith.constant 0 : index
    %145 = vector.load %arg3[%c0_40, %c0_41] : memref<256x1024xf32, #tpu.memory_space<vmem>>, vector<256x1024xf32>
    %cst_42 = arith.constant dense<0.000000e+00> : vector<8x1024xf32>
    %146 = tpu.matmul %144, %145, %cst_42 {dimension_numbers = #tpu.dot_dimension_numbers<[1], [0], [0], [1], [0, 0, 1, 1], [], []>} : vector<8x256xf32>, vector<256x1024xf32>, vector<8x1024xf32> -> vector<8x1024xf32>
    %147 = vector.extract_strided_slice %146 {offsets = [0, 0], sizes = [8, 512], strides = [1, 1]} : vector<8x1024xf32> to vector<8x512xf32>
    %148 = arith.addf %147, %10 : vector<8x512xf32>
    %149 = vector.extract_strided_slice %146 {offsets = [0, 512], sizes = [8, 512], strides = [1, 1]} : vector<8x1024xf32> to vector<8x512xf32>
    %150 = math.tanh %148 : vector<8x512xf32>
    %151 = vector.extract_strided_slice %150 {offsets = [0, 0], sizes = [8, 384], strides = [1, 1]} : vector<8x512xf32> to vector<8x384xf32>
    %cst_43 = arith.constant 5.000000e-01 : f32
    %152 = vector.broadcast %cst_43 : f32 to vector<8x384xf32>
    %153 = arith.mulf %152, %151 : vector<8x384xf32>
    %cst_44 = arith.constant 5.000000e-01 : f32
    %154 = vector.broadcast %cst_44 : f32 to vector<8x384xf32>
    %155 = arith.addf %153, %154 : vector<8x384xf32>
    %156 = vector.extract_strided_slice %150 {offsets = [0, 384], sizes = [8, 128], strides = [1, 1]} : vector<8x512xf32> to vector<8x128xf32>
    %157 = vector.extract_strided_slice %155 {offsets = [0, 0], sizes = [8, 128], strides = [1, 1]} : vector<8x384xf32> to vector<8x128xf32>
    %158 = vector.extract_strided_slice %155 {offsets = [0, 128], sizes = [8, 128], strides = [1, 1]} : vector<8x384xf32> to vector<8x128xf32>
    %159 = vector.extract_strided_slice %155 {offsets = [0, 256], sizes = [8, 128], strides = [1, 1]} : vector<8x384xf32> to vector<8x128xf32>
    %160 = arith.mulf %158, %124 : vector<8x128xf32>
    %161 = arith.mulf %157, %156 : vector<8x128xf32>
    %162 = arith.addf %160, %161 : vector<8x128xf32>
    %163 = math.tanh %162 : vector<8x128xf32>
    %164 = arith.mulf %159, %163 : vector<8x128xf32>
    %c32 = arith.constant 32 : index
    %c0_45 = arith.constant 0 : index
    %165 = vector.load %arg9[%c32, %c0_45] : memref<64x512xf32, #tpu.memory_space<vmem>>, vector<8x512xf32>
    %166 = arith.addf %165, %149 : vector<8x512xf32>
    %167 = math.tanh %166 : vector<8x512xf32>
    %168 = vector.extract_strided_slice %167 {offsets = [0, 0], sizes = [8, 384], strides = [1, 1]} : vector<8x512xf32> to vector<8x384xf32>
    %cst_46 = arith.constant 5.000000e-01 : f32
    %169 = vector.broadcast %cst_46 : f32 to vector<8x384xf32>
    %170 = arith.mulf %169, %168 : vector<8x384xf32>
    %cst_47 = arith.constant 5.000000e-01 : f32
    %171 = vector.broadcast %cst_47 : f32 to vector<8x384xf32>
    %172 = arith.addf %170, %171 : vector<8x384xf32>
    %173 = vector.extract_strided_slice %167 {offsets = [0, 384], sizes = [8, 128], strides = [1, 1]} : vector<8x512xf32> to vector<8x128xf32>
    %174 = vector.extract_strided_slice %172 {offsets = [0, 0], sizes = [8, 128], strides = [1, 1]} : vector<8x384xf32> to vector<8x128xf32>
    %175 = vector.extract_strided_slice %172 {offsets = [0, 128], sizes = [8, 128], strides = [1, 1]} : vector<8x384xf32> to vector<8x128xf32>
    %176 = vector.extract_strided_slice %172 {offsets = [0, 256], sizes = [8, 128], strides = [1, 1]} : vector<8x384xf32> to vector<8x128xf32>
    %177 = arith.mulf %175, %141 : vector<8x128xf32>
    %178 = arith.mulf %174, %173 : vector<8x128xf32>
    %179 = arith.addf %177, %178 : vector<8x128xf32>
    %180 = math.tanh %179 : vector<8x128xf32>
    %181 = arith.mulf %176, %180 : vector<8x128xf32>
    %182 = tpu.concatenate %181, %164 in 1 : vector<8x128xf32>, vector<8x128xf32> -> vector<8x256xf32>
    %c0_48 = arith.constant 0 : index
    %c0_49 = arith.constant 0 : index
    %183 = vector.load %arg3[%c0_48, %c0_49] : memref<256x1024xf32, #tpu.memory_space<vmem>>, vector<256x1024xf32>
    %cst_50 = arith.constant dense<0.000000e+00> : vector<8x1024xf32>
    %184 = tpu.matmul %182, %183, %cst_50 {dimension_numbers = #tpu.dot_dimension_numbers<[1], [0], [0], [1], [0, 0, 1, 1], [], []>} : vector<8x256xf32>, vector<256x1024xf32>, vector<8x1024xf32> -> vector<8x1024xf32>
    %185 = vector.extract_strided_slice %184 {offsets = [0, 0], sizes = [8, 512], strides = [1, 1]} : vector<8x1024xf32> to vector<8x512xf32>
    %186 = arith.addf %185, %10 : vector<8x512xf32>
    %187 = vector.extract_strided_slice %184 {offsets = [0, 512], sizes = [8, 512], strides = [1, 1]} : vector<8x1024xf32> to vector<8x512xf32>
    %188 = math.tanh %186 : vector<8x512xf32>
    %189 = vector.extract_strided_slice %188 {offsets = [0, 0], sizes = [8, 384], strides = [1, 1]} : vector<8x512xf32> to vector<8x384xf32>
    %cst_51 = arith.constant 5.000000e-01 : f32
    %190 = vector.broadcast %cst_51 : f32 to vector<8x384xf32>
    %191 = arith.mulf %190, %189 : vector<8x384xf32>
    %cst_52 = arith.constant 5.000000e-01 : f32
    %192 = vector.broadcast %cst_52 : f32 to vector<8x384xf32>
    %193 = arith.addf %191, %192 : vector<8x384xf32>
    %194 = vector.extract_strided_slice %188 {offsets = [0, 384], sizes = [8, 128], strides = [1, 1]} : vector<8x512xf32> to vector<8x128xf32>
    %195 = vector.extract_strided_slice %193 {offsets = [0, 0], sizes = [8, 128], strides = [1, 1]} : vector<8x384xf32> to vector<8x128xf32>
    %196 = vector.extract_strided_slice %193 {offsets = [0, 128], sizes = [8, 128], strides = [1, 1]} : vector<8x384xf32> to vector<8x128xf32>
    %197 = vector.extract_strided_slice %193 {offsets = [0, 256], sizes = [8, 128], strides = [1, 1]} : vector<8x384xf32> to vector<8x128xf32>
    %198 = arith.mulf %196, %162 : vector<8x128xf32>
    %199 = arith.mulf %195, %194 : vector<8x128xf32>
    %200 = arith.addf %198, %199 : vector<8x128xf32>
    %201 = math.tanh %200 : vector<8x128xf32>
    %202 = arith.mulf %197, %201 : vector<8x128xf32>
    %c40 = arith.constant 40 : index
    %c0_53 = arith.constant 0 : index
    %203 = vector.load %arg9[%c40, %c0_53] : memref<64x512xf32, #tpu.memory_space<vmem>>, vector<8x512xf32>
    %204 = arith.addf %203, %187 : vector<8x512xf32>
    %205 = math.tanh %204 : vector<8x512xf32>
    %206 = vector.extract_strided_slice %205 {offsets = [0, 0], sizes = [8, 384], strides = [1, 1]} : vector<8x512xf32> to vector<8x384xf32>
    %cst_54 = arith.constant 5.000000e-01 : f32
    %207 = vector.broadcast %cst_54 : f32 to vector<8x384xf32>
    %208 = arith.mulf %207, %206 : vector<8x384xf32>
    %cst_55 = arith.constant 5.000000e-01 : f32
    %209 = vector.broadcast %cst_55 : f32 to vector<8x384xf32>
    %210 = arith.addf %208, %209 : vector<8x384xf32>
    %211 = vector.extract_strided_slice %205 {offsets = [0, 384], sizes = [8, 128], strides = [1, 1]} : vector<8x512xf32> to vector<8x128xf32>
    %212 = vector.extract_strided_slice %210 {offsets = [0, 0], sizes = [8, 128], strides = [1, 1]} : vector<8x384xf32> to vector<8x128xf32>
    %213 = vector.extract_strided_slice %210 {offsets = [0, 128], sizes = [8, 128], strides = [1, 1]} : vector<8x384xf32> to vector<8x128xf32>
    %214 = vector.extract_strided_slice %210 {offsets = [0, 256], sizes = [8, 128], strides = [1, 1]} : vector<8x384xf32> to vector<8x128xf32>
    %215 = arith.mulf %213, %179 : vector<8x128xf32>
    %216 = arith.mulf %212, %211 : vector<8x128xf32>
    %217 = arith.addf %215, %216 : vector<8x128xf32>
    %218 = math.tanh %217 : vector<8x128xf32>
    %219 = arith.mulf %214, %218 : vector<8x128xf32>
    %220 = tpu.concatenate %219, %202 in 1 : vector<8x128xf32>, vector<8x128xf32> -> vector<8x256xf32>
    %c0_56 = arith.constant 0 : index
    %c0_57 = arith.constant 0 : index
    %221 = vector.load %arg3[%c0_56, %c0_57] : memref<256x1024xf32, #tpu.memory_space<vmem>>, vector<256x1024xf32>
    %cst_58 = arith.constant dense<0.000000e+00> : vector<8x1024xf32>
    %222 = tpu.matmul %220, %221, %cst_58 {dimension_numbers = #tpu.dot_dimension_numbers<[1], [0], [0], [1], [0, 0, 1, 1], [], []>} : vector<8x256xf32>, vector<256x1024xf32>, vector<8x1024xf32> -> vector<8x1024xf32>
    %223 = vector.extract_strided_slice %222 {offsets = [0, 0], sizes = [8, 512], strides = [1, 1]} : vector<8x1024xf32> to vector<8x512xf32>
    %224 = arith.addf %223, %10 : vector<8x512xf32>
    %225 = vector.extract_strided_slice %222 {offsets = [0, 512], sizes = [8, 512], strides = [1, 1]} : vector<8x1024xf32> to vector<8x512xf32>
    %226 = math.tanh %224 : vector<8x512xf32>
    %227 = vector.extract_strided_slice %226 {offsets = [0, 0], sizes = [8, 384], strides = [1, 1]} : vector<8x512xf32> to vector<8x384xf32>
    %cst_59 = arith.constant 5.000000e-01 : f32
    %228 = vector.broadcast %cst_59 : f32 to vector<8x384xf32>
    %229 = arith.mulf %228, %227 : vector<8x384xf32>
    %cst_60 = arith.constant 5.000000e-01 : f32
    %230 = vector.broadcast %cst_60 : f32 to vector<8x384xf32>
    %231 = arith.addf %229, %230 : vector<8x384xf32>
    %232 = vector.extract_strided_slice %226 {offsets = [0, 384], sizes = [8, 128], strides = [1, 1]} : vector<8x512xf32> to vector<8x128xf32>
    %233 = vector.extract_strided_slice %231 {offsets = [0, 0], sizes = [8, 128], strides = [1, 1]} : vector<8x384xf32> to vector<8x128xf32>
    %234 = vector.extract_strided_slice %231 {offsets = [0, 128], sizes = [8, 128], strides = [1, 1]} : vector<8x384xf32> to vector<8x128xf32>
    %235 = vector.extract_strided_slice %231 {offsets = [0, 256], sizes = [8, 128], strides = [1, 1]} : vector<8x384xf32> to vector<8x128xf32>
    %236 = arith.mulf %234, %200 : vector<8x128xf32>
    %237 = arith.mulf %233, %232 : vector<8x128xf32>
    %238 = arith.addf %236, %237 : vector<8x128xf32>
    %239 = math.tanh %238 : vector<8x128xf32>
    %240 = arith.mulf %235, %239 : vector<8x128xf32>
    %c48 = arith.constant 48 : index
    %c0_61 = arith.constant 0 : index
    %241 = vector.load %arg9[%c48, %c0_61] : memref<64x512xf32, #tpu.memory_space<vmem>>, vector<8x512xf32>
    %242 = arith.addf %241, %225 : vector<8x512xf32>
    %243 = math.tanh %242 : vector<8x512xf32>
    %244 = vector.extract_strided_slice %243 {offsets = [0, 0], sizes = [8, 384], strides = [1, 1]} : vector<8x512xf32> to vector<8x384xf32>
    %cst_62 = arith.constant 5.000000e-01 : f32
    %245 = vector.broadcast %cst_62 : f32 to vector<8x384xf32>
    %246 = arith.mulf %245, %244 : vector<8x384xf32>
    %cst_63 = arith.constant 5.000000e-01 : f32
    %247 = vector.broadcast %cst_63 : f32 to vector<8x384xf32>
    %248 = arith.addf %246, %247 : vector<8x384xf32>
    %249 = vector.extract_strided_slice %243 {offsets = [0, 384], sizes = [8, 128], strides = [1, 1]} : vector<8x512xf32> to vector<8x128xf32>
    %250 = vector.extract_strided_slice %248 {offsets = [0, 0], sizes = [8, 128], strides = [1, 1]} : vector<8x384xf32> to vector<8x128xf32>
    %251 = vector.extract_strided_slice %248 {offsets = [0, 128], sizes = [8, 128], strides = [1, 1]} : vector<8x384xf32> to vector<8x128xf32>
    %252 = vector.extract_strided_slice %248 {offsets = [0, 256], sizes = [8, 128], strides = [1, 1]} : vector<8x384xf32> to vector<8x128xf32>
    %253 = arith.mulf %251, %217 : vector<8x128xf32>
    %254 = arith.mulf %250, %249 : vector<8x128xf32>
    %255 = arith.addf %253, %254 : vector<8x128xf32>
    %256 = math.tanh %255 : vector<8x128xf32>
    %257 = arith.mulf %252, %256 : vector<8x128xf32>
    %258 = tpu.concatenate %257, %240 in 1 : vector<8x128xf32>, vector<8x128xf32> -> vector<8x256xf32>
    %c0_64 = arith.constant 0 : index
    %c0_65 = arith.constant 0 : index
    %259 = vector.load %arg3[%c0_64, %c0_65] : memref<256x1024xf32, #tpu.memory_space<vmem>>, vector<256x1024xf32>
    %cst_66 = arith.constant dense<0.000000e+00> : vector<8x1024xf32>
    %260 = tpu.matmul %258, %259, %cst_66 {dimension_numbers = #tpu.dot_dimension_numbers<[1], [0], [0], [1], [0, 0, 1, 1], [], []>} : vector<8x256xf32>, vector<256x1024xf32>, vector<8x1024xf32> -> vector<8x1024xf32>
    %261 = vector.extract_strided_slice %260 {offsets = [0, 0], sizes = [8, 512], strides = [1, 1]} : vector<8x1024xf32> to vector<8x512xf32>
    %262 = arith.addf %261, %10 : vector<8x512xf32>
    %263 = vector.extract_strided_slice %260 {offsets = [0, 512], sizes = [8, 512], strides = [1, 1]} : vector<8x1024xf32> to vector<8x512xf32>
    %264 = math.tanh %262 : vector<8x512xf32>
    %265 = vector.extract_strided_slice %264 {offsets = [0, 0], sizes = [8, 384], strides = [1, 1]} : vector<8x512xf32> to vector<8x384xf32>
    %cst_67 = arith.constant 5.000000e-01 : f32
    %266 = vector.broadcast %cst_67 : f32 to vector<8x384xf32>
    %267 = arith.mulf %266, %265 : vector<8x384xf32>
    %cst_68 = arith.constant 5.000000e-01 : f32
    %268 = vector.broadcast %cst_68 : f32 to vector<8x384xf32>
    %269 = arith.addf %267, %268 : vector<8x384xf32>
    %270 = vector.extract_strided_slice %264 {offsets = [0, 384], sizes = [8, 128], strides = [1, 1]} : vector<8x512xf32> to vector<8x128xf32>
    %271 = vector.extract_strided_slice %269 {offsets = [0, 0], sizes = [8, 128], strides = [1, 1]} : vector<8x384xf32> to vector<8x128xf32>
    %272 = vector.extract_strided_slice %269 {offsets = [0, 128], sizes = [8, 128], strides = [1, 1]} : vector<8x384xf32> to vector<8x128xf32>
    %273 = vector.extract_strided_slice %269 {offsets = [0, 256], sizes = [8, 128], strides = [1, 1]} : vector<8x384xf32> to vector<8x128xf32>
    %274 = arith.mulf %272, %238 : vector<8x128xf32>
    %275 = arith.mulf %271, %270 : vector<8x128xf32>
    %276 = arith.addf %274, %275 : vector<8x128xf32>
    %277 = math.tanh %276 : vector<8x128xf32>
    %278 = arith.mulf %273, %277 : vector<8x128xf32>
    %c56 = arith.constant 56 : index
    %c0_69 = arith.constant 0 : index
    %279 = vector.load %arg9[%c56, %c0_69] : memref<64x512xf32, #tpu.memory_space<vmem>>, vector<8x512xf32>
    %280 = arith.addf %279, %263 : vector<8x512xf32>
    %281 = math.tanh %280 : vector<8x512xf32>
    %282 = vector.extract_strided_slice %281 {offsets = [0, 0], sizes = [8, 384], strides = [1, 1]} : vector<8x512xf32> to vector<8x384xf32>
    %cst_70 = arith.constant 5.000000e-01 : f32
    %283 = vector.broadcast %cst_70 : f32 to vector<8x384xf32>
    %284 = arith.mulf %283, %282 : vector<8x384xf32>
    %cst_71 = arith.constant 5.000000e-01 : f32
    %285 = vector.broadcast %cst_71 : f32 to vector<8x384xf32>
    %286 = arith.addf %284, %285 : vector<8x384xf32>
    %287 = vector.extract_strided_slice %281 {offsets = [0, 384], sizes = [8, 128], strides = [1, 1]} : vector<8x512xf32> to vector<8x128xf32>
    %288 = vector.extract_strided_slice %286 {offsets = [0, 0], sizes = [8, 128], strides = [1, 1]} : vector<8x384xf32> to vector<8x128xf32>
    %289 = vector.extract_strided_slice %286 {offsets = [0, 128], sizes = [8, 128], strides = [1, 1]} : vector<8x384xf32> to vector<8x128xf32>
    %290 = vector.extract_strided_slice %286 {offsets = [0, 256], sizes = [8, 128], strides = [1, 1]} : vector<8x384xf32> to vector<8x128xf32>
    %291 = arith.mulf %289, %255 : vector<8x128xf32>
    %292 = arith.mulf %288, %287 : vector<8x128xf32>
    %293 = arith.addf %291, %292 : vector<8x128xf32>
    %294 = math.tanh %293 : vector<8x128xf32>
    %295 = arith.mulf %290, %294 : vector<8x128xf32>
    %296 = tpu.concatenate %295, %278 in 1 : vector<8x128xf32>, vector<8x128xf32> -> vector<8x256xf32>
    %c0_72 = arith.constant 0 : index
    %c0_73 = arith.constant 0 : index
    %297 = vector.load %arg3[%c0_72, %c0_73] : memref<256x1024xf32, #tpu.memory_space<vmem>>, vector<256x512xf32>
    %cst_74 = arith.constant dense<0.000000e+00> : vector<8x512xf32>
    %298 = tpu.matmul %296, %297, %cst_74 {dimension_numbers = #tpu.dot_dimension_numbers<[1], [0], [0], [1], [0, 0, 1, 1], [], []>} : vector<8x256xf32>, vector<256x512xf32>, vector<8x512xf32> -> vector<8x512xf32>
    %299 = arith.addf %298, %10 : vector<8x512xf32>
    %300 = math.tanh %299 : vector<8x512xf32>
    %301 = vector.extract_strided_slice %300 {offsets = [0, 0], sizes = [8, 384], strides = [1, 1]} : vector<8x512xf32> to vector<8x384xf32>
    %cst_75 = arith.constant 5.000000e-01 : f32
    %302 = vector.broadcast %cst_75 : f32 to vector<8x384xf32>
    %303 = arith.mulf %302, %301 : vector<8x384xf32>
    %cst_76 = arith.constant 5.000000e-01 : f32
    %304 = vector.broadcast %cst_76 : f32 to vector<8x384xf32>
    %305 = arith.addf %303, %304 : vector<8x384xf32>
    %306 = vector.extract_strided_slice %300 {offsets = [0, 384], sizes = [8, 128], strides = [1, 1]} : vector<8x512xf32> to vector<8x128xf32>
    %307 = vector.extract_strided_slice %305 {offsets = [0, 0], sizes = [8, 128], strides = [1, 1]} : vector<8x384xf32> to vector<8x128xf32>
    %308 = vector.extract_strided_slice %305 {offsets = [0, 128], sizes = [8, 128], strides = [1, 1]} : vector<8x384xf32> to vector<8x128xf32>
    %309 = vector.extract_strided_slice %305 {offsets = [0, 256], sizes = [8, 128], strides = [1, 1]} : vector<8x384xf32> to vector<8x128xf32>
    %310 = arith.mulf %308, %276 : vector<8x128xf32>
    %311 = arith.mulf %307, %306 : vector<8x128xf32>
    %312 = arith.addf %310, %311 : vector<8x128xf32>
    %313 = math.tanh %312 : vector<8x128xf32>
    %314 = arith.mulf %309, %313 : vector<8x128xf32>
    %c0_77 = arith.constant 0 : index
    %c0_78 = arith.constant 0 : index
    %315 = vector.load %arg6[%c0_77, %c0_78] : memref<1x128xf32, #tpu.memory_space<vmem>>, vector<1x128xf32>
    %316 = vector.broadcast %315 : vector<1x128xf32> to vector<8x128xf32>
    %317 = arith.mulf %314, %316 : vector<8x128xf32>
    %cst_79 = arith.constant dense<0.000000e+00> : vector<8xf32>
    %318 = vector.multi_reduction <add>, %317, %cst_79 [1] : vector<8x128xf32> to vector<8xf32>
    %319 = vector.shape_cast %318 : vector<8xf32> to vector<8x1xf32>
    %c0_80 = arith.constant 0 : index
    %c0_81 = arith.constant 0 : index
    %320 = vector.load %arg7[%c0_80, %c0_81] : memref<1x1xf32, #tpu.memory_space<vmem>>, vector<1x1xf32>
    %321 = vector.broadcast %320 : vector<1x1xf32> to vector<8x1xf32>
    %322 = arith.addf %319, %321 : vector<8x1xf32>
    %323 = math.tanh %322 : vector<8x1xf32>
    %cst_82 = arith.constant 5.000000e-01 : f32
    %324 = vector.broadcast %cst_82 : f32 to vector<8x1xf32>
    %325 = arith.mulf %324, %323 : vector<8x1xf32>
    %cst_83 = arith.constant 5.000000e-01 : f32
    %326 = vector.broadcast %cst_83 : f32 to vector<8x1xf32>
    %327 = arith.addf %325, %326 : vector<8x1xf32>
    %c0_84 = arith.constant 0 : index
    %c0_85 = arith.constant 0 : index
    %328 = vector.load %arg8[%c0_84, %c0_85] : memref<8x1xf32, #tpu.memory_space<vmem>>, vector<8x1xf32>
    tpu.vector_store %arg8[%c0_84, %c0_85], %327 {strides = array<i32>} : memref<8x1xf32, #tpu.memory_space<vmem>>, vector<8x1xf32>,
    return
  }
  func.func @transform_0(%arg0: i32) -> (i32, i32, i32) {
    %c0_i32 = arith.constant 0 : i32
    %c0_i32_0 = arith.constant 0 : i32
    %c0_i32_1 = arith.constant 0 : i32
    return %arg0, %c0_i32, %c0_i32_0 : i32, i32, i32
  }
  func.func @transform_1(%arg0: i32) -> (i32, i32) {
    %c0_i32 = arith.constant 0 : i32
    %c0_i32_0 = arith.constant 0 : i32
    %c0_i32_1 = arith.constant 0 : i32
    return %c0_i32, %c0_i32_0 : i32, i32
  }
  func.func @transform_2(%arg0: i32) -> (i32, i32) {
    %c0_i32 = arith.constant 0 : i32
    %c0_i32_0 = arith.constant 0 : i32
    %c0_i32_1 = arith.constant 0 : i32
    return %c0_i32, %c0_i32_0 : i32, i32
  }
  func.func @transform_3(%arg0: i32) -> (i32, i32) {
    %c0_i32 = arith.constant 0 : i32
    %c0_i32_0 = arith.constant 0 : i32
    %c0_i32_1 = arith.constant 0 : i32
    return %c0_i32, %c0_i32_0 : i32, i32
  }
  func.func @transform_4(%arg0: i32) -> (i32, i32) {
    %c0_i32 = arith.constant 0 : i32
    %c0_i32_0 = arith.constant 0 : i32
    %c0_i32_1 = arith.constant 0 : i32
    return %c0_i32, %c0_i32_0 : i32, i32
  }
  func.func @transform_5(%arg0: i32) -> (i32, i32) {
    %c0_i32 = arith.constant 0 : i32
    %c0_i32_0 = arith.constant 0 : i32
    %c0_i32_1 = arith.constant 0 : i32
    return %c0_i32, %c0_i32_0 : i32, i32
  }
  func.func @transform_6(%arg0: i32) -> (i32, i32) {
    %c0_i32 = arith.constant 0 : i32
    %c0_i32_0 = arith.constant 0 : i32
    %c0_i32_1 = arith.constant 0 : i32
    return %c0_i32, %c0_i32_0 : i32, i32
  }
  func.func @transform_7(%arg0: i32) -> (i32, i32) {
    %c0_i32 = arith.constant 0 : i32
    %c0_i32_0 = arith.constant 0 : i32
    return %arg0, %c0_i32 : i32, i32
  }
}

</mosaic_0001>

<llo_original>
// kernel: rnn_forward.1
$region0: #{rnn_forward.1}
  #allocation0 [shape = 'u32[]', space=smem, size = 0x4, offset = 0x4, fixed_abs, tag = 'smem constant byte address 0x4 - core index']
  #allocation1 [shape = 'u32[144,128]{1,0:T(1,128)}', space=vmem, size = 0x12000, scoped, tag = 'internal scratch']
  #allocation2 [shape = 'f32[64,512]{1,0:T(8,128)}', space=vmem, size = 0x20000, scoped, tag = 'scratch operand']
  #allocation3 [shape = 'f32[1,1]{1,0:T(1,128)S(1)}', space=vmem, size = 0x200, scoped, tag = 'scoped memory for rnn_forward.1']
  %s0 = inlined_call_operand.vmem [shape: f32[1,64,12], index: 0, kind: input, shape index: {}]
  %s1 = inlined_call_operand.vmem [shape: f32[12,512], index: 1, kind: input, shape index: {}]
  %s2 = inlined_call_operand.hbm [shape: f32[256,1024], index: 2, kind: input, shape index: {}]
  %s3 = inlined_call_operand.vmem [shape: f32[1,512], index: 3, kind: input, shape index: {}]
  %s4 = inlined_call_operand.vmem [shape: f32[1,512], index: 4, kind: input, shape index: {}]
  %s5 = inlined_call_operand.vmem [shape: f32[1,128], index: 5, kind: input, shape index: {}]
  %s6 = inlined_call_operand.<no memory space> [shape: f32[1,1], index: 6, kind: input, shape index: {}]
  %s7 = inlined_call_operand.vmem [shape: f32[8,1], index: 7, kind: output, shape index: {}]
  %s8 = sld [smem:[#allocation0]]
  $region42: #{rnn_forward.1} parent=0
    _
  %s10 = ssub.s32 1, %s8
  %s11 = scalar_select 0, %s10, %s8
  %v12 = vstv %s6
  %13 = vst [vmem:[#allocation3] sm:$0x1] %v12
  $region1: #{rnn_forward.1} parent=0
    #allocation4 [shape = 'u8[1048576]{0}', space=vmem, size = 0x100000, scoped, tag = 'input window, operand 2, single buffered']
    #allocation5 [shape = 's32[1]{0}', space=sflag, size = 0x4, scoped, tag = 'scoped memory for rnn_forward.1']
    %14 = vsyncpa [#allocation5], 0
    // Predicated region
    $region2: #{rnn_forward.1} parent=1 // pred_check
      _
    $region3: #{rnn_forward.1} parent=1 // pred_check_branch
      %16 = sbr.rel (0) target = $region5
    $region4: #{rnn_forward.1} parent=1 // pred_region
      _
    $region5: #{rnn_forward.1} parent=1 // pred_fallthru
      _
    // Predicated region
    $region6: #{rnn_forward.1} parent=1 // pred_check
      _
    $region7: #{rnn_forward.1} parent=1 // pred_check_branch
      %18 = sbr.rel (0) target = $region9
    $region8: #{rnn_forward.1} parent=1 // pred_region
      _
    $region9: #{rnn_forward.1} parent=1 // pred_fallthru
      _
    // Predicated region
    $region10: #{rnn_forward.1} parent=1 // pred_check
      _
    $region11: #{rnn_forward.1} parent=1 // pred_check_branch
      %20 = sbr.rel (0) target = $region13
    $region12: #{rnn_forward.1} parent=1 // pred_region
      %s22 = ssub.s32 32768, 32768
      %23 = vsyncadd [#allocation5], %s22
      %s24 = sshll.u32 [#allocation4], 4
      %s25 = int_to_ptr.vmem [resolvable:$true] %s24
      %30 = dma.hbm_to_vmem [thread:$0]  %s2, 32768, %s25, [#allocation5], 1024, 1024, 64
    $region13: #{rnn_forward.1} parent=1 // pred_fallthru
      _
    // Predicated region
    $region14: #{rnn_forward.1} parent=1 // pred_check
      _
    $region15: #{rnn_forward.1} parent=1 // pred_check_branch
      %32 = sbr.rel (0) target = $region17
    $region16: #{rnn_forward.1} parent=1 // pred_region
      _
    $region17: #{rnn_forward.1} parent=1 // pred_fallthru
      _
    // Predicated region
    $region18: #{rnn_forward.1} parent=1 // pred_check
      _
    $region19: #{rnn_forward.1} parent=1 // pred_check_branch
      %34 = sbr.rel (0) target = $region21
    $region20: #{rnn_forward.1} parent=1 // pred_region
      _
    $region21: #{rnn_forward.1} parent=1 // pred_fallthru
      _
    // Predicated region
    $region22: #{rnn_forward.1} parent=1 // pred_check
      _
    $region23: #{rnn_forward.1} parent=1 // pred_check_branch
      %36 = sbr.rel (0) target = $region25
    $region24: #{rnn_forward.1} parent=1 // pred_region
      _
    $region25: #{rnn_forward.1} parent=1 // pred_fallthru
      _
    // Predicated region
    $region26: #{rnn_forward.1} parent=1 // pred_check
      _
    $region27: #{rnn_forward.1} parent=1 // pred_check_branch
      %38 = sbr.rel (0) target = $region29
    $region28: #{rnn_forward.1} parent=1 // pred_region
      _
    $region29: #{rnn_forward.1} parent=1 // pred_fallthru
      _
    // Predicated region
    $region30: #{rnn_forward.1} parent=1 // pred_check
      _
    $region31: #{rnn_forward.1} parent=1 // pred_check_branch
      %40 = sbr.rel (0) target = $region33
    $region32: #{rnn_forward.1} parent=1 // pred_region
      %41 = dma.done [#allocation5], 32768
    $region33: #{rnn_forward.1} parent=1 // pred_fallthru
      _
    %v42 = vld [vmem:[%s0] sm:$0xff]
    %v43 = vld [vmem:[%s0 + $0x8] sm:$0xff]
    %v44 = vld [vmem:[%s0 + $0x10] sm:$0xff]
    %v45 = vld [vmem:[%s0 + $0x18] sm:$0xff]
    %v46 = vld [vmem:[%s0 + $0x20] sm:$0xff]
    %v47 = vld [vmem:[%s0 + $0x28] sm:$0xff]
    %v48 = vld [vmem:[%s0 + $0x30] sm:$0xff]
    %v49 = vld [vmem:[%s0 + $0x38] sm:$0xff]
    %v50 = vld [vmem:[%s1] sm:$0xff]
    %v51 = vld [vmem:[%s1 + $0x8] sm:$0xff]
    %v52 = vld [vmem:[%s1 + $0x10] sm:$0xff]
    %v53 = vld [vmem:[%s1 + $0x18] sm:$0xff]
    %v54 = vld [vmem:[%s1 + $0x20] sm:$0xf]
    %v55 = vld [vmem:[%s1 + $0x28] sm:$0xf]
    %v56 = vld [vmem:[%s1 + $0x30] sm:$0xf]
    %v57 = vld [vmem:[%s1 + $0x38] sm:$0xf]
    %v58 = vld [vmem:[%s3] sm:$0xf]
    %v60 = vlaneseq
    %v61 = vshrl.u32 %v60, 7
    %v62 = vsub.s32 0, %v61
    %v63 = vrot.slane %v58, %v62
    %v64 = vlaneseq
    %v65 = vshrl.u32 %v64, 7
    %v66 = vsub.s32 1, %v65
    %v67 = vrot.slane %v58, %v66
    %v68 = vlaneseq
    %v69 = vshrl.u32 %v68, 7
    %v70 = vsub.s32 2, %v69
    %v71 = vrot.slane %v58, %v70
    %v72 = vlaneseq
    %v73 = vshrl.u32 %v72, 7
    %v74 = vsub.s32 3, %v73
    %v75 = vrot.slane %v58, %v74
    %vm80 = vcmask 97280
    %v82 = vsel %vm80, %v42, 0
    %v85 = vsel %vm80, %v43, 0
    %v88 = vsel %vm80, %v44, 0
    %v91 = vsel %vm80, %v45, 0
    %v94 = vsel %vm80, %v46, 0
    %v97 = vsel %vm80, %v47, 0
    %v100 = vsel %vm80, %v48, 0
    %v103 = vsel %vm80, %v49, 0
    %vm105 = vcmask 1043456
    %v107 = vsel %vm105, %v54, 0
    %v110 = vsel %vm105, %v55, 0
    %v113 = vsel %vm105, %v56, 0
    %v116 = vsel %vm105, %v57, 0
    %118 = vmatprep.subr.mxu0 0.0
    %119 = vmatpush1.msra.mxu0 0.0
    %120 = vmatprep.subr.mxu0 0.0
    %121 = vmatpush1.msra.mxu0 0.0
    %122 = vmatprep.subr.mxu0 0.0
    %123 = vmatpush1.msra.mxu0 0.0
    %124 = vmatprep.subr.mxu0 0.0
    %125 = vmatpush1.msra.mxu0 0.0
    %126 = vmatprep.subr.mxu0 0.0
    %127 = vmatpush1.msra.mxu0 0.0
    %128 = vmatprep.subr.mxu0 0.0
    %129 = vmatpush1.msra.mxu0 0.0
    %130 = vmatprep.subr.mxu0 0.0
    %131 = vmatpush1.msra.mxu0 0.0
    %132 = vmatprep.subr.mxu0 0.0
    %133 = vmatpush1.msra.mxu0 0.0
    %134 = vmatprep.subr.mxu0 0.0
    %135 = vmatpush1.msra.mxu0 0.0
    %136 = vmatprep.subr.mxu0 0.0
    %137 = vmatpush1.msra.mxu0 0.0
    %138 = vmatprep.subr.mxu0 0.0
    %139 = vmatpush1.msra.mxu0 0.0
    %140 = vmatprep.subr.mxu0 0.0
    %141 = vmatpush1.msra.mxu0 0.0
    %142 = vmatprep.subr.mxu0 0.0
    %143 = vmatpush1.msra.mxu0 0.0
    %144 = vmatprep.subr.mxu0 0.0
    %145 = vmatpush1.msra.mxu0 0.0
    %146 = vmatprep.subr.mxu0 %v110
    %147 = vmatpush1.msra.mxu0 %v107
    %148 = vmatprep.subr.mxu0 %v51
    %149 = vmatpush1.msra.mxu0 %v50
    %150 = vmatprep.subr.mxu0 0.0
    %151 = vmatpush2.msra.mxu0 0.0
    %152 = vmatprep.subr.mxu0 0.0
    %153 = vmatpush2.msra.mxu0 0.0
    %154 = vmatprep.subr.mxu0 0.0
    %155 = vmatpush2.msra.mxu0 0.0
    %156 = vmatprep.subr.mxu0 0.0
    %157 = vmatpush2.msra.mxu0 0.0
    %158 = vmatprep.subr.mxu0 0.0
    %159 = vmatpush2.msra.mxu0 0.0
    %160 = vmatprep.subr.mxu0 0.0
    %161 = vmatpush2.msra.mxu0 0.0
    %162 = vmatprep.subr.mxu0 0.0
    %163 = vmatpush2.msra.mxu0 0.0
    %164 = vmatprep.subr.mxu0 0.0
    %165 = vmatpush2.msra.mxu0 0.0
    %166 = vmatprep.subr.mxu0 0.0
    %167 = vmatpush2.msra.mxu0 0.0
    %168 = vmatprep.subr.mxu0 0.0
    %169 = vmatpush2.msra.mxu0 0.0
    %170 = vmatprep.subr.mxu0 0.0
    %171 = vmatpush2.msra.mxu0 0.0
    %172 = vmatprep.subr.mxu0 0.0
    %173 = vmatpush2.msra.mxu0 0.0
    %174 = vmatprep.subr.mxu0 0.0
    %175 = vmatpush2.msra.mxu0 0.0
    %176 = vmatprep.subr.mxu0 0.0
    %177 = vmatpush2.msra.mxu0 0.0
    %178 = vmatprep.subr.mxu0 0.0
    %179 = vmatpush2.msra.mxu0 0.0
    %180 = vmatprep.subr.mxu0 0.0
    %181 = vmatpush2.msra.mxu0 0.0
    %182 = vmatprep.mubr.f32.mxu0 0.0
    %183 = vmatmul.mubr.f32.gmra.mxu0 %v82
    %v184 = vpop.f32.mrf.mxu0
    %v185 = vadd.f32 %v63, %v184
    %v186 = vpop.f32.mrf.mxu0
    %v187 = vadd.f32 %v67, %v186
    %188 = vmatprep.mubr.f32.mxu0 0.0
    %189 = vmatmul.mubr.f32.gmra.mxu0 %v85
    %v190 = vpop.f32.mrf.mxu0
    %v191 = vadd.f32 %v63, %v190
    %v192 = vpop.f32.mrf.mxu0
    %v193 = vadd.f32 %v67, %v192
    %194 = vmatprep.mubr.f32.mxu0 0.0
    %195 = vmatmul.mubr.f32.gmra.mxu0 %v88
    %v196 = vpop.f32.mrf.mxu0
    %v197 = vadd.f32 %v63, %v196
    %v198 = vpop.f32.mrf.mxu0
    %v199 = vadd.f32 %v67, %v198
    %200 = vmatprep.mubr.f32.mxu0 0.0
    %201 = vmatmul.mubr.f32.gmra.mxu0 %v91
    %v202 = vpop.f32.mrf.mxu0
    %v203 = vadd.f32 %v63, %v202
    %v204 = vpop.f32.mrf.mxu0
    %v205 = vadd.f32 %v67, %v204
    %206 = vmatprep.mubr.f32.mxu0 0.0
    %207 = vmatmul.mubr.f32.gmra.mxu0 %v94
    %v208 = vpop.f32.mrf.mxu0
    %v209 = vadd.f32 %v63, %v208
    %v210 = vpop.f32.mrf.mxu0
    %v211 = vadd.f32 %v67, %v210
    %212 = vmatprep.mubr.f32.mxu0 0.0
    %213 = vmatmul.mubr.f32.gmra.mxu0 %v97
    %v214 = vpop.f32.mrf.mxu0
    %v215 = vadd.f32 %v63, %v214
    %v216 = vpop.f32.mrf.mxu0
    %v217 = vadd.f32 %v67, %v216
    %218 = vmatprep.mubr.f32.mxu0 0.0
    %219 = vmatmul.mubr.f32.gmra.mxu0 %v100
    %v220 = vpop.f32.mrf.mxu0
    %v221 = vadd.f32 %v63, %v220
    %v222 = vpop.f32.mrf.mxu0
    %v223 = vadd.f32 %v67, %v222
    %224 = vmatprep.mubr.f32.mxu0 0.0
    %225 = vmatmul.mubr.f32.gmra.mxu0 %v103
    %v226 = vpop.f32.mrf.mxu0
    %v227 = vadd.f32 %v63, %v226
    %v228 = vpop.f32.mrf.mxu0
    %v229 = vadd.f32 %v67, %v228
    %230 = vdwg.mxu0
    %231 = vmatprep.subr.mxu0 0.0
    %232 = vmatpush1.msra.mxu0 0.0
    %233 = vmatprep.subr.mxu0 0.0
    %234 = vmatpush1.msra.mxu0 0.0
    %235 = vmatprep.subr.mxu0 0.0
    %236 = vmatpush1.msra.mxu0 0.0
    %237 = vmatprep.subr.mxu0 0.0
    %238 = vmatpush1.msra.mxu0 0.0
    %239 = vmatprep.subr.mxu0 0.0
    %240 = vmatpush1.msra.mxu0 0.0
    %241 = vmatprep.subr.mxu0 0.0
    %242 = vmatpush1.msra.mxu0 0.0
    %243 = vmatprep.subr.mxu0 0.0
    %244 = vmatpush1.msra.mxu0 0.0
    %245 = vmatprep.subr.mxu0 0.0
    %246 = vmatpush1.msra.mxu0 0.0
    %247 = vmatprep.subr.mxu0 0.0
    %248 = vmatpush1.msra.mxu0 0.0
    %249 = vmatprep.subr.mxu0 0.0
    %250 = vmatpush1.msra.mxu0 0.0
    %251 = vmatprep.subr.mxu0 0.0
    %252 = vmatpush1.msra.mxu0 0.0
    %253 = vmatprep.subr.mxu0 0.0
    %254 = vmatpush1.msra.mxu0 0.0
    %255 = vmatprep.subr.mxu0 0.0
    %256 = vmatpush1.msra.mxu0 0.0
    %257 = vmatprep.subr.mxu0 0.0
    %258 = vmatpush1.msra.mxu0 0.0
    %259 = vmatprep.subr.mxu0 %v116
    %260 = vmatpush1.msra.mxu0 %v113
    %261 = vmatprep.subr.mxu0 %v53
    %262 = vmatpush1.msra.mxu0 %v52
    %263 = vmatprep.subr.mxu0 0.0
    %264 = vmatpush2.msra.mxu0 0.0
    %265 = vmatprep.subr.mxu0 0.0
    %266 = vmatpush2.msra.mxu0 0.0
    %267 = vmatprep.subr.mxu0 0.0
    %268 = vmatpush2.msra.mxu0 0.0
    %269 = vmatprep.subr.mxu0 0.0
    %270 = vmatpush2.msra.mxu0 0.0
    %271 = vmatprep.subr.mxu0 0.0
    %272 = vmatpush2.msra.mxu0 0.0
    %273 = vmatprep.subr.mxu0 0.0
    %274 = vmatpush2.msra.mxu0 0.0
    %275 = vmatprep.subr.mxu0 0.0
    %276 = vmatpush2.msra.mxu0 0.0
    %277 = vmatprep.subr.mxu0 0.0
    %278 = vmatpush2.msra.mxu0 0.0
    %279 = vmatprep.subr.mxu0 0.0
    %280 = vmatpush2.msra.mxu0 0.0
    %281 = vmatprep.subr.mxu0 0.0
    %282 = vmatpush2.msra.mxu0 0.0
    %283 = vmatprep.subr.mxu0 0.0
    %284 = vmatpush2.msra.mxu0 0.0
    %285 = vmatprep.subr.mxu0 0.0
    %286 = vmatpush2.msra.mxu0 0.0
    %287 = vmatprep.subr.mxu0 0.0
    %288 = vmatpush2.msra.mxu0 0.0
    %289 = vmatprep.subr.mxu0 0.0
    %290 = vmatpush2.msra.mxu0 0.0
    %291 = vmatprep.subr.mxu0 0.0
    %292 = vmatpush2.msra.mxu0 0.0
    %293 = vmatprep.subr.mxu0 0.0
    %294 = vmatpush2.msra.mxu0 0.0
    %295 = vmatprep.mubr.f32.mxu0 0.0
    %296 = vmatmul.mubr.f32.gmra.mxu0 %v82
    %v297 = vpop.f32.mrf.mxu0
    %v298 = vadd.f32 %v71, %v297
    %v299 = vpop.f32.mrf.mxu0
    %v300 = vadd.f32 %v75, %v299
    %301 = vmatprep.mubr.f32.mxu0 0.0
    %302 = vmatmul.mubr.f32.gmra.mxu0 %v85
    %v303 = vpop.f32.mrf.mxu0
    %v304 = vadd.f32 %v71, %v303
    %v305 = vpop.f32.mrf.mxu0
    %v306 = vadd.f32 %v75, %v305
    %307 = vmatprep.mubr.f32.mxu0 0.0
    %308 = vmatmul.mubr.f32.gmra.mxu0 %v88
    %v309 = vpop.f32.mrf.mxu0
    %v310 = vadd.f32 %v71, %v309
    %v311 = vpop.f32.mrf.mxu0
    %v312 = vadd.f32 %v75, %v311
    %313 = vmatprep.mubr.f32.mxu0 0.0
    %314 = vmatmul.mubr.f32.gmra.mxu0 %v91
    %v315 = vpop.f32.mrf.mxu0
    %v316 = vadd.f32 %v71, %v315
    %v317 = vpop.f32.mrf.mxu0
    %v318 = vadd.f32 %v75, %v317
    %319 = vmatprep.mubr.f32.mxu0 0.0
    %320 = vmatmul.mubr.f32.gmra.mxu0 %v94
    %v321 = vpop.f32.mrf.mxu0
    %v322 = vadd.f32 %v71, %v321
    %v323 = vpop.f32.mrf.mxu0
    %v324 = vadd.f32 %v75, %v323
    %325 = vmatprep.mubr.f32.mxu0 0.0
    %326 = vmatmul.mubr.f32.gmra.mxu0 %v97
    %v327 = vpop.f32.mrf.mxu0
    %v328 = vadd.f32 %v71, %v327
    %v329 = vpop.f32.mrf.mxu0
    %v330 = vadd.f32 %v75, %v329
    %331 = vmatprep.mubr.f32.mxu0 0.0
    %332 = vmatmul.mubr.f32.gmra.mxu0 %v100
    %v333 = vpop.f32.mrf.mxu0
    %v334 = vadd.f32 %v71, %v333
    %v335 = vpop.f32.mrf.mxu0
    %v336 = vadd.f32 %v75, %v335
    %337 = vmatprep.mubr.f32.mxu0 0.0
    %338 = vmatmul.mubr.f32.gmra.mxu0 %v103
    %v339 = vpop.f32.mrf.mxu0
    %v340 = vadd.f32 %v71, %v339
    %v341 = vpop.f32.mrf.mxu0
    %v342 = vadd.f32 %v75, %v341
    %343 = vdwg.mxu0
    %344 = vst [vmem:[#allocation2] sm:$0xff] %v185
    %345 = vst [vmem:[#allocation2 + $0x8] sm:$0xff] %v187
    %346 = vst [vmem:[#allocation2 + $0x10] sm:$0xff] %v298
    %347 = vst [vmem:[#allocation2 + $0x18] sm:$0xff] %v300
    %348 = vst [vmem:[#allocation2 + $0x20] sm:$0xff] %v191
    %349 = vst [vmem:[#allocation2 + $0x28] sm:$0xff] %v193
    %350 = vst [vmem:[#allocation2 + $0x30] sm:$0xff] %v304
    %351 = vst [vmem:[#allocation2 + $0x38] sm:$0xff] %v306
    %352 = vst [vmem:[#allocation2 + $0x40] sm:$0xff] %v197
    %353 = vst [vmem:[#allocation2 + $0x48] sm:$0xff] %v199
    %354 = vst [vmem:[#allocation2 + $0x50] sm:$0xff] %v310
    %355 = vst [vmem:[#allocation2 + $0x58] sm:$0xff] %v312
    %356 = vst [vmem:[#allocation2 + $0x60] sm:$0xff] %v203
    %357 = vst [vmem:[#allocation2 + $0x68] sm:$0xff] %v205
    %358 = vst [vmem:[#allocation2 + $0x70] sm:$0xff] %v316
    %359 = vst [vmem:[#allocation2 + $0x78] sm:$0xff] %v318
    %360 = vst [vmem:[#allocation2 + $0x80] sm:$0xff] %v209
    %361 = vst [vmem:[#allocation2 + $0x88] sm:$0xff] %v211
    %362 = vst [vmem:[#allocation2 + $0x90] sm:$0xff] %v322
    %363 = vst [vmem:[#allocation2 + $0x98] sm:$0xff] %v324
    %364 = vst [vmem:[#allocation2 + $0xa0] sm:$0xff] %v215
    %365 = vst [vmem:[#allocation2 + $0xa8] sm:$0xff] %v217
    %366 = vst [vmem:[#allocation2 + $0xb0] sm:$0xff] %v328
    %367 = vst [vmem:[#allocation2 + $0xb8] sm:$0xff] %v330
    %368 = vst [vmem:[#allocation2 + $0xc0] sm:$0xff] %v221
    %369 = vst [vmem:[#allocation2 + $0xc8] sm:$0xff] %v223
    %370 = vst [vmem:[#allocation2 + $0xd0] sm:$0xff] %v334
    %371 = vst [vmem:[#allocation2 + $0xd8] sm:$0xff] %v336
    %372 = vst [vmem:[#allocation2 + $0xe0] sm:$0xff] %v227
    %373 = vst [vmem:[#allocation2 + $0xe8] sm:$0xff] %v229
    %374 = vst [vmem:[#allocation2 + $0xf0] sm:$0xff] %v340
    %375 = vst [vmem:[#allocation2 + $0xf8] sm:$0xff] %v342
    %v376 = vld [vmem:[%s4] sm:$0xf]
    %v378 = vlaneseq
    %v379 = vshrl.u32 %v378, 7
    %v380 = vsub.s32 0, %v379
    %v381 = vrot.slane %v376, %v380
    %v382 = vlaneseq
    %v383 = vshrl.u32 %v382, 7
    %v384 = vsub.s32 1, %v383
    %v385 = vrot.slane %v376, %v384
    %v386 = vlaneseq
    %v387 = vshrl.u32 %v386, 7
    %v388 = vsub.s32 2, %v387
    %v389 = vrot.slane %v376, %v388
    %v390 = vlaneseq
    %v391 = vshrl.u32 %v390, 7
    %v392 = vsub.s32 3, %v391
    %v393 = vrot.slane %v376, %v392
    %v398 = vld [vmem:[#allocation2] sm:$0xff]
    %v399 = vld [vmem:[#allocation2 + $0x8] sm:$0xff]
    %v400 = vld [vmem:[#allocation2 + $0x10] sm:$0xff]
    %v401 = vld [vmem:[#allocation2 + $0x18] sm:$0xff]
    %v402 = vadd.f32 %v398, 0.0
    %v403 = vadd.f32 %v399, 0.0
    %v404 = vadd.f32 %v400, 0.0
    %v405 = vadd.f32 %v401, 0.0
    %v406 = vtanh.pop %v402
    %v407 = vtanh.pop %v403
    %v408 = vtanh.pop %v404
    %v409 = vtanh.pop %v405
    %v410 = vmul.f32 %v406, 0.5
    %v411 = vmul.f32 %v407, 0.5
    %v412 = vmul.f32 %v408, 0.5
    %v413 = vadd.f32 %v410, 0.5
    %v414 = vadd.f32 %v411, 0.5
    %v415 = vadd.f32 %v412, 0.5
    %v416 = vmul.f32 %v414, 0.0
    %v417 = vmul.f32 %v413, %v409
    %v418 = vadd.f32 %v416, %v417
    %v419 = vtanh.pop %v418
    %v420 = vmul.f32 %v415, %v419
    %v421 = vld [vmem:[#allocation4] sm:$0xff]
    %v422 = vld [vmem:[#allocation4 + $0x8] sm:$0xff]
    %v423 = vld [vmem:[#allocation4 + $0x10] sm:$0xff]
    %v424 = vld [vmem:[#allocation4 + $0x18] sm:$0xff]
    %v425 = vld [vmem:[#allocation4 + $0x20] sm:$0xff]
    %v426 = vld [vmem:[#allocation4 + $0x28] sm:$0xff]
    %v427 = vld [vmem:[#allocation4 + $0x30] sm:$0xff]
    %v428 = vld [vmem:[#allocation4 + $0x38] sm:$0xff]
    %v429 = vld [vmem:[#allocation4 + $0x40] sm:$0xff]
    %v430 = vld [vmem:[#allocation4 + $0x48] sm:$0xff]
    %v431 = vld [vmem:[#allocation4 + $0x50] sm:$0xff]
    %v432 = vld [vmem:[#allocation4 + $0x58] sm:$0xff]
    %v433 = vld [vmem:[#allocation4 + $0x60] sm:$0xff]
    %v434 = vld [vmem:[#allocation4 + $0x68] sm:$0xff]
    %v435 = vld [vmem:[#allocation4 + $0x70] sm:$0xff]
    %v436 = vld [vmem:[#allocation4 + $0x78] sm:$0xff]
    %v437 = vld [vmem:[#allocation4 + $0x80] sm:$0xff]
    %v438 = vld [vmem:[#allocation4 + $0x88] sm:$0xff]
    %v439 = vld [vmem:[#allocation4 + $0x90] sm:$0xff]
    %v440 = vld [vmem:[#allocation4 + $0x98] sm:$0xff]
    %v441 = vld [vmem:[#allocation4 + $0xa0] sm:$0xff]
    %v442 = vld [vmem:[#allocation4 + $0xa8] sm:$0xff]
    %v443 = vld [vmem:[#allocation4 + $0xb0] sm:$0xff]
    %v444 = vld [vmem:[#allocation4 + $0xb8] sm:$0xff]
    %v445 = vld [vmem:[#allocation4 + $0xc0] sm:$0xff]
    %v446 = vld [vmem:[#allocation4 + $0xc8] sm:$0xff]
    %v447 = vld [vmem:[#allocation4 + $0xd0] sm:$0xff]
    %v448 = vld [vmem:[#allocation4 + $0xd8] sm:$0xff]
    %v449 = vld [vmem:[#allocation4 + $0xe0] sm:$0xff]
    %v450 = vld [vmem:[#allocation4 + $0xe8] sm:$0xff]
    %v451 = vld [vmem:[#allocation4 + $0xf0] sm:$0xff]
    %v452 = vld [vmem:[#allocation4 + $0xf8] sm:$0xff]
    %v453 = vld [vmem:[#allocation4 + $0x100] sm:$0xff]
    %v454 = vld [vmem:[#allocation4 + $0x108] sm:$0xff]
    %v455 = vld [vmem:[#allocation4 + $0x110] sm:$0xff]
    %v456 = vld [vmem:[#allocation4 + $0x118] sm:$0xff]
    %v457 = vld [vmem:[#allocation4 + $0x120] sm:$0xff]
    %v458 = vld [vmem:[#allocation4 + $0x128] sm:$0xff]
    %v459 = vld [vmem:[#allocation4 + $0x130] sm:$0xff]
    %v460 = vld [vmem:[#allocation4 + $0x138] sm:$0xff]
    %v461 = vld [vmem:[#allocation4 + $0x140] sm:$0xff]
    %v462 = vld [vmem:[#allocation4 + $0x148] sm:$0xff]
    %v463 = vld [vmem:[#allocation4 + $0x150] sm:$0xff]
    %v464 = vld [vmem:[#allocation4 + $0x158] sm:$0xff]
    %v465 = vld [vmem:[#allocation4 + $0x160] sm:$0xff]
    %v466 = vld [vmem:[#allocation4 + $0x168] sm:$0xff]
    %v467 = vld [vmem:[#allocation4 + $0x170] sm:$0xff]
    %v468 = vld [vmem:[#allocation4 + $0x178] sm:$0xff]
    %v469 = vld [vmem:[#allocation4 + $0x180] sm:$0xff]
    %v470 = vld [vmem:[#allocation4 + $0x188] sm:$0xff]
    %v471 = vld [vmem:[#allocation4 + $0x190] sm:$0xff]
    %v472 = vld [vmem:[#allocation4 + $0x198] sm:$0xff]
    %v473 = vld [vmem:[#allocation4 + $0x1a0] sm:$0xff]
    %v474 = vld [vmem:[#allocation4 + $0x1a8] sm:$0xff]
    %v475 = vld [vmem:[#allocation4 + $0x1b0] sm:$0xff]
    %v476 = vld [vmem:[#allocation4 + $0x1b8] sm:$0xff]
    %v477 = vld [vmem:[#allocation4 + $0x1c0] sm:$0xff]
    %v478 = vld [vmem:[#allocation4 + $0x1c8] sm:$0xff]
    %v479 = vld [vmem:[#allocation4 + $0x1d0] sm:$0xff]
    %v480 = vld [vmem:[#allocation4 + $0x1d8] sm:$0xff]
    %v481 = vld [vmem:[#allocation4 + $0x1e0] sm:$0xff]
    %v482 = vld [vmem:[#allocation4 + $0x1e8] sm:$0xff]
    %v483 = vld [vmem:[#allocation4 + $0x1f0] sm:$0xff]
    %v484 = vld [vmem:[#allocation4 + $0x1f8] sm:$0xff]
    %v485 = vld [vmem:[#allocation4 + $0x200] sm:$0xff]
    %v486 = vld [vmem:[#allocation4 + $0x208] sm:$0xff]
    %v487 = vld [vmem:[#allocation4 + $0x210] sm:$0xff]
    %v488 = vld [vmem:[#allocation4 + $0x218] sm:$0xff]
    %v489 = vld [vmem:[#allocation4 + $0x220] sm:$0xff]
    %v490 = vld [vmem:[#allocation4 + $0x228] sm:$0xff]
    %v491 = vld [vmem:[#allocation4 + $0x230] sm:$0xff]
    %v492 = vld [vmem:[#allocation4 + $0x238] sm:$0xff]
    %v493 = vld [vmem:[#allocation4 + $0x240] sm:$0xff]
    %v494 = vld [vmem:[#allocation4 + $0x248] sm:$0xff]
    %v495 = vld [vmem:[#allocation4 + $0x250] sm:$0xff]
    %v496 = vld [vmem:[#allocation4 + $0x258] sm:$0xff]
    %v497 = vld [vmem:[#allocation4 + $0x260] sm:$0xff]
    %v498 = vld [vmem:[#allocation4 + $0x268] sm:$0xff]
    %v499 = vld [vmem:[#allocation4 + $0x270] sm:$0xff]
    %v500 = vld [vmem:[#allocation4 + $0x278] sm:$0xff]
    %v501 = vld [vmem:[#allocation4 + $0x280] sm:$0xff]
    %v502 = vld [vmem:[#allocation4 + $0x288] sm:$0xff]
    %v503 = vld [vmem:[#allocation4 + $0x290] sm:$0xff]
    %v504 = vld [vmem:[#allocation4 + $0x298] sm:$0xff]
    %v505 = vld [vmem:[#allocation4 + $0x2a0] sm:$0xff]
    %v506 = vld [vmem:[#allocation4 + $0x2a8] sm:$0xff]
    %v507 = vld [vmem:[#allocation4 + $0x2b0] sm:$0xff]
    %v508 = vld [vmem:[#allocation4 + $0x2b8] sm:$0xff]
    %v509 = vld [vmem:[#allocation4 + $0x2c0] sm:$0xff]
    %v510 = vld [vmem:[#allocation4 + $0x2c8] sm:$0xff]
    %v511 = vld [vmem:[#allocation4 + $0x2d0] sm:$0xff]
    %v512 = vld [vmem:[#allocation4 + $0x2d8] sm:$0xff]
    %v513 = vld [vmem:[#allocation4 + $0x2e0] sm:$0xff]
    %v514 = vld [vmem:[#allocation4 + $0x2e8] sm:$0xff]
    %v515 = vld [vmem:[#allocation4 + $0x2f0] sm:$0xff]
    %v516 = vld [vmem:[#allocation4 + $0x2f8] sm:$0xff]
    %v517 = vld [vmem:[#allocation4 + $0x300] sm:$0xff]
    %v518 = vld [vmem:[#allocation4 + $0x308] sm:$0xff]
    %v519 = vld [vmem:[#allocation4 + $0x310] sm:$0xff]
    %v520 = vld [vmem:[#allocation4 + $0x318] sm:$0xff]
    %v521 = vld [vmem:[#allocation4 + $0x320] sm:$0xff]
    %v522 = vld [vmem:[#allocation4 + $0x328] sm:$0xff]
    %v523 = vld [vmem:[#allocation4 + $0x330] sm:$0xff]
    %v524 = vld [vmem:[#allocation4 + $0x338] sm:$0xff]
    %v525 = vld [vmem:[#allocation4 + $0x340] sm:$0xff]
    %v526 = vld [vmem:[#allocation4 + $0x348] sm:$0xff]
    %v527 = vld [vmem:[#allocation4 + $0x350] sm:$0xff]
    %v528 = vld [vmem:[#allocation4 + $0x358] sm:$0xff]
    %v529 = vld [vmem:[#allocation4 + $0x360] sm:$0xff]
    %v530 = vld [vmem:[#allocation4 + $0x368] sm:$0xff]
    %v531 = vld [vmem:[#allocation4 + $0x370] sm:$0xff]
    %v532 = vld [vmem:[#allocation4 + $0x378] sm:$0xff]
    %v533 = vld [vmem:[#allocation4 + $0x380] sm:$0xff]
    %v534 = vld [vmem:[#allocation4 + $0x388] sm:$0xff]
    %v535 = vld [vmem:[#allocation4 + $0x390] sm:$0xff]
    %v536 = vld [vmem:[#allocation4 + $0x398] sm:$0xff]
    %v537 = vld [vmem:[#allocation4 + $0x3a0] sm:$0xff]
    %v538 = vld [vmem:[#allocation4 + $0x3a8] sm:$0xff]
    %v539 = vld [vmem:[#allocation4 + $0x3b0] sm:$0xff]
    %v540 = vld [vmem:[#allocation4 + $0x3b8] sm:$0xff]
    %v541 = vld [vmem:[#allocation4 + $0x3c0] sm:$0xff]
    %v542 = vld [vmem:[#allocation4 + $0x3c8] sm:$0xff]
    %v543 = vld [vmem:[#allocation4 + $0x3d0] sm:$0xff]
    %v544 = vld [vmem:[#allocation4 + $0x3d8] sm:$0xff]
    %v545 = vld [vmem:[#allocation4 + $0x3e0] sm:$0xff]
    %v546 = vld [vmem:[#allocation4 + $0x3e8] sm:$0xff]
    %v547 = vld [vmem:[#allocation4 + $0x3f0] sm:$0xff]
    %v548 = vld [vmem:[#allocation4 + $0x3f8] sm:$0xff]
    %v549 = vld [vmem:[#allocation4 + $0x400] sm:$0xff]
    %v550 = vld [vmem:[#allocation4 + $0x408] sm:$0xff]
    %v551 = vld [vmem:[#allocation4 + $0x410] sm:$0xff]
    %v552 = vld [vmem:[#allocation4 + $0x418] sm:$0xff]
    %v553 = vld [vmem:[#allocation4 + $0x420] sm:$0xff]
    %v554 = vld [vmem:[#allocation4 + $0x428] sm:$0xff]
    %v555 = vld [vmem:[#allocation4 + $0x430] sm:$0xff]
    %v556 = vld [vmem:[#allocation4 + $0x438] sm:$0xff]
    %v557 = vld [vmem:[#allocation4 + $0x440] sm:$0xff]
    %v558 = vld [vmem:[#allocation4 + $0x448] sm:$0xff]
    %v559 = vld [vmem:[#allocation4 + $0x450] sm:$0xff]
    %v560 = vld [vmem:[#allocation4 + $0x458] sm:$0xff]
    %v561 = vld [vmem:[#allocation4 + $0x460] sm:$0xff]
    %v562 = vld [vmem:[#allocation4 + $0x468] sm:$0xff]
    %v563 = vld [vmem:[#allocation4 + $0x470] sm:$0xff]
    %v564 = vld [vmem:[#allocation4 + $0x478] sm:$0xff]
    %v565 = vld [vmem:[#allocation4 + $0x480] sm:$0xff]
    %v566 = vld [vmem:[#allocation4 + $0x488] sm:$0xff]
    %v567 = vld [vmem:[#allocation4 + $0x490] sm:$0xff]
    %v568 = vld [vmem:[#allocation4 + $0x498] sm:$0xff]
    %v569 = vld [vmem:[#allocation4 + $0x4a0] sm:$0xff]
    %v570 = vld [vmem:[#allocation4 + $0x4a8] sm:$0xff]
    %v571 = vld [vmem:[#allocation4 + $0x4b0] sm:$0xff]
    %v572 = vld [vmem:[#allocation4 + $0x4b8] sm:$0xff]
    %v573 = vld [vmem:[#allocation4 + $0x4c0] sm:$0xff]
    %v574 = vld [vmem:[#allocation4 + $0x4c8] sm:$0xff]
    %v575 = vld [vmem:[#allocation4 + $0x4d0] sm:$0xff]
    %v576 = vld [vmem:[#allocation4 + $0x4d8] sm:$0xff]
    %v577 = vld [vmem:[#allocation4 + $0x4e0] sm:$0xff]
    %v578 = vld [vmem:[#allocation4 + $0x4e8] sm:$0xff]
    %v579 = vld [vmem:[#allocation4 + $0x4f0] sm:$0xff]
    %v580 = vld [vmem:[#allocation4 + $0x4f8] sm:$0xff]
    %v581 = vld [vmem:[#allocation4 + $0x500] sm:$0xff]
    %v582 = vld [vmem:[#allocation4 + $0x508] sm:$0xff]
    %v583 = vld [vmem:[#allocation4 + $0x510] sm:$0xff]
    %v584 = vld [vmem:[#allocation4 + $0x518] sm:$0xff]
    %v585 = vld [vmem:[#allocation4 + $0x520] sm:$0xff]
    %v586 = vld [vmem:[#allocation4 + $0x528] sm:$0xff]
    %v587 = vld [vmem:[#allocation4 + $0x530] sm:$0xff]
    %v588 = vld [vmem:[#allocation4 + $0x538] sm:$0xff]
    %v589 = vld [vmem:[#allocation4 + $0x540] sm:$0xff]
    %v590 = vld [vmem:[#allocation4 + $0x548] sm:$0xff]
    %v591 = vld [vmem:[#allocation4 + $0x550] sm:$0xff]
    %v592 = vld [vmem:[#allocation4 + $0x558] sm:$0xff]
    %v593 = vld [vmem:[#allocation4 + $0x560] sm:$0xff]
    %v594 = vld [vmem:[#allocation4 + $0x568] sm:$0xff]
    %v595 = vld [vmem:[#allocation4 + $0x570] sm:$0xff]
    %v596 = vld [vmem:[#allocation4 + $0x578] sm:$0xff]
    %v597 = vld [vmem:[#allocation4 + $0x580] sm:$0xff]
    %v598 = vld [vmem:[#allocation4 + $0x588] sm:$0xff]
    %v599 = vld [vmem:[#allocation4 + $0x590] sm:$0xff]
    %v600 = vld [vmem:[#allocation4 + $0x598] sm:$0xff]
    %v601 = vld [vmem:[#allocation4 + $0x5a0] sm:$0xff]
    %v602 = vld [vmem:[#allocation4 + $0x5a8] sm:$0xff]
    %v603 = vld [vmem:[#allocation4 + $0x5b0] sm:$0xff]
    %v604 = vld [vmem:[#allocation4 + $0x5b8] sm:$0xff]
    %v605 = vld [vmem:[#allocation4 + $0x5c0] sm:$0xff]
    %v606 = vld [vmem:[#allocation4 + $0x5c8] sm:$0xff]
    %v607 = vld [vmem:[#allocation4 + $0x5d0] sm:$0xff]
    %v608 = vld [vmem:[#allocation4 + $0x5d8] sm:$0xff]
    %v609 = vld [vmem:[#allocation4 + $0x5e0] sm:$0xff]
    %v610 = vld [vmem:[#allocation4 + $0x5e8] sm:$0xff]
    %v611 = vld [vmem:[#allocation4 + $0x5f0] sm:$0xff]
    %v612 = vld [vmem:[#allocation4 + $0x5f8] sm:$0xff]
    %v613 = vld [vmem:[#allocation4 + $0x600] sm:$0xff]
    %v614 = vld [vmem:[#allocation4 + $0x608] sm:$0xff]
    %v615 = vld [vmem:[#allocation4 + $0x610] sm:$0xff]
    %v616 = vld [vmem:[#allocation4 + $0x618] sm:$0xff]
    %v617 = vld [vmem:[#allocation4 + $0x620] sm:$0xff]
    %v618 = vld [vmem:[#allocation4 + $0x628] sm:$0xff]
    %v619 = vld [vmem:[#allocation4 + $0x630] sm:$0xff]
    %v620 = vld [vmem:[#allocation4 + $0x638] sm:$0xff]
    %v621 = vld [vmem:[#allocation4 + $0x640] sm:$0xff]
    %v622 = vld [vmem:[#allocation4 + $0x648] sm:$0xff]
    %v623 = vld [vmem:[#allocation4 + $0x650] sm:$0xff]
    %v624 = vld [vmem:[#allocation4 + $0x658] sm:$0xff]
    %v625 = vld [vmem:[#allocation4 + $0x660] sm:$0xff]
    %v626 = vld [vmem:[#allocation4 + $0x668] sm:$0xff]
    %v627 = vld [vmem:[#allocation4 + $0x670] sm:$0xff]
    %v628 = vld [vmem:[#allocation4 + $0x678] sm:$0xff]
    %v629 = vld [vmem:[#allocation4 + $0x680] sm:$0xff]
    %v630 = vld [vmem:[#allocation4 + $0x688] sm:$0xff]
    %v631 = vld [vmem:[#allocation4 + $0x690] sm:$0xff]
    %v632 = vld [vmem:[#allocation4 + $0x698] sm:$0xff]
    %v633 = vld [vmem:[#allocation4 + $0x6a0] sm:$0xff]
    %v634 = vld [vmem:[#allocation4 + $0x6a8] sm:$0xff]
    %v635 = vld [vmem:[#allocation4 + $0x6b0] sm:$0xff]
    %v636 = vld [vmem:[#allocation4 + $0x6b8] sm:$0xff]
    %v637 = vld [vmem:[#allocation4 + $0x6c0] sm:$0xff]
    %v638 = vld [vmem:[#allocation4 + $0x6c8] sm:$0xff]
    %v639 = vld [vmem:[#allocation4 + $0x6d0] sm:$0xff]
    %v640 = vld [vmem:[#allocation4 + $0x6d8] sm:$0xff]
    %v641 = vld [vmem:[#allocation4 + $0x6e0] sm:$0xff]
    %v642 = vld [vmem:[#allocation4 + $0x6e8] sm:$0xff]
    %v643 = vld [vmem:[#allocation4 + $0x6f0] sm:$0xff]
    %v644 = vld [vmem:[#allocation4 + $0x6f8] sm:$0xff]
    %v645 = vld [vmem:[#allocation4 + $0x700] sm:$0xff]
    %v646 = vld [vmem:[#allocation4 + $0x708] sm:$0xff]
    %v647 = vld [vmem:[#allocation4 + $0x710] sm:$0xff]
    %v648 = vld [vmem:[#allocation4 + $0x718] sm:$0xff]
    %v649 = vld [vmem:[#allocation4 + $0x720] sm:$0xff]
    %v650 = vld [vmem:[#allocation4 + $0x728] sm:$0xff]
    %v651 = vld [vmem:[#allocation4 + $0x730] sm:$0xff]
    %v652 = vld [vmem:[#allocation4 + $0x738] sm:$0xff]
    %v653 = vld [vmem:[#allocation4 + $0x740] sm:$0xff]
    %v654 = vld [vmem:[#allocation4 + $0x748] sm:$0xff]
    %v655 = vld [vmem:[#allocation4 + $0x750] sm:$0xff]
    %v656 = vld [vmem:[#allocation4 + $0x758] sm:$0xff]
    %v657 = vld [vmem:[#allocation4 + $0x760] sm:$0xff]
    %v658 = vld [vmem:[#allocation4 + $0x768] sm:$0xff]
    %v659 = vld [vmem:[#allocation4 + $0x770] sm:$0xff]
    %v660 = vld [vmem:[#allocation4 + $0x778] sm:$0xff]
    %v661 = vld [vmem:[#allocation4 + $0x780] sm:$0xff]
    %v662 = vld [vmem:[#allocation4 + $0x788] sm:$0xff]
    %v663 = vld [vmem:[#allocation4 + $0x790] sm:$0xff]
    %v664 = vld [vmem:[#allocation4 + $0x798] sm:$0xff]
    %v665 = vld [vmem:[#allocation4 + $0x7a0] sm:$0xff]
    %v666 = vld [vmem:[#allocation4 + $0x7a8] sm:$0xff]
    %v667 = vld [vmem:[#allocation4 + $0x7b0] sm:$0xff]
    %v668 = vld [vmem:[#allocation4 + $0x7b8] sm:$0xff]
    %v669 = vld [vmem:[#allocation4 + $0x7c0] sm:$0xff]
    %v670 = vld [vmem:[#allocation4 + $0x7c8] sm:$0xff]
    %v671 = vld [vmem:[#allocation4 + $0x7d0] sm:$0xff]
    %v672 = vld [vmem:[#allocation4 + $0x7d8] sm:$0xff]
    %v673 = vld [vmem:[#allocation4 + $0x7e0] sm:$0xff]
    %v674 = vld [vmem:[#allocation4 + $0x7e8] sm:$0xff]
    %v675 = vld [vmem:[#allocation4 + $0x7f0] sm:$0xff]
    %v676 = vld [vmem:[#allocation4 + $0x7f8] sm:$0xff]
    %677 = vmatprep.subr.mxu0 %v542
    %678 = vmatpush1.msra.mxu0 %v541
    %679 = vmatprep.subr.mxu0 %v534
    %680 = vmatpush1.msra.mxu0 %v533
    %681 = vmatprep.subr.mxu0 %v526
    %682 = vmatpush1.msra.mxu0 %v525
    %683 = vmatprep.subr.mxu0 %v518
    %684 = vmatpush1.msra.mxu0 %v517
    %685 = vmatprep.subr.mxu0 %v510
    %686 = vmatpush1.msra.mxu0 %v509
    %687 = vmatprep.subr.mxu0 %v502
    %688 = vmatpush1.msra.mxu0 %v501
    %689 = vmatprep.subr.mxu0 %v494
    %690 = vmatpush1.msra.mxu0 %v493
    %691 = vmatprep.subr.mxu0 %v486
    %692 = vmatpush1.msra.mxu0 %v485
    %693 = vmatprep.subr.mxu0 %v478
    %694 = vmatpush1.msra.mxu0 %v477
    %695 = vmatprep.subr.mxu0 %v470
    %696 = vmatpush1.msra.mxu0 %v469
    %697 = vmatprep.subr.mxu0 %v462
    %698 = vmatpush1.msra.mxu0 %v461
    %699 = vmatprep.subr.mxu0 %v454
    %700 = vmatpush1.msra.mxu0 %v453
    %701 = vmatprep.subr.mxu0 %v446
    %702 = vmatpush1.msra.mxu0 %v445
    %703 = vmatprep.subr.mxu0 %v438
    %704 = vmatpush1.msra.mxu0 %v437
    %705 = vmatprep.subr.mxu0 %v430
    %706 = vmatpush1.msra.mxu0 %v429
    %707 = vmatprep.subr.mxu0 %v422
    %708 = vmatpush1.msra.mxu0 %v421
    %709 = vmatprep.subr.mxu0 %v670
    %710 = vmatpush2.msra.mxu0 %v669
    %711 = vmatprep.subr.mxu0 %v662
    %712 = vmatpush2.msra.mxu0 %v661
    %713 = vmatprep.subr.mxu0 %v654
    %714 = vmatpush2.msra.mxu0 %v653
    %715 = vmatprep.subr.mxu0 %v646
    %716 = vmatpush2.msra.mxu0 %v645
    %717 = vmatprep.subr.mxu0 %v638
    %718 = vmatpush2.msra.mxu0 %v637
    %719 = vmatprep.subr.mxu0 %v630
    %720 = vmatpush2.msra.mxu0 %v629
    %721 = vmatprep.subr.mxu0 %v622
    %722 = vmatpush2.msra.mxu0 %v621
    %723 = vmatprep.subr.mxu0 %v614
    %724 = vmatpush2.msra.mxu0 %v613
    %725 = vmatprep.subr.mxu0 %v606
    %726 = vmatpush2.msra.mxu0 %v605
    %727 = vmatprep.subr.mxu0 %v598
    %728 = vmatpush2.msra.mxu0 %v597
    %729 = vmatprep.subr.mxu0 %v590
    %730 = vmatpush2.msra.mxu0 %v589
    %731 = vmatprep.subr.mxu0 %v582
    %732 = vmatpush2.msra.mxu0 %v581
    %733 = vmatprep.subr.mxu0 %v574
    %734 = vmatpush2.msra.mxu0 %v573
    %735 = vmatprep.subr.mxu0 %v566
    %736 = vmatpush2.msra.mxu0 %v565
    %737 = vmatprep.subr.mxu0 %v558
    %738 = vmatpush2.msra.mxu0 %v557
    %739 = vmatprep.subr.mxu0 %v550
    %740 = vmatpush2.msra.mxu0 %v549
    %741 = vmatprep.mubr.f32.mxu0 0.0
    %742 = vmatmul.mubr.f32.gmra.mxu0 %v420
    %v743 = vpop.f32.mrf.mxu0
    %v744 = vadd.f32 0.0, %v743
    %v745 = vpop.f32.mrf.mxu0
    %v746 = vadd.f32 0.0, %v745
    %747 = vdwg.mxu0
    %748 = vmatprep.subr.mxu0 %v544
    %749 = vmatpush1.msra.mxu0 %v543
    %750 = vmatprep.subr.mxu0 %v536
    %751 = vmatpush1.msra.mxu0 %v535
    %752 = vmatprep.subr.mxu0 %v528
    %753 = vmatpush1.msra.mxu0 %v527
    %754 = vmatprep.subr.mxu0 %v520
    %755 = vmatpush1.msra.mxu0 %v519
    %756 = vmatprep.subr.mxu0 %v512
    %757 = vmatpush1.msra.mxu0 %v511
    %758 = vmatprep.subr.mxu0 %v504
    %759 = vmatpush1.msra.mxu0 %v503
    %760 = vmatprep.subr.mxu0 %v496
    %761 = vmatpush1.msra.mxu0 %v495
    %762 = vmatprep.subr.mxu0 %v488
    %763 = vmatpush1.msra.mxu0 %v487
    %764 = vmatprep.subr.mxu0 %v480
    %765 = vmatpush1.msra.mxu0 %v479
    %766 = vmatprep.subr.mxu0 %v472
    %767 = vmatpush1.msra.mxu0 %v471
    %768 = vmatprep.subr.mxu0 %v464
    %769 = vmatpush1.msra.mxu0 %v463
    %770 = vmatprep.subr.mxu0 %v456
    %771 = vmatpush1.msra.mxu0 %v455
    %772 = vmatprep.subr.mxu0 %v448
    %773 = vmatpush1.msra.mxu0 %v447
    %774 = vmatprep.subr.mxu0 %v440
    %775 = vmatpush1.msra.mxu0 %v439
    %776 = vmatprep.subr.mxu0 %v432
    %777 = vmatpush1.msra.mxu0 %v431
    %778 = vmatprep.subr.mxu0 %v424
    %779 = vmatpush1.msra.mxu0 %v423
    %780 = vmatprep.subr.mxu0 %v672
    %781 = vmatpush2.msra.mxu0 %v671
    %782 = vmatprep.subr.mxu0 %v664
    %783 = vmatpush2.msra.mxu0 %v663
    %784 = vmatprep.subr.mxu0 %v656
    %785 = vmatpush2.msra.mxu0 %v655
    %786 = vmatprep.subr.mxu0 %v648
    %787 = vmatpush2.msra.mxu0 %v647
    %788 = vmatprep.subr.mxu0 %v640
    %789 = vmatpush2.msra.mxu0 %v639
    %790 = vmatprep.subr.mxu0 %v632
    %791 = vmatpush2.msra.mxu0 %v631
    %792 = vmatprep.subr.mxu0 %v624
    %793 = vmatpush2.msra.mxu0 %v623
    %794 = vmatprep.subr.mxu0 %v616
    %795 = vmatpush2.msra.mxu0 %v615
    %796 = vmatprep.subr.mxu0 %v608
    %797 = vmatpush2.msra.mxu0 %v607
    %798 = vmatprep.subr.mxu0 %v600
    %799 = vmatpush2.msra.mxu0 %v599
    %800 = vmatprep.subr.mxu0 %v592
    %801 = vmatpush2.msra.mxu0 %v591
    %802 = vmatprep.subr.mxu0 %v584
    %803 = vmatpush2.msra.mxu0 %v583
    %804 = vmatprep.subr.mxu0 %v576
    %805 = vmatpush2.msra.mxu0 %v575
    %806 = vmatprep.subr.mxu0 %v568
    %807 = vmatpush2.msra.mxu0 %v567
    %808 = vmatprep.subr.mxu0 %v560
    %809 = vmatpush2.msra.mxu0 %v559
    %810 = vmatprep.subr.mxu0 %v552
    %811 = vmatpush2.msra.mxu0 %v551
    %812 = vmatprep.mubr.f32.mxu0 0.0
    %813 = vmatmul.mubr.f32.gmra.mxu0 %v420
    %v814 = vpop.f32.mrf.mxu0
    %v815 = vadd.f32 0.0, %v814
    %v816 = vpop.f32.mrf.mxu0
    %v817 = vadd.f32 0.0, %v816
    %818 = vdwg.mxu0
    %819 = vmatprep.subr.mxu0 %v546
    %820 = vmatpush1.msra.mxu0 %v545
    %821 = vmatprep.subr.mxu0 %v538
    %822 = vmatpush1.msra.mxu0 %v537
    %823 = vmatprep.subr.mxu0 %v530
    %824 = vmatpush1.msra.mxu0 %v529
    %825 = vmatprep.subr.mxu0 %v522
    %826 = vmatpush1.msra.mxu0 %v521
    %827 = vmatprep.subr.mxu0 %v514
    %828 = vmatpush1.msra.mxu0 %v513
    %829 = vmatprep.subr.mxu0 %v506
    %830 = vmatpush1.msra.mxu0 %v505
    %831 = vmatprep.subr.mxu0 %v498
    %832 = vmatpush1.msra.mxu0 %v497
    %833 = vmatprep.subr.mxu0 %v490
    %834 = vmatpush1.msra.mxu0 %v489
    %835 = vmatprep.subr.mxu0 %v482
    %836 = vmatpush1.msra.mxu0 %v481
    %837 = vmatprep.subr.mxu0 %v474
    %838 = vmatpush1.msra.mxu0 %v473
    %839 = vmatprep.subr.mxu0 %v466
    %840 = vmatpush1.msra.mxu0 %v465
    %841 = vmatprep.subr.mxu0 %v458
    %842 = vmatpush1.msra.mxu0 %v457
    %843 = vmatprep.subr.mxu0 %v450
    %844 = vmatpush1.msra.mxu0 %v449
    %845 = vmatprep.subr.mxu0 %v442
    %846 = vmatpush1.msra.mxu0 %v441
    %847 = vmatprep.subr.mxu0 %v434
    %848 = vmatpush1.msra.mxu0 %v433
    %849 = vmatprep.subr.mxu0 %v426
    %850 = vmatpush1.msra.mxu0 %v425
    %851 = vmatprep.subr.mxu0 %v674
    %852 = vmatpush2.msra.mxu0 %v673
    %853 = vmatprep.subr.mxu0 %v666
    %854 = vmatpush2.msra.mxu0 %v665
    %855 = vmatprep.subr.mxu0 %v658
    %856 = vmatpush2.msra.mxu0 %v657
    %857 = vmatprep.subr.mxu0 %v650
    %858 = vmatpush2.msra.mxu0 %v649
    %859 = vmatprep.subr.mxu0 %v642
    %860 = vmatpush2.msra.mxu0 %v641
    %861 = vmatprep.subr.mxu0 %v634
    %862 = vmatpush2.msra.mxu0 %v633
    %863 = vmatprep.subr.mxu0 %v626
    %864 = vmatpush2.msra.mxu0 %v625
    %865 = vmatprep.subr.mxu0 %v618
    %866 = vmatpush2.msra.mxu0 %v617
    %867 = vmatprep.subr.mxu0 %v610
    %868 = vmatpush2.msra.mxu0 %v609
    %869 = vmatprep.subr.mxu0 %v602
    %870 = vmatpush2.msra.mxu0 %v601
    %871 = vmatprep.subr.mxu0 %v594
    %872 = vmatpush2.msra.mxu0 %v593
    %873 = vmatprep.subr.mxu0 %v586
    %874 = vmatpush2.msra.mxu0 %v585
    %875 = vmatprep.subr.mxu0 %v578
    %876 = vmatpush2.msra.mxu0 %v577
    %877 = vmatprep.subr.mxu0 %v570
    %878 = vmatpush2.msra.mxu0 %v569
    %879 = vmatprep.subr.mxu0 %v562
    %880 = vmatpush2.msra.mxu0 %v561
    %881 = vmatprep.subr.mxu0 %v554
    %882 = vmatpush2.msra.mxu0 %v553
    %883 = vmatprep.mubr.f32.mxu0 0.0
    %884 = vmatmul.mubr.f32.gmra.mxu0 %v420
    %v885 = vpop.f32.mrf.mxu0
    %v886 = vadd.f32 0.0, %v885
    %v887 = vpop.f32.mrf.mxu0
    %v888 = vadd.f32 0.0, %v887
    %889 = vdwg.mxu0
    %890 = vmatprep.subr.mxu0 %v548
    %891 = vmatpush1.msra.mxu0 %v547
    %892 = vmatprep.subr.mxu0 %v540
    %893 = vmatpush1.msra.mxu0 %v539
    %894 = vmatprep.subr.mxu0 %v532
    %895 = vmatpush1.msra.mxu0 %v531
    %896 = vmatprep.subr.mxu0 %v524
    %897 = vmatpush1.msra.mxu0 %v523
    %898 = vmatprep.subr.mxu0 %v516
    %899 = vmatpush1.msra.mxu0 %v515
    %900 = vmatprep.subr.mxu0 %v508
    %901 = vmatpush1.msra.mxu0 %v507
    %902 = vmatprep.subr.mxu0 %v500
    %903 = vmatpush1.msra.mxu0 %v499
    %904 = vmatprep.subr.mxu0 %v492
    %905 = vmatpush1.msra.mxu0 %v491
    %906 = vmatprep.subr.mxu0 %v484
    %907 = vmatpush1.msra.mxu0 %v483
    %908 = vmatprep.subr.mxu0 %v476
    %909 = vmatpush1.msra.mxu0 %v475
    %910 = vmatprep.subr.mxu0 %v468
    %911 = vmatpush1.msra.mxu0 %v467
    %912 = vmatprep.subr.mxu0 %v460
    %913 = vmatpush1.msra.mxu0 %v459
    %914 = vmatprep.subr.mxu0 %v452
    %915 = vmatpush1.msra.mxu0 %v451
    %916 = vmatprep.subr.mxu0 %v444
    %917 = vmatpush1.msra.mxu0 %v443
    %918 = vmatprep.subr.mxu0 %v436
    %919 = vmatpush1.msra.mxu0 %v435
    %920 = vmatprep.subr.mxu0 %v428
    %921 = vmatpush1.msra.mxu0 %v427
    %922 = vmatprep.subr.mxu0 %v676
    %923 = vmatpush2.msra.mxu0 %v675
    %924 = vmatprep.subr.mxu0 %v668
    %925 = vmatpush2.msra.mxu0 %v667
    %926 = vmatprep.subr.mxu0 %v660
    %927 = vmatpush2.msra.mxu0 %v659
    %928 = vmatprep.subr.mxu0 %v652
    %929 = vmatpush2.msra.mxu0 %v651
    %930 = vmatprep.subr.mxu0 %v644
    %931 = vmatpush2.msra.mxu0 %v643
    %932 = vmatprep.subr.mxu0 %v636
    %933 = vmatpush2.msra.mxu0 %v635
    %934 = vmatprep.subr.mxu0 %v628
    %935 = vmatpush2.msra.mxu0 %v627
    %936 = vmatprep.subr.mxu0 %v620
    %937 = vmatpush2.msra.mxu0 %v619
    %938 = vmatprep.subr.mxu0 %v612
    %939 = vmatpush2.msra.mxu0 %v611
    %940 = vmatprep.subr.mxu0 %v604
    %941 = vmatpush2.msra.mxu0 %v603
    %942 = vmatprep.subr.mxu0 %v596
    %943 = vmatpush2.msra.mxu0 %v595
    %944 = vmatprep.subr.mxu0 %v588
    %945 = vmatpush2.msra.mxu0 %v587
    %946 = vmatprep.subr.mxu0 %v580
    %947 = vmatpush2.msra.mxu0 %v579
    %948 = vmatprep.subr.mxu0 %v572
    %949 = vmatpush2.msra.mxu0 %v571
    %950 = vmatprep.subr.mxu0 %v564
    %951 = vmatpush2.msra.mxu0 %v563
    %952 = vmatprep.subr.mxu0 %v556
    %953 = vmatpush2.msra.mxu0 %v555
    %954 = vmatprep.mubr.f32.mxu0 0.0
    %955 = vmatmul.mubr.f32.gmra.mxu0 %v420
    %v956 = vpop.f32.mrf.mxu0
    %v957 = vadd.f32 0.0, %v956
    %v958 = vpop.f32.mrf.mxu0
    %v959 = vadd.f32 0.0, %v958
    %960 = vdwg.mxu0
    %v961 = vadd.f32 %v744, %v381
    %v962 = vadd.f32 %v746, %v385
    %v963 = vadd.f32 %v815, %v389
    %v964 = vadd.f32 %v817, %v393
    %v965 = vtanh.pop %v961
    %v966 = vtanh.pop %v962
    %v967 = vtanh.pop %v963
    %v968 = vtanh.pop %v964
    %v969 = vmul.f32 %v965, 0.5
    %v970 = vmul.f32 %v966, 0.5
    %v971 = vmul.f32 %v967, 0.5
    %v972 = vadd.f32 %v969, 0.5
    %v973 = vadd.f32 %v970, 0.5
    %v974 = vadd.f32 %v971, 0.5
    %v975 = vmul.f32 %v973, 0.0
    %v976 = vmul.f32 %v972, %v968
    %v977 = vadd.f32 %v975, %v976
    %v978 = vtanh.pop %v977
    %v979 = vmul.f32 %v974, %v978
    %v980 = vld [vmem:[#allocation2 + $0x20] sm:$0xff]
    %v981 = vld [vmem:[#allocation2 + $0x28] sm:$0xff]
    %v982 = vld [vmem:[#allocation2 + $0x30] sm:$0xff]
    %v983 = vld [vmem:[#allocation2 + $0x38] sm:$0xff]
    %v984 = vadd.f32 %v980, %v886
    %v985 = vadd.f32 %v981, %v888
    %v986 = vadd.f32 %v982, %v957
    %v987 = vadd.f32 %v983, %v959
    %v988 = vtanh.pop %v984
    %v989 = vtanh.pop %v985
    %v990 = vtanh.pop %v986
    %v991 = vtanh.pop %v987
    %v992 = vmul.f32 %v988, 0.5
    %v993 = vmul.f32 %v989, 0.5
    %v994 = vmul.f32 %v990, 0.5
    %v995 = vadd.f32 %v992, 0.5
    %v996 = vadd.f32 %v993, 0.5
    %v997 = vadd.f32 %v994, 0.5
    %v998 = vmul.f32 %v996, %v418
    %v999 = vmul.f32 %v995, %v991
    %v1000 = vadd.f32 %v998, %v999
    %v1001 = vtanh.pop %v1000
    %v1002 = vmul.f32 %v997, %v1001
    %1003 = vmatprep.subr.mxu0 %v542
    %1004 = vmatpush1.msra.mxu0 %v541
    %1005 = vmatprep.subr.mxu0 %v534
    %1006 = vmatpush1.msra.mxu0 %v533
    %1007 = vmatprep.subr.mxu0 %v526
    %1008 = vmatpush1.msra.mxu0 %v525
    %1009 = vmatprep.subr.mxu0 %v518
    %1010 = vmatpush1.msra.mxu0 %v517
    %1011 = vmatprep.subr.mxu0 %v510
    %1012 = vmatpush1.msra.mxu0 %v509
    %1013 = vmatprep.subr.mxu0 %v502
    %1014 = vmatpush1.msra.mxu0 %v501
    %1015 = vmatprep.subr.mxu0 %v494
    %1016 = vmatpush1.msra.mxu0 %v493
    %1017 = vmatprep.subr.mxu0 %v486
    %1018 = vmatpush1.msra.mxu0 %v485
    %1019 = vmatprep.subr.mxu0 %v478
    %1020 = vmatpush1.msra.mxu0 %v477
    %1021 = vmatprep.subr.mxu0 %v470
    %1022 = vmatpush1.msra.mxu0 %v469
    %1023 = vmatprep.subr.mxu0 %v462
    %1024 = vmatpush1.msra.mxu0 %v461
    %1025 = vmatprep.subr.mxu0 %v454
    %1026 = vmatpush1.msra.mxu0 %v453
    %1027 = vmatprep.subr.mxu0 %v446
    %1028 = vmatpush1.msra.mxu0 %v445
    %1029 = vmatprep.subr.mxu0 %v438
    %1030 = vmatpush1.msra.mxu0 %v437
    %1031 = vmatprep.subr.mxu0 %v430
    %1032 = vmatpush1.msra.mxu0 %v429
    %1033 = vmatprep.subr.mxu0 %v422
    %1034 = vmatpush1.msra.mxu0 %v421
    %1035 = vmatprep.subr.mxu0 %v670
    %1036 = vmatpush2.msra.mxu0 %v669
    %1037 = vmatprep.subr.mxu0 %v662
    %1038 = vmatpush2.msra.mxu0 %v661
    %1039 = vmatprep.subr.mxu0 %v654
    %1040 = vmatpush2.msra.mxu0 %v653
    %1041 = vmatprep.subr.mxu0 %v646
    %1042 = vmatpush2.msra.mxu0 %v645
    %1043 = vmatprep.subr.mxu0 %v638
    %1044 = vmatpush2.msra.mxu0 %v637
    %1045 = vmatprep.subr.mxu0 %v630
    %1046 = vmatpush2.msra.mxu0 %v629
    %1047 = vmatprep.subr.mxu0 %v622
    %1048 = vmatpush2.msra.mxu0 %v621
    %1049 = vmatprep.subr.mxu0 %v614
    %1050 = vmatpush2.msra.mxu0 %v613
    %1051 = vmatprep.subr.mxu0 %v606
    %1052 = vmatpush2.msra.mxu0 %v605
    %1053 = vmatprep.subr.mxu0 %v598
    %1054 = vmatpush2.msra.mxu0 %v597
    %1055 = vmatprep.subr.mxu0 %v590
    %1056 = vmatpush2.msra.mxu0 %v589
    %1057 = vmatprep.subr.mxu0 %v582
    %1058 = vmatpush2.msra.mxu0 %v581
    %1059 = vmatprep.subr.mxu0 %v574
    %1060 = vmatpush2.msra.mxu0 %v573
    %1061 = vmatprep.subr.mxu0 %v566
    %1062 = vmatpush2.msra.mxu0 %v565
    %1063 = vmatprep.subr.mxu0 %v558
    %1064 = vmatpush2.msra.mxu0 %v557
    %1065 = vmatprep.subr.mxu0 %v550
    %1066 = vmatpush2.msra.mxu0 %v549
    %1067 = vmatprep.mubr.f32.mxu0 %v979
    %1068 = vmatmul.mubr.f32.gmra.mxu0 %v1002
    %v1069 = vpop.f32.mrf.mxu0
    %v1070 = vadd.f32 0.0, %v1069
    %v1071 = vpop.f32.mrf.mxu0
    %v1072 = vadd.f32 0.0, %v1071
    %1073 = vdwg.mxu0
    %1074 = vmatprep.subr.mxu0 %v544
    %1075 = vmatpush1.msra.mxu0 %v543
    %1076 = vmatprep.subr.mxu0 %v536
    %1077 = vmatpush1.msra.mxu0 %v535
    %1078 = vmatprep.subr.mxu0 %v528
    %1079 = vmatpush1.msra.mxu0 %v527
    %1080 = vmatprep.subr.mxu0 %v520
    %1081 = vmatpush1.msra.mxu0 %v519
    %1082 = vmatprep.subr.mxu0 %v512
    %1083 = vmatpush1.msra.mxu0 %v511
    %1084 = vmatprep.subr.mxu0 %v504
    %1085 = vmatpush1.msra.mxu0 %v503
    %1086 = vmatprep.subr.mxu0 %v496
    %1087 = vmatpush1.msra.mxu0 %v495
    %1088 = vmatprep.subr.mxu0 %v488
    %1089 = vmatpush1.msra.mxu0 %v487
    %1090 = vmatprep.subr.mxu0 %v480
    %1091 = vmatpush1.msra.mxu0 %v479
    %1092 = vmatprep.subr.mxu0 %v472
    %1093 = vmatpush1.msra.mxu0 %v471
    %1094 = vmatprep.subr.mxu0 %v464
    %1095 = vmatpush1.msra.mxu0 %v463
    %1096 = vmatprep.subr.mxu0 %v456
    %1097 = vmatpush1.msra.mxu0 %v455
    %1098 = vmatprep.subr.mxu0 %v448
    %1099 = vmatpush1.msra.mxu0 %v447
    %1100 = vmatprep.subr.mxu0 %v440
    %1101 = vmatpush1.msra.mxu0 %v439
    %1102 = vmatprep.subr.mxu0 %v432
    %1103 = vmatpush1.msra.mxu0 %v431
    %1104 = vmatprep.subr.mxu0 %v424
    %1105 = vmatpush1.msra.mxu0 %v423
    %1106 = vmatprep.subr.mxu0 %v672
    %1107 = vmatpush2.msra.mxu0 %v671
    %1108 = vmatprep.subr.mxu0 %v664
    %1109 = vmatpush2.msra.mxu0 %v663
    %1110 = vmatprep.subr.mxu0 %v656
    %1111 = vmatpush2.msra.mxu0 %v655
    %1112 = vmatprep.subr.mxu0 %v648
    %1113 = vmatpush2.msra.mxu0 %v647
    %1114 = vmatprep.subr.mxu0 %v640
    %1115 = vmatpush2.msra.mxu0 %v639
    %1116 = vmatprep.subr.mxu0 %v632
    %1117 = vmatpush2.msra.mxu0 %v631
    %1118 = vmatprep.subr.mxu0 %v624
    %1119 = vmatpush2.msra.mxu0 %v623
    %1120 = vmatprep.subr.mxu0 %v616
    %1121 = vmatpush2.msra.mxu0 %v615
    %1122 = vmatprep.subr.mxu0 %v608
    %1123 = vmatpush2.msra.mxu0 %v607
    %1124 = vmatprep.subr.mxu0 %v600
    %1125 = vmatpush2.msra.mxu0 %v599
    %1126 = vmatprep.subr.mxu0 %v592
    %1127 = vmatpush2.msra.mxu0 %v591
    %1128 = vmatprep.subr.mxu0 %v584
    %1129 = vmatpush2.msra.mxu0 %v583
    %1130 = vmatprep.subr.mxu0 %v576
    %1131 = vmatpush2.msra.mxu0 %v575
    %1132 = vmatprep.subr.mxu0 %v568
    %1133 = vmatpush2.msra.mxu0 %v567
    %1134 = vmatprep.subr.mxu0 %v560
    %1135 = vmatpush2.msra.mxu0 %v559
    %1136 = vmatprep.subr.mxu0 %v552
    %1137 = vmatpush2.msra.mxu0 %v551
    %1138 = vmatprep.mubr.f32.mxu0 %v979
    %1139 = vmatmul.mubr.f32.gmra.mxu0 %v1002
    %v1140 = vpop.f32.mrf.mxu0
    %v1141 = vadd.f32 0.0, %v1140
    %v1142 = vpop.f32.mrf.mxu0
    %v1143 = vadd.f32 0.0, %v1142
    %1144 = vdwg.mxu0
    %1145 = vmatprep.subr.mxu0 %v546
    %1146 = vmatpush1.msra.mxu0 %v545
    %1147 = vmatprep.subr.mxu0 %v538
    %1148 = vmatpush1.msra.mxu0 %v537
    %1149 = vmatprep.subr.mxu0 %v530
    %1150 = vmatpush1.msra.mxu0 %v529
    %1151 = vmatprep.subr.mxu0 %v522
    %1152 = vmatpush1.msra.mxu0 %v521
    %1153 = vmatprep.subr.mxu0 %v514
    %1154 = vmatpush1.msra.mxu0 %v513
    %1155 = vmatprep.subr.mxu0 %v506
    %1156 = vmatpush1.msra.mxu0 %v505
    %1157 = vmatprep.subr.mxu0 %v498
    %1158 = vmatpush1.msra.mxu0 %v497
    %1159 = vmatprep.subr.mxu0 %v490
    %1160 = vmatpush1.msra.mxu0 %v489
    %1161 = vmatprep.subr.mxu0 %v482
    %1162 = vmatpush1.msra.mxu0 %v481
    %1163 = vmatprep.subr.mxu0 %v474
    %1164 = vmatpush1.msra.mxu0 %v473
    %1165 = vmatprep.subr.mxu0 %v466
    %1166 = vmatpush1.msra.mxu0 %v465
    %1167 = vmatprep.subr.mxu0 %v458
    %1168 = vmatpush1.msra.mxu0 %v457
    %1169 = vmatprep.subr.mxu0 %v450
    %1170 = vmatpush1.msra.mxu0 %v449
    %1171 = vmatprep.subr.mxu0 %v442
    %1172 = vmatpush1.msra.mxu0 %v441
    %1173 = vmatprep.subr.mxu0 %v434
    %1174 = vmatpush1.msra.mxu0 %v433
    %1175 = vmatprep.subr.mxu0 %v426
    %1176 = vmatpush1.msra.mxu0 %v425
    %1177 = vmatprep.subr.mxu0 %v674
    %1178 = vmatpush2.msra.mxu0 %v673
    %1179 = vmatprep.subr.mxu0 %v666
    %1180 = vmatpush2.msra.mxu0 %v665
    %1181 = vmatprep.subr.mxu0 %v658
    %1182 = vmatpush2.msra.mxu0 %v657
    %1183 = vmatprep.subr.mxu0 %v650
    %1184 = vmatpush2.msra.mxu0 %v649
    %1185 = vmatprep.subr.mxu0 %v642
    %1186 = vmatpush2.msra.mxu0 %v641
    %1187 = vmatprep.subr.mxu0 %v634
    %1188 = vmatpush2.msra.mxu0 %v633
    %1189 = vmatprep.subr.mxu0 %v626
    %1190 = vmatpush2.msra.mxu0 %v625
    %1191 = vmatprep.subr.mxu0 %v618
    %1192 = vmatpush2.msra.mxu0 %v617
    %1193 = vmatprep.subr.mxu0 %v610
    %1194 = vmatpush2.msra.mxu0 %v609
    %1195 = vmatprep.subr.mxu0 %v602
    %1196 = vmatpush2.msra.mxu0 %v601
    %1197 = vmatprep.subr.mxu0 %v594
    %1198 = vmatpush2.msra.mxu0 %v593
    %1199 = vmatprep.subr.mxu0 %v586
    %1200 = vmatpush2.msra.mxu0 %v585
    %1201 = vmatprep.subr.mxu0 %v578
    %1202 = vmatpush2.msra.mxu0 %v577
    %1203 = vmatprep.subr.mxu0 %v570
    %1204 = vmatpush2.msra.mxu0 %v569
    %1205 = vmatprep.subr.mxu0 %v562
    %1206 = vmatpush2.msra.mxu0 %v561
    %1207 = vmatprep.subr.mxu0 %v554
    %1208 = vmatpush2.msra.mxu0 %v553
    %1209 = vmatprep.mubr.f32.mxu0 %v979
    %1210 = vmatmul.mubr.f32.gmra.mxu0 %v1002
    %v1211 = vpop.f32.mrf.mxu0
    %v1212 = vadd.f32 0.0, %v1211
    %v1213 = vpop.f32.mrf.mxu0
    %v1214 = vadd.f32 0.0, %v1213
    %1215 = vdwg.mxu0
    %1216 = vmatprep.subr.mxu0 %v548
    %1217 = vmatpush1.msra.mxu0 %v547
    %1218 = vmatprep.subr.mxu0 %v540
    %1219 = vmatpush1.msra.mxu0 %v539
    %1220 = vmatprep.subr.mxu0 %v532
    %1221 = vmatpush1.msra.mxu0 %v531
    %1222 = vmatprep.subr.mxu0 %v524
    %1223 = vmatpush1.msra.mxu0 %v523
    %1224 = vmatprep.subr.mxu0 %v516
    %1225 = vmatpush1.msra.mxu0 %v515
    %1226 = vmatprep.subr.mxu0 %v508
    %1227 = vmatpush1.msra.mxu0 %v507
    %1228 = vmatprep.subr.mxu0 %v500
    %1229 = vmatpush1.msra.mxu0 %v499
    %1230 = vmatprep.subr.mxu0 %v492
    %1231 = vmatpush1.msra.mxu0 %v491
    %1232 = vmatprep.subr.mxu0 %v484
    %1233 = vmatpush1.msra.mxu0 %v483
    %1234 = vmatprep.subr.mxu0 %v476
    %1235 = vmatpush1.msra.mxu0 %v475
    %1236 = vmatprep.subr.mxu0 %v468
    %1237 = vmatpush1.msra.mxu0 %v467
    %1238 = vmatprep.subr.mxu0 %v460
    %1239 = vmatpush1.msra.mxu0 %v459
    %1240 = vmatprep.subr.mxu0 %v452
    %1241 = vmatpush1.msra.mxu0 %v451
    %1242 = vmatprep.subr.mxu0 %v444
    %1243 = vmatpush1.msra.mxu0 %v443
    %1244 = vmatprep.subr.mxu0 %v436
    %1245 = vmatpush1.msra.mxu0 %v435
    %1246 = vmatprep.subr.mxu0 %v428
    %1247 = vmatpush1.msra.mxu0 %v427
    %1248 = vmatprep.subr.mxu0 %v676
    %1249 = vmatpush2.msra.mxu0 %v675
    %1250 = vmatprep.subr.mxu0 %v668
    %1251 = vmatpush2.msra.mxu0 %v667
    %1252 = vmatprep.subr.mxu0 %v660
    %1253 = vmatpush2.msra.mxu0 %v659
    %1254 = vmatprep.subr.mxu0 %v652
    %1255 = vmatpush2.msra.mxu0 %v651
    %1256 = vmatprep.subr.mxu0 %v644
    %1257 = vmatpush2.msra.mxu0 %v643
    %1258 = vmatprep.subr.mxu0 %v636
    %1259 = vmatpush2.msra.mxu0 %v635
    %1260 = vmatprep.subr.mxu0 %v628
    %1261 = vmatpush2.msra.mxu0 %v627
    %1262 = vmatprep.subr.mxu0 %v620
    %1263 = vmatpush2.msra.mxu0 %v619
    %1264 = vmatprep.subr.mxu0 %v612
    %1265 = vmatpush2.msra.mxu0 %v611
    %1266 = vmatprep.subr.mxu0 %v604
    %1267 = vmatpush2.msra.mxu0 %v603
    %1268 = vmatprep.subr.mxu0 %v596
    %1269 = vmatpush2.msra.mxu0 %v595
    %1270 = vmatprep.subr.mxu0 %v588
    %1271 = vmatpush2.msra.mxu0 %v587
    %1272 = vmatprep.subr.mxu0 %v580
    %1273 = vmatpush2.msra.mxu0 %v579
    %1274 = vmatprep.subr.mxu0 %v572
    %1275 = vmatpush2.msra.mxu0 %v571
    %1276 = vmatprep.subr.mxu0 %v564
    %1277 = vmatpush2.msra.mxu0 %v563
    %1278 = vmatprep.subr.mxu0 %v556
    %1279 = vmatpush2.msra.mxu0 %v555
    %1280 = vmatprep.mubr.f32.mxu0 %v979
    %1281 = vmatmul.mubr.f32.gmra.mxu0 %v1002
    %v1282 = vpop.f32.mrf.mxu0
    %v1283 = vadd.f32 0.0, %v1282
    %v1284 = vpop.f32.mrf.mxu0
    %v1285 = vadd.f32 0.0, %v1284
    %1286 = vdwg.mxu0
    %v1287 = vadd.f32 %v1070, %v381
    %v1288 = vadd.f32 %v1072, %v385
    %v1289 = vadd.f32 %v1141, %v389
    %v1290 = vadd.f32 %v1143, %v393
    %v1291 = vtanh.pop %v1287
    %v1292 = vtanh.pop %v1288
    %v1293 = vtanh.pop %v1289
    %v1294 = vtanh.pop %v1290
    %v1295 = vmul.f32 %v1291, 0.5
    %v1296 = vmul.f32 %v1292, 0.5
    %v1297 = vmul.f32 %v1293, 0.5
    %v1298 = vadd.f32 %v1295, 0.5
    %v1299 = vadd.f32 %v1296, 0.5
    %v1300 = vadd.f32 %v1297, 0.5
    %v1301 = vmul.f32 %v1299, %v977
    %v1302 = vmul.f32 %v1298, %v1294
    %v1303 = vadd.f32 %v1301, %v1302
    %v1304 = vtanh.pop %v1303
    %v1305 = vmul.f32 %v1300, %v1304
    %v1306 = vld [vmem:[#allocation2 + $0x40] sm:$0xff]
    %v1307 = vld [vmem:[#allocation2 + $0x48] sm:$0xff]
    %v1308 = vld [vmem:[#allocation2 + $0x50] sm:$0xff]
    %v1309 = vld [vmem:[#allocation2 + $0x58] sm:$0xff]
    %v1310 = vadd.f32 %v1306, %v1212
    %v1311 = vadd.f32 %v1307, %v1214
    %v1312 = vadd.f32 %v1308, %v1283
    %v1313 = vadd.f32 %v1309, %v1285
    %v1314 = vtanh.pop %v1310
    %v1315 = vtanh.pop %v1311
    %v1316 = vtanh.pop %v1312
    %v1317 = vtanh.pop %v1313
    %v1318 = vmul.f32 %v1314, 0.5
    %v1319 = vmul.f32 %v1315, 0.5
    %v1320 = vmul.f32 %v1316, 0.5
    %v1321 = vadd.f32 %v1318, 0.5
    %v1322 = vadd.f32 %v1319, 0.5
    %v1323 = vadd.f32 %v1320, 0.5
    %v1324 = vmul.f32 %v1322, %v1000
    %v1325 = vmul.f32 %v1321, %v1317
    %v1326 = vadd.f32 %v1324, %v1325
    %v1327 = vtanh.pop %v1326
    %v1328 = vmul.f32 %v1323, %v1327
    %1329 = vmatprep.subr.mxu0 %v542
    %1330 = vmatpush1.msra.mxu0 %v541
    %1331 = vmatprep.subr.mxu0 %v534
    %1332 = vmatpush1.msra.mxu0 %v533
    %1333 = vmatprep.subr.mxu0 %v526
    %1334 = vmatpush1.msra.mxu0 %v525
    %1335 = vmatprep.subr.mxu0 %v518
    %1336 = vmatpush1.msra.mxu0 %v517
    %1337 = vmatprep.subr.mxu0 %v510
    %1338 = vmatpush1.msra.mxu0 %v509
    %1339 = vmatprep.subr.mxu0 %v502
    %1340 = vmatpush1.msra.mxu0 %v501
    %1341 = vmatprep.subr.mxu0 %v494
    %1342 = vmatpush1.msra.mxu0 %v493
    %1343 = vmatprep.subr.mxu0 %v486
    %1344 = vmatpush1.msra.mxu0 %v485
    %1345 = vmatprep.subr.mxu0 %v478
    %1346 = vmatpush1.msra.mxu0 %v477
    %1347 = vmatprep.subr.mxu0 %v470
    %1348 = vmatpush1.msra.mxu0 %v469
    %1349 = vmatprep.subr.mxu0 %v462
    %1350 = vmatpush1.msra.mxu0 %v461
    %1351 = vmatprep.subr.mxu0 %v454
    %1352 = vmatpush1.msra.mxu0 %v453
    %1353 = vmatprep.subr.mxu0 %v446
    %1354 = vmatpush1.msra.mxu0 %v445
    %1355 = vmatprep.subr.mxu0 %v438
    %1356 = vmatpush1.msra.mxu0 %v437
    %1357 = vmatprep.subr.mxu0 %v430
    %1358 = vmatpush1.msra.mxu0 %v429
    %1359 = vmatprep.subr.mxu0 %v422
    %1360 = vmatpush1.msra.mxu0 %v421
    %1361 = vmatprep.subr.mxu0 %v670
    %1362 = vmatpush2.msra.mxu0 %v669
    %1363 = vmatprep.subr.mxu0 %v662
    %1364 = vmatpush2.msra.mxu0 %v661
    %1365 = vmatprep.subr.mxu0 %v654
    %1366 = vmatpush2.msra.mxu0 %v653
    %1367 = vmatprep.subr.mxu0 %v646
    %1368 = vmatpush2.msra.mxu0 %v645
    %1369 = vmatprep.subr.mxu0 %v638
    %1370 = vmatpush2.msra.mxu0 %v637
    %1371 = vmatprep.subr.mxu0 %v630
    %1372 = vmatpush2.msra.mxu0 %v629
    %1373 = vmatprep.subr.mxu0 %v622
    %1374 = vmatpush2.msra.mxu0 %v621
    %1375 = vmatprep.subr.mxu0 %v614
    %1376 = vmatpush2.msra.mxu0 %v613
    %1377 = vmatprep.subr.mxu0 %v606
    %1378 = vmatpush2.msra.mxu0 %v605
    %1379 = vmatprep.subr.mxu0 %v598
    %1380 = vmatpush2.msra.mxu0 %v597
    %1381 = vmatprep.subr.mxu0 %v590
    %1382 = vmatpush2.msra.mxu0 %v589
    %1383 = vmatprep.subr.mxu0 %v582
    %1384 = vmatpush2.msra.mxu0 %v581
    %1385 = vmatprep.subr.mxu0 %v574
    %1386 = vmatpush2.msra.mxu0 %v573
    %1387 = vmatprep.subr.mxu0 %v566
    %1388 = vmatpush2.msra.mxu0 %v565
    %1389 = vmatprep.subr.mxu0 %v558
    %1390 = vmatpush2.msra.mxu0 %v557
    %1391 = vmatprep.subr.mxu0 %v550
    %1392 = vmatpush2.msra.mxu0 %v549
    %1393 = vmatprep.mubr.f32.mxu0 %v1305
    %1394 = vmatmul.mubr.f32.gmra.mxu0 %v1328
    %v1395 = vpop.f32.mrf.mxu0
    %v1396 = vadd.f32 0.0, %v1395
    %v1397 = vpop.f32.mrf.mxu0
    %v1398 = vadd.f32 0.0, %v1397
    %1399 = vdwg.mxu0
    %1400 = vmatprep.subr.mxu0 %v544
    %1401 = vmatpush1.msra.mxu0 %v543
    %1402 = vmatprep.subr.mxu0 %v536
    %1403 = vmatpush1.msra.mxu0 %v535
    %1404 = vmatprep.subr.mxu0 %v528
    %1405 = vmatpush1.msra.mxu0 %v527
    %1406 = vmatprep.subr.mxu0 %v520
    %1407 = vmatpush1.msra.mxu0 %v519
    %1408 = vmatprep.subr.mxu0 %v512
    %1409 = vmatpush1.msra.mxu0 %v511
    %1410 = vmatprep.subr.mxu0 %v504
    %1411 = vmatpush1.msra.mxu0 %v503
    %1412 = vmatprep.subr.mxu0 %v496
    %1413 = vmatpush1.msra.mxu0 %v495
    %1414 = vmatprep.subr.mxu0 %v488
    %1415 = vmatpush1.msra.mxu0 %v487
    %1416 = vmatprep.subr.mxu0 %v480
    %1417 = vmatpush1.msra.mxu0 %v479
    %1418 = vmatprep.subr.mxu0 %v472
    %1419 = vmatpush1.msra.mxu0 %v471
    %1420 = vmatprep.subr.mxu0 %v464
    %1421 = vmatpush1.msra.mxu0 %v463
    %1422 = vmatprep.subr.mxu0 %v456
    %1423 = vmatpush1.msra.mxu0 %v455
    %1424 = vmatprep.subr.mxu0 %v448
    %1425 = vmatpush1.msra.mxu0 %v447
    %1426 = vmatprep.subr.mxu0 %v440
    %1427 = vmatpush1.msra.mxu0 %v439
    %1428 = vmatprep.subr.mxu0 %v432
    %1429 = vmatpush1.msra.mxu0 %v431
    %1430 = vmatprep.subr.mxu0 %v424
    %1431 = vmatpush1.msra.mxu0 %v423
    %1432 = vmatprep.subr.mxu0 %v672
    %1433 = vmatpush2.msra.mxu0 %v671
    %1434 = vmatprep.subr.mxu0 %v664
    %1435 = vmatpush2.msra.mxu0 %v663
    %1436 = vmatprep.subr.mxu0 %v656
    %1437 = vmatpush2.msra.mxu0 %v655
    %1438 = vmatprep.subr.mxu0 %v648
    %1439 = vmatpush2.msra.mxu0 %v647
    %1440 = vmatprep.subr.mxu0 %v640
    %1441 = vmatpush2.msra.mxu0 %v639
    %1442 = vmatprep.subr.mxu0 %v632
    %1443 = vmatpush2.msra.mxu0 %v631
    %1444 = vmatprep.subr.mxu0 %v624
    %1445 = vmatpush2.msra.mxu0 %v623
    %1446 = vmatprep.subr.mxu0 %v616
    %1447 = vmatpush2.msra.mxu0 %v615
    %1448 = vmatprep.subr.mxu0 %v608
    %1449 = vmatpush2.msra.mxu0 %v607
    %1450 = vmatprep.subr.mxu0 %v600
    %1451 = vmatpush2.msra.mxu0 %v599
    %1452 = vmatprep.subr.mxu0 %v592
    %1453 = vmatpush2.msra.mxu0 %v591
    %1454 = vmatprep.subr.mxu0 %v584
    %1455 = vmatpush2.msra.mxu0 %v583
    %1456 = vmatprep.subr.mxu0 %v576
    %1457 = vmatpush2.msra.mxu0 %v575
    %1458 = vmatprep.subr.mxu0 %v568
    %1459 = vmatpush2.msra.mxu0 %v567
    %1460 = vmatprep.subr.mxu0 %v560
    %1461 = vmatpush2.msra.mxu0 %v559
    %1462 = vmatprep.subr.mxu0 %v552
    %1463 = vmatpush2.msra.mxu0 %v551
    %1464 = vmatprep.mubr.f32.mxu0 %v1305
    %1465 = vmatmul.mubr.f32.gmra.mxu0 %v1328
    %v1466 = vpop.f32.mrf.mxu0
    %v1467 = vadd.f32 0.0, %v1466
    %v1468 = vpop.f32.mrf.mxu0
    %v1469 = vadd.f32 0.0, %v1468
    %1470 = vdwg.mxu0
    %1471 = vmatprep.subr.mxu0 %v546
    %1472 = vmatpush1.msra.mxu0 %v545
    %1473 = vmatprep.subr.mxu0 %v538
    %1474 = vmatpush1.msra.mxu0 %v537
    %1475 = vmatprep.subr.mxu0 %v530
    %1476 = vmatpush1.msra.mxu0 %v529
    %1477 = vmatprep.subr.mxu0 %v522
    %1478 = vmatpush1.msra.mxu0 %v521
    %1479 = vmatprep.subr.mxu0 %v514
    %1480 = vmatpush1.msra.mxu0 %v513
    %1481 = vmatprep.subr.mxu0 %v506
    %1482 = vmatpush1.msra.mxu0 %v505
    %1483 = vmatprep.subr.mxu0 %v498
    %1484 = vmatpush1.msra.mxu0 %v497
    %1485 = vmatprep.subr.mxu0 %v490
    %1486 = vmatpush1.msra.mxu0 %v489
    %1487 = vmatprep.subr.mxu0 %v482
    %1488 = vmatpush1.msra.mxu0 %v481
    %1489 = vmatprep.subr.mxu0 %v474
    %1490 = vmatpush1.msra.mxu0 %v473
    %1491 = vmatprep.subr.mxu0 %v466
    %1492 = vmatpush1.msra.mxu0 %v465
    %1493 = vmatprep.subr.mxu0 %v458
    %1494 = vmatpush1.msra.mxu0 %v457
    %1495 = vmatprep.subr.mxu0 %v450
    %1496 = vmatpush1.msra.mxu0 %v449
    %1497 = vmatprep.subr.mxu0 %v442
    %1498 = vmatpush1.msra.mxu0 %v441
    %1499 = vmatprep.subr.mxu0 %v434
    %1500 = vmatpush1.msra.mxu0 %v433
    %1501 = vmatprep.subr.mxu0 %v426
    %1502 = vmatpush1.msra.mxu0 %v425
    %1503 = vmatprep.subr.mxu0 %v674
    %1504 = vmatpush2.msra.mxu0 %v673
    %1505 = vmatprep.subr.mxu0 %v666
    %1506 = vmatpush2.msra.mxu0 %v665
    %1507 = vmatprep.subr.mxu0 %v658
    %1508 = vmatpush2.msra.mxu0 %v657
    %1509 = vmatprep.subr.mxu0 %v650
    %1510 = vmatpush2.msra.mxu0 %v649
    %1511 = vmatprep.subr.mxu0 %v642
    %1512 = vmatpush2.msra.mxu0 %v641
    %1513 = vmatprep.subr.mxu0 %v634
    %1514 = vmatpush2.msra.mxu0 %v633
    %1515 = vmatprep.subr.mxu0 %v626
    %1516 = vmatpush2.msra.mxu0 %v625
    %1517 = vmatprep.subr.mxu0 %v618
    %1518 = vmatpush2.msra.mxu0 %v617
    %1519 = vmatprep.subr.mxu0 %v610
    %1520 = vmatpush2.msra.mxu0 %v609
    %1521 = vmatprep.subr.mxu0 %v602
    %1522 = vmatpush2.msra.mxu0 %v601
    %1523 = vmatprep.subr.mxu0 %v594
    %1524 = vmatpush2.msra.mxu0 %v593
    %1525 = vmatprep.subr.mxu0 %v586
    %1526 = vmatpush2.msra.mxu0 %v585
    %1527 = vmatprep.subr.mxu0 %v578
    %1528 = vmatpush2.msra.mxu0 %v577
    %1529 = vmatprep.subr.mxu0 %v570
    %1530 = vmatpush2.msra.mxu0 %v569
    %1531 = vmatprep.subr.mxu0 %v562
    %1532 = vmatpush2.msra.mxu0 %v561
    %1533 = vmatprep.subr.mxu0 %v554
    %1534 = vmatpush2.msra.mxu0 %v553
    %1535 = vmatprep.mubr.f32.mxu0 %v1305
    %1536 = vmatmul.mubr.f32.gmra.mxu0 %v1328
    %v1537 = vpop.f32.mrf.mxu0
    %v1538 = vadd.f32 0.0, %v1537
    %v1539 = vpop.f32.mrf.mxu0
    %v1540 = vadd.f32 0.0, %v1539
    %1541 = vdwg.mxu0
    %1542 = vmatprep.subr.mxu0 %v548
    %1543 = vmatpush1.msra.mxu0 %v547
    %1544 = vmatprep.subr.mxu0 %v540
    %1545 = vmatpush1.msra.mxu0 %v539
    %1546 = vmatprep.subr.mxu0 %v532
    %1547 = vmatpush1.msra.mxu0 %v531
    %1548 = vmatprep.subr.mxu0 %v524
    %1549 = vmatpush1.msra.mxu0 %v523
    %1550 = vmatprep.subr.mxu0 %v516
    %1551 = vmatpush1.msra.mxu0 %v515
    %1552 = vmatprep.subr.mxu0 %v508
    %1553 = vmatpush1.msra.mxu0 %v507
    %1554 = vmatprep.subr.mxu0 %v500
    %1555 = vmatpush1.msra.mxu0 %v499
    %1556 = vmatprep.subr.mxu0 %v492
    %1557 = vmatpush1.msra.mxu0 %v491
    %1558 = vmatprep.subr.mxu0 %v484
    %1559 = vmatpush1.msra.mxu0 %v483
    %1560 = vmatprep.subr.mxu0 %v476
    %1561 = vmatpush1.msra.mxu0 %v475
    %1562 = vmatprep.subr.mxu0 %v468
    %1563 = vmatpush1.msra.mxu0 %v467
    %1564 = vmatprep.subr.mxu0 %v460
    %1565 = vmatpush1.msra.mxu0 %v459
    %1566 = vmatprep.subr.mxu0 %v452
    %1567 = vmatpush1.msra.mxu0 %v451
    %1568 = vmatprep.subr.mxu0 %v444
    %1569 = vmatpush1.msra.mxu0 %v443
    %1570 = vmatprep.subr.mxu0 %v436
    %1571 = vmatpush1.msra.mxu0 %v435
    %1572 = vmatprep.subr.mxu0 %v428
    %1573 = vmatpush1.msra.mxu0 %v427
    %1574 = vmatprep.subr.mxu0 %v676
    %1575 = vmatpush2.msra.mxu0 %v675
    %1576 = vmatprep.subr.mxu0 %v668
    %1577 = vmatpush2.msra.mxu0 %v667
    %1578 = vmatprep.subr.mxu0 %v660
    %1579 = vmatpush2.msra.mxu0 %v659
    %1580 = vmatprep.subr.mxu0 %v652
    %1581 = vmatpush2.msra.mxu0 %v651
    %1582 = vmatprep.subr.mxu0 %v644
    %1583 = vmatpush2.msra.mxu0 %v643
    %1584 = vmatprep.subr.mxu0 %v636
    %1585 = vmatpush2.msra.mxu0 %v635
    %1586 = vmatprep.subr.mxu0 %v628
    %1587 = vmatpush2.msra.mxu0 %v627
    %1588 = vmatprep.subr.mxu0 %v620
    %1589 = vmatpush2.msra.mxu0 %v619
    %1590 = vmatprep.subr.mxu0 %v612
    %1591 = vmatpush2.msra.mxu0 %v611
    %1592 = vmatprep.subr.mxu0 %v604
    %1593 = vmatpush2.msra.mxu0 %v603
    %1594 = vmatprep.subr.mxu0 %v596
    %1595 = vmatpush2.msra.mxu0 %v595
    %1596 = vmatprep.subr.mxu0 %v588
    %1597 = vmatpush2.msra.mxu0 %v587
    %1598 = vmatprep.subr.mxu0 %v580
    %1599 = vmatpush2.msra.mxu0 %v579
    %1600 = vmatprep.subr.mxu0 %v572
    %1601 = vmatpush2.msra.mxu0 %v571
    %1602 = vmatprep.subr.mxu0 %v564
    %1603 = vmatpush2.msra.mxu0 %v563
    %1604 = vmatprep.subr.mxu0 %v556
    %1605 = vmatpush2.msra.mxu0 %v555
    %1606 = vmatprep.mubr.f32.mxu0 %v1305
    %1607 = vmatmul.mubr.f32.gmra.mxu0 %v1328
    %v1608 = vpop.f32.mrf.mxu0
    %v1609 = vadd.f32 0.0, %v1608
    %v1610 = vpop.f32.mrf.mxu0
    %v1611 = vadd.f32 0.0, %v1610
    %1612 = vdwg.mxu0
    %v1613 = vadd.f32 %v1396, %v381
    %v1614 = vadd.f32 %v1398, %v385
    %v1615 = vadd.f32 %v1467, %v389
    %v1616 = vadd.f32 %v1469, %v393
    %v1617 = vtanh.pop %v1613
    %v1618 = vtanh.pop %v1614
    %v1619 = vtanh.pop %v1615
    %v1620 = vtanh.pop %v1616
    %v1621 = vmul.f32 %v1617, 0.5
    %v1622 = vmul.f32 %v1618, 0.5
    %v1623 = vmul.f32 %v1619, 0.5
    %v1624 = vadd.f32 %v1621, 0.5
    %v1625 = vadd.f32 %v1622, 0.5
    %v1626 = vadd.f32 %v1623, 0.5
    %v1627 = vmul.f32 %v1625, %v1303
    %v1628 = vmul.f32 %v1624, %v1620
    %v1629 = vadd.f32 %v1627, %v1628
    %v1630 = vtanh.pop %v1629
    %v1631 = vmul.f32 %v1626, %v1630
    %v1632 = vld [vmem:[#allocation2 + $0x60] sm:$0xff]
    %v1633 = vld [vmem:[#allocation2 + $0x68] sm:$0xff]
    %v1634 = vld [vmem:[#allocation2 + $0x70] sm:$0xff]
    %v1635 = vld [vmem:[#allocation2 + $0x78] sm:$0xff]
    %v1636 = vadd.f32 %v1632, %v1538
    %v1637 = vadd.f32 %v1633, %v1540
    %v1638 = vadd.f32 %v1634, %v1609
    %v1639 = vadd.f32 %v1635, %v1611
    %v1640 = vtanh.pop %v1636
    %v1641 = vtanh.pop %v1637
    %v1642 = vtanh.pop %v1638
    %v1643 = vtanh.pop %v1639
    %v1644 = vmul.f32 %v1640, 0.5
    %v1645 = vmul.f32 %v1641, 0.5
    %v1646 = vmul.f32 %v1642, 0.5
    %v1647 = vadd.f32 %v1644, 0.5
    %v1648 = vadd.f32 %v1645, 0.5
    %v1649 = vadd.f32 %v1646, 0.5
    %v1650 = vmul.f32 %v1648, %v1326
    %v1651 = vmul.f32 %v1647, %v1643
    %v1652 = vadd.f32 %v1650, %v1651
    %v1653 = vtanh.pop %v1652
    %v1654 = vmul.f32 %v1649, %v1653
    %1655 = vmatprep.subr.mxu0 %v542
    %1656 = vmatpush1.msra.mxu0 %v541
    %1657 = vmatprep.subr.mxu0 %v534
    %1658 = vmatpush1.msra.mxu0 %v533
    %1659 = vmatprep.subr.mxu0 %v526
    %1660 = vmatpush1.msra.mxu0 %v525
    %1661 = vmatprep.subr.mxu0 %v518
    %1662 = vmatpush1.msra.mxu0 %v517
    %1663 = vmatprep.subr.mxu0 %v510
    %1664 = vmatpush1.msra.mxu0 %v509
    %1665 = vmatprep.subr.mxu0 %v502
    %1666 = vmatpush1.msra.mxu0 %v501
    %1667 = vmatprep.subr.mxu0 %v494
    %1668 = vmatpush1.msra.mxu0 %v493
    %1669 = vmatprep.subr.mxu0 %v486
    %1670 = vmatpush1.msra.mxu0 %v485
    %1671 = vmatprep.subr.mxu0 %v478
    %1672 = vmatpush1.msra.mxu0 %v477
    %1673 = vmatprep.subr.mxu0 %v470
    %1674 = vmatpush1.msra.mxu0 %v469
    %1675 = vmatprep.subr.mxu0 %v462
    %1676 = vmatpush1.msra.mxu0 %v461
    %1677 = vmatprep.subr.mxu0 %v454
    %1678 = vmatpush1.msra.mxu0 %v453
    %1679 = vmatprep.subr.mxu0 %v446
    %1680 = vmatpush1.msra.mxu0 %v445
    %1681 = vmatprep.subr.mxu0 %v438
    %1682 = vmatpush1.msra.mxu0 %v437
    %1683 = vmatprep.subr.mxu0 %v430
    %1684 = vmatpush1.msra.mxu0 %v429
    %1685 = vmatprep.subr.mxu0 %v422
    %1686 = vmatpush1.msra.mxu0 %v421
    %1687 = vmatprep.subr.mxu0 %v670
    %1688 = vmatpush2.msra.mxu0 %v669
    %1689 = vmatprep.subr.mxu0 %v662
    %1690 = vmatpush2.msra.mxu0 %v661
    %1691 = vmatprep.subr.mxu0 %v654
    %1692 = vmatpush2.msra.mxu0 %v653
    %1693 = vmatprep.subr.mxu0 %v646
    %1694 = vmatpush2.msra.mxu0 %v645
    %1695 = vmatprep.subr.mxu0 %v638
    %1696 = vmatpush2.msra.mxu0 %v637
    %1697 = vmatprep.subr.mxu0 %v630
    %1698 = vmatpush2.msra.mxu0 %v629
    %1699 = vmatprep.subr.mxu0 %v622
    %1700 = vmatpush2.msra.mxu0 %v621
    %1701 = vmatprep.subr.mxu0 %v614
    %1702 = vmatpush2.msra.mxu0 %v613
    %1703 = vmatprep.subr.mxu0 %v606
    %1704 = vmatpush2.msra.mxu0 %v605
    %1705 = vmatprep.subr.mxu0 %v598
    %1706 = vmatpush2.msra.mxu0 %v597
    %1707 = vmatprep.subr.mxu0 %v590
    %1708 = vmatpush2.msra.mxu0 %v589
    %1709 = vmatprep.subr.mxu0 %v582
    %1710 = vmatpush2.msra.mxu0 %v581
    %1711 = vmatprep.subr.mxu0 %v574
    %1712 = vmatpush2.msra.mxu0 %v573
    %1713 = vmatprep.subr.mxu0 %v566
    %1714 = vmatpush2.msra.mxu0 %v565
    %1715 = vmatprep.subr.mxu0 %v558
    %1716 = vmatpush2.msra.mxu0 %v557
    %1717 = vmatprep.subr.mxu0 %v550
    %1718 = vmatpush2.msra.mxu0 %v549
    %1719 = vmatprep.mubr.f32.mxu0 %v1631
    %1720 = vmatmul.mubr.f32.gmra.mxu0 %v1654
    %v1721 = vpop.f32.mrf.mxu0
    %v1722 = vadd.f32 0.0, %v1721
    %v1723 = vpop.f32.mrf.mxu0
    %v1724 = vadd.f32 0.0, %v1723
    %1725 = vdwg.mxu0
    %1726 = vmatprep.subr.mxu0 %v544
    %1727 = vmatpush1.msra.mxu0 %v543
    %1728 = vmatprep.subr.mxu0 %v536
    %1729 = vmatpush1.msra.mxu0 %v535
    %1730 = vmatprep.subr.mxu0 %v528
    %1731 = vmatpush1.msra.mxu0 %v527
    %1732 = vmatprep.subr.mxu0 %v520
    %1733 = vmatpush1.msra.mxu0 %v519
    %1734 = vmatprep.subr.mxu0 %v512
    %1735 = vmatpush1.msra.mxu0 %v511
    %1736 = vmatprep.subr.mxu0 %v504
    %1737 = vmatpush1.msra.mxu0 %v503
    %1738 = vmatprep.subr.mxu0 %v496
    %1739 = vmatpush1.msra.mxu0 %v495
    %1740 = vmatprep.subr.mxu0 %v488
    %1741 = vmatpush1.msra.mxu0 %v487
    %1742 = vmatprep.subr.mxu0 %v480
    %1743 = vmatpush1.msra.mxu0 %v479
    %1744 = vmatprep.subr.mxu0 %v472
    %1745 = vmatpush1.msra.mxu0 %v471
    %1746 = vmatprep.subr.mxu0 %v464
    %1747 = vmatpush1.msra.mxu0 %v463
    %1748 = vmatprep.subr.mxu0 %v456
    %1749 = vmatpush1.msra.mxu0 %v455
    %1750 = vmatprep.subr.mxu0 %v448
    %1751 = vmatpush1.msra.mxu0 %v447
    %1752 = vmatprep.subr.mxu0 %v440
    %1753 = vmatpush1.msra.mxu0 %v439
    %1754 = vmatprep.subr.mxu0 %v432
    %1755 = vmatpush1.msra.mxu0 %v431
    %1756 = vmatprep.subr.mxu0 %v424
    %1757 = vmatpush1.msra.mxu0 %v423
    %1758 = vmatprep.subr.mxu0 %v672
    %1759 = vmatpush2.msra.mxu0 %v671
    %1760 = vmatprep.subr.mxu0 %v664
    %1761 = vmatpush2.msra.mxu0 %v663
    %1762 = vmatprep.subr.mxu0 %v656
    %1763 = vmatpush2.msra.mxu0 %v655
    %1764 = vmatprep.subr.mxu0 %v648
    %1765 = vmatpush2.msra.mxu0 %v647
    %1766 = vmatprep.subr.mxu0 %v640
    %1767 = vmatpush2.msra.mxu0 %v639
    %1768 = vmatprep.subr.mxu0 %v632
    %1769 = vmatpush2.msra.mxu0 %v631
    %1770 = vmatprep.subr.mxu0 %v624
    %1771 = vmatpush2.msra.mxu0 %v623
    %1772 = vmatprep.subr.mxu0 %v616
    %1773 = vmatpush2.msra.mxu0 %v615
    %1774 = vmatprep.subr.mxu0 %v608
    %1775 = vmatpush2.msra.mxu0 %v607
    %1776 = vmatprep.subr.mxu0 %v600
    %1777 = vmatpush2.msra.mxu0 %v599
    %1778 = vmatprep.subr.mxu0 %v592
    %1779 = vmatpush2.msra.mxu0 %v591
    %1780 = vmatprep.subr.mxu0 %v584
    %1781 = vmatpush2.msra.mxu0 %v583
    %1782 = vmatprep.subr.mxu0 %v576
    %1783 = vmatpush2.msra.mxu0 %v575
    %1784 = vmatprep.subr.mxu0 %v568
    %1785 = vmatpush2.msra.mxu0 %v567
    %1786 = vmatprep.subr.mxu0 %v560
    %1787 = vmatpush2.msra.mxu0 %v559
    %1788 = vmatprep.subr.mxu0 %v552
    %1789 = vmatpush2.msra.mxu0 %v551
    %1790 = vmatprep.mubr.f32.mxu0 %v1631
    %1791 = vmatmul.mubr.f32.gmra.mxu0 %v1654
    %v1792 = vpop.f32.mrf.mxu0
    %v1793 = vadd.f32 0.0, %v1792
    %v1794 = vpop.f32.mrf.mxu0
    %v1795 = vadd.f32 0.0, %v1794
    %1796 = vdwg.mxu0
    %1797 = vmatprep.subr.mxu0 %v546
    %1798 = vmatpush1.msra.mxu0 %v545
    %1799 = vmatprep.subr.mxu0 %v538
    %1800 = vmatpush1.msra.mxu0 %v537
    %1801 = vmatprep.subr.mxu0 %v530
    %1802 = vmatpush1.msra.mxu0 %v529
    %1803 = vmatprep.subr.mxu0 %v522
    %1804 = vmatpush1.msra.mxu0 %v521
    %1805 = vmatprep.subr.mxu0 %v514
    %1806 = vmatpush1.msra.mxu0 %v513
    %1807 = vmatprep.subr.mxu0 %v506
    %1808 = vmatpush1.msra.mxu0 %v505
    %1809 = vmatprep.subr.mxu0 %v498
    %1810 = vmatpush1.msra.mxu0 %v497
    %1811 = vmatprep.subr.mxu0 %v490
    %1812 = vmatpush1.msra.mxu0 %v489
    %1813 = vmatprep.subr.mxu0 %v482
    %1814 = vmatpush1.msra.mxu0 %v481
    %1815 = vmatprep.subr.mxu0 %v474
    %1816 = vmatpush1.msra.mxu0 %v473
    %1817 = vmatprep.subr.mxu0 %v466
    %1818 = vmatpush1.msra.mxu0 %v465
    %1819 = vmatprep.subr.mxu0 %v458
    %1820 = vmatpush1.msra.mxu0 %v457
    %1821 = vmatprep.subr.mxu0 %v450
    %1822 = vmatpush1.msra.mxu0 %v449
    %1823 = vmatprep.subr.mxu0 %v442
    %1824 = vmatpush1.msra.mxu0 %v441
    %1825 = vmatprep.subr.mxu0 %v434
    %1826 = vmatpush1.msra.mxu0 %v433
    %1827 = vmatprep.subr.mxu0 %v426
    %1828 = vmatpush1.msra.mxu0 %v425
    %1829 = vmatprep.subr.mxu0 %v674
    %1830 = vmatpush2.msra.mxu0 %v673
    %1831 = vmatprep.subr.mxu0 %v666
    %1832 = vmatpush2.msra.mxu0 %v665
    %1833 = vmatprep.subr.mxu0 %v658
    %1834 = vmatpush2.msra.mxu0 %v657
    %1835 = vmatprep.subr.mxu0 %v650
    %1836 = vmatpush2.msra.mxu0 %v649
    %1837 = vmatprep.subr.mxu0 %v642
    %1838 = vmatpush2.msra.mxu0 %v641
    %1839 = vmatprep.subr.mxu0 %v634
    %1840 = vmatpush2.msra.mxu0 %v633
    %1841 = vmatprep.subr.mxu0 %v626
    %1842 = vmatpush2.msra.mxu0 %v625
    %1843 = vmatprep.subr.mxu0 %v618
    %1844 = vmatpush2.msra.mxu0 %v617
    %1845 = vmatprep.subr.mxu0 %v610
    %1846 = vmatpush2.msra.mxu0 %v609
    %1847 = vmatprep.subr.mxu0 %v602
    %1848 = vmatpush2.msra.mxu0 %v601
    %1849 = vmatprep.subr.mxu0 %v594
    %1850 = vmatpush2.msra.mxu0 %v593
    %1851 = vmatprep.subr.mxu0 %v586
    %1852 = vmatpush2.msra.mxu0 %v585
    %1853 = vmatprep.subr.mxu0 %v578
    %1854 = vmatpush2.msra.mxu0 %v577
    %1855 = vmatprep.subr.mxu0 %v570
    %1856 = vmatpush2.msra.mxu0 %v569
    %1857 = vmatprep.subr.mxu0 %v562
    %1858 = vmatpush2.msra.mxu0 %v561
    %1859 = vmatprep.subr.mxu0 %v554
    %1860 = vmatpush2.msra.mxu0 %v553
    %1861 = vmatprep.mubr.f32.mxu0 %v1631
    %1862 = vmatmul.mubr.f32.gmra.mxu0 %v1654
    %v1863 = vpop.f32.mrf.mxu0
    %v1864 = vadd.f32 0.0, %v1863
    %v1865 = vpop.f32.mrf.mxu0
    %v1866 = vadd.f32 0.0, %v1865
    %1867 = vdwg.mxu0
    %1868 = vmatprep.subr.mxu0 %v548
    %1869 = vmatpush1.msra.mxu0 %v547
    %1870 = vmatprep.subr.mxu0 %v540
    %1871 = vmatpush1.msra.mxu0 %v539
    %1872 = vmatprep.subr.mxu0 %v532
    %1873 = vmatpush1.msra.mxu0 %v531
    %1874 = vmatprep.subr.mxu0 %v524
    %1875 = vmatpush1.msra.mxu0 %v523
    %1876 = vmatprep.subr.mxu0 %v516
    %1877 = vmatpush1.msra.mxu0 %v515
    %1878 = vmatprep.subr.mxu0 %v508
    %1879 = vmatpush1.msra.mxu0 %v507
    %1880 = vmatprep.subr.mxu0 %v500
    %1881 = vmatpush1.msra.mxu0 %v499
    %1882 = vmatprep.subr.mxu0 %v492
    %1883 = vmatpush1.msra.mxu0 %v491
    %1884 = vmatprep.subr.mxu0 %v484
    %1885 = vmatpush1.msra.mxu0 %v483
    %1886 = vmatprep.subr.mxu0 %v476
    %1887 = vmatpush1.msra.mxu0 %v475
    %1888 = vmatprep.subr.mxu0 %v468
    %1889 = vmatpush1.msra.mxu0 %v467
    %1890 = vmatprep.subr.mxu0 %v460
    %1891 = vmatpush1.msra.mxu0 %v459
    %1892 = vmatprep.subr.mxu0 %v452
    %1893 = vmatpush1.msra.mxu0 %v451
    %1894 = vmatprep.subr.mxu0 %v444
    %1895 = vmatpush1.msra.mxu0 %v443
    %1896 = vmatprep.subr.mxu0 %v436
    %1897 = vmatpush1.msra.mxu0 %v435
    %1898 = vmatprep.subr.mxu0 %v428
    %1899 = vmatpush1.msra.mxu0 %v427
    %1900 = vmatprep.subr.mxu0 %v676
    %1901 = vmatpush2.msra.mxu0 %v675
    %1902 = vmatprep.subr.mxu0 %v668
    %1903 = vmatpush2.msra.mxu0 %v667
    %1904 = vmatprep.subr.mxu0 %v660
    %1905 = vmatpush2.msra.mxu0 %v659
    %1906 = vmatprep.subr.mxu0 %v652
    %1907 = vmatpush2.msra.mxu0 %v651
    %1908 = vmatprep.subr.mxu0 %v644
    %1909 = vmatpush2.msra.mxu0 %v643
    %1910 = vmatprep.subr.mxu0 %v636
    %1911 = vmatpush2.msra.mxu0 %v635
    %1912 = vmatprep.subr.mxu0 %v628
    %1913 = vmatpush2.msra.mxu0 %v627
    %1914 = vmatprep.subr.mxu0 %v620
    %1915 = vmatpush2.msra.mxu0 %v619
    %1916 = vmatprep.subr.mxu0 %v612
    %1917 = vmatpush2.msra.mxu0 %v611
    %1918 = vmatprep.subr.mxu0 %v604
    %1919 = vmatpush2.msra.mxu0 %v603
    %1920 = vmatprep.subr.mxu0 %v596
    %1921 = vmatpush2.msra.mxu0 %v595
    %1922 = vmatprep.subr.mxu0 %v588
    %1923 = vmatpush2.msra.mxu0 %v587
    %1924 = vmatprep.subr.mxu0 %v580
    %1925 = vmatpush2.msra.mxu0 %v579
    %1926 = vmatprep.subr.mxu0 %v572
    %1927 = vmatpush2.msra.mxu0 %v571
    %1928 = vmatprep.subr.mxu0 %v564
    %1929 = vmatpush2.msra.mxu0 %v563
    %1930 = vmatprep.subr.mxu0 %v556
    %1931 = vmatpush2.msra.mxu0 %v555
    %1932 = vmatprep.mubr.f32.mxu0 %v1631
    %1933 = vmatmul.mubr.f32.gmra.mxu0 %v1654
    %v1934 = vpop.f32.mrf.mxu0
    %v1935 = vadd.f32 0.0, %v1934
    %v1936 = vpop.f32.mrf.mxu0
    %v1937 = vadd.f32 0.0, %v1936
    %1938 = vdwg.mxu0
    %v1939 = vadd.f32 %v1722, %v381
    %v1940 = vadd.f32 %v1724, %v385
    %v1941 = vadd.f32 %v1793, %v389
    %v1942 = vadd.f32 %v1795, %v393
    %v1943 = vtanh.pop %v1939
    %v1944 = vtanh.pop %v1940
    %v1945 = vtanh.pop %v1941
    %v1946 = vtanh.pop %v1942
    %v1947 = vmul.f32 %v1943, 0.5
    %v1948 = vmul.f32 %v1944, 0.5
    %v1949 = vmul.f32 %v1945, 0.5
    %v1950 = vadd.f32 %v1947, 0.5
    %v1951 = vadd.f32 %v1948, 0.5
    %v1952 = vadd.f32 %v1949, 0.5
    %v1953 = vmul.f32 %v1951, %v1629
    %v1954 = vmul.f32 %v1950, %v1946
    %v1955 = vadd.f32 %v1953, %v1954
    %v1956 = vtanh.pop %v1955
    %v1957 = vmul.f32 %v1952, %v1956
    %v1958 = vld [vmem:[#allocation2 + $0x80] sm:$0xff]
    %v1959 = vld [vmem:[#allocation2 + $0x88] sm:$0xff]
    %v1960 = vld [vmem:[#allocation2 + $0x90] sm:$0xff]
    %v1961 = vld [vmem:[#allocation2 + $0x98] sm:$0xff]
    %v1962 = vadd.f32 %v1958, %v1864
    %v1963 = vadd.f32 %v1959, %v1866
    %v1964 = vadd.f32 %v1960, %v1935
    %v1965 = vadd.f32 %v1961, %v1937
    %v1966 = vtanh.pop %v1962
    %v1967 = vtanh.pop %v1963
    %v1968 = vtanh.pop %v1964
    %v1969 = vtanh.pop %v1965
    %v1970 = vmul.f32 %v1966, 0.5
    %v1971 = vmul.f32 %v1967, 0.5
    %v1972 = vmul.f32 %v1968, 0.5
    %v1973 = vadd.f32 %v1970, 0.5
    %v1974 = vadd.f32 %v1971, 0.5
    %v1975 = vadd.f32 %v1972, 0.5
    %v1976 = vmul.f32 %v1974, %v1652
    %v1977 = vmul.f32 %v1973, %v1969
    %v1978 = vadd.f32 %v1976, %v1977
    %v1979 = vtanh.pop %v1978
    %v1980 = vmul.f32 %v1975, %v1979
    %1981 = vmatprep.subr.mxu0 %v542
    %1982 = vmatpush1.msra.mxu0 %v541
    %1983 = vmatprep.subr.mxu0 %v534
    %1984 = vmatpush1.msra.mxu0 %v533
    %1985 = vmatprep.subr.mxu0 %v526
    %1986 = vmatpush1.msra.mxu0 %v525
    %1987 = vmatprep.subr.mxu0 %v518
    %1988 = vmatpush1.msra.mxu0 %v517
    %1989 = vmatprep.subr.mxu0 %v510
    %1990 = vmatpush1.msra.mxu0 %v509
    %1991 = vmatprep.subr.mxu0 %v502
    %1992 = vmatpush1.msra.mxu0 %v501
    %1993 = vmatprep.subr.mxu0 %v494
    %1994 = vmatpush1.msra.mxu0 %v493
    %1995 = vmatprep.subr.mxu0 %v486
    %1996 = vmatpush1.msra.mxu0 %v485
    %1997 = vmatprep.subr.mxu0 %v478
    %1998 = vmatpush1.msra.mxu0 %v477
    %1999 = vmatprep.subr.mxu0 %v470
    %2000 = vmatpush1.msra.mxu0 %v469
    %2001 = vmatprep.subr.mxu0 %v462
    %2002 = vmatpush1.msra.mxu0 %v461
    %2003 = vmatprep.subr.mxu0 %v454
    %2004 = vmatpush1.msra.mxu0 %v453
    %2005 = vmatprep.subr.mxu0 %v446
    %2006 = vmatpush1.msra.mxu0 %v445
    %2007 = vmatprep.subr.mxu0 %v438
    %2008 = vmatpush1.msra.mxu0 %v437
    %2009 = vmatprep.subr.mxu0 %v430
    %2010 = vmatpush1.msra.mxu0 %v429
    %2011 = vmatprep.subr.mxu0 %v422
    %2012 = vmatpush1.msra.mxu0 %v421
    %2013 = vmatprep.subr.mxu0 %v670
    %2014 = vmatpush2.msra.mxu0 %v669
    %2015 = vmatprep.subr.mxu0 %v662
    %2016 = vmatpush2.msra.mxu0 %v661
    %2017 = vmatprep.subr.mxu0 %v654
    %2018 = vmatpush2.msra.mxu0 %v653
    %2019 = vmatprep.subr.mxu0 %v646
    %2020 = vmatpush2.msra.mxu0 %v645
    %2021 = vmatprep.subr.mxu0 %v638
    %2022 = vmatpush2.msra.mxu0 %v637
    %2023 = vmatprep.subr.mxu0 %v630
    %2024 = vmatpush2.msra.mxu0 %v629
    %2025 = vmatprep.subr.mxu0 %v622
    %2026 = vmatpush2.msra.mxu0 %v621
    %2027 = vmatprep.subr.mxu0 %v614
    %2028 = vmatpush2.msra.mxu0 %v613
    %2029 = vmatprep.subr.mxu0 %v606
    %2030 = vmatpush2.msra.mxu0 %v605
    %2031 = vmatprep.subr.mxu0 %v598
    %2032 = vmatpush2.msra.mxu0 %v597
    %2033 = vmatprep.subr.mxu0 %v590
    %2034 = vmatpush2.msra.mxu0 %v589
    %2035 = vmatprep.subr.mxu0 %v582
    %2036 = vmatpush2.msra.mxu0 %v581
    %2037 = vmatprep.subr.mxu0 %v574
    %2038 = vmatpush2.msra.mxu0 %v573
    %2039 = vmatprep.subr.mxu0 %v566
    %2040 = vmatpush2.msra.mxu0 %v565
    %2041 = vmatprep.subr.mxu0 %v558
    %2042 = vmatpush2.msra.mxu0 %v557
    %2043 = vmatprep.subr.mxu0 %v550
    %2044 = vmatpush2.msra.mxu0 %v549
    %2045 = vmatprep.mubr.f32.mxu0 %v1957
    %2046 = vmatmul.mubr.f32.gmra.mxu0 %v1980
    %v2047 = vpop.f32.mrf.mxu0
    %v2048 = vadd.f32 0.0, %v2047
    %v2049 = vpop.f32.mrf.mxu0
    %v2050 = vadd.f32 0.0, %v2049
    %2051 = vdwg.mxu0
    %2052 = vmatprep.subr.mxu0 %v544
    %2053 = vmatpush1.msra.mxu0 %v543
    %2054 = vmatprep.subr.mxu0 %v536
    %2055 = vmatpush1.msra.mxu0 %v535
    %2056 = vmatprep.subr.mxu0 %v528
    %2057 = vmatpush1.msra.mxu0 %v527
    %2058 = vmatprep.subr.mxu0 %v520
    %2059 = vmatpush1.msra.mxu0 %v519
    %2060 = vmatprep.subr.mxu0 %v512
    %2061 = vmatpush1.msra.mxu0 %v511
    %2062 = vmatprep.subr.mxu0 %v504
    %2063 = vmatpush1.msra.mxu0 %v503
    %2064 = vmatprep.subr.mxu0 %v496
    %2065 = vmatpush1.msra.mxu0 %v495
    %2066 = vmatprep.subr.mxu0 %v488
    %2067 = vmatpush1.msra.mxu0 %v487
    %2068 = vmatprep.subr.mxu0 %v480
    %2069 = vmatpush1.msra.mxu0 %v479
    %2070 = vmatprep.subr.mxu0 %v472
    %2071 = vmatpush1.msra.mxu0 %v471
    %2072 = vmatprep.subr.mxu0 %v464
    %2073 = vmatpush1.msra.mxu0 %v463
    %2074 = vmatprep.subr.mxu0 %v456
    %2075 = vmatpush1.msra.mxu0 %v455
    %2076 = vmatprep.subr.mxu0 %v448
    %2077 = vmatpush1.msra.mxu0 %v447
    %2078 = vmatprep.subr.mxu0 %v440
    %2079 = vmatpush1.msra.mxu0 %v439
    %2080 = vmatprep.subr.mxu0 %v432
    %2081 = vmatpush1.msra.mxu0 %v431
    %2082 = vmatprep.subr.mxu0 %v424
    %2083 = vmatpush1.msra.mxu0 %v423
    %2084 = vmatprep.subr.mxu0 %v672
    %2085 = vmatpush2.msra.mxu0 %v671
    %2086 = vmatprep.subr.mxu0 %v664
    %2087 = vmatpush2.msra.mxu0 %v663
    %2088 = vmatprep.subr.mxu0 %v656
    %2089 = vmatpush2.msra.mxu0 %v655
    %2090 = vmatprep.subr.mxu0 %v648
    %2091 = vmatpush2.msra.mxu0 %v647
    %2092 = vmatprep.subr.mxu0 %v640
    %2093 = vmatpush2.msra.mxu0 %v639
    %2094 = vmatprep.subr.mxu0 %v632
    %2095 = vmatpush2.msra.mxu0 %v631
    %2096 = vmatprep.subr.mxu0 %v624
    %2097 = vmatpush2.msra.mxu0 %v623
    %2098 = vmatprep.subr.mxu0 %v616
    %2099 = vmatpush2.msra.mxu0 %v615
    %2100 = vmatprep.subr.mxu0 %v608
    %2101 = vmatpush2.msra.mxu0 %v607
    %2102 = vmatprep.subr.mxu0 %v600
    %2103 = vmatpush2.msra.mxu0 %v599
    %2104 = vmatprep.subr.mxu0 %v592
    %2105 = vmatpush2.msra.mxu0 %v591
    %2106 = vmatprep.subr.mxu0 %v584
    %2107 = vmatpush2.msra.mxu0 %v583
    %2108 = vmatprep.subr.mxu0 %v576
    %2109 = vmatpush2.msra.mxu0 %v575
    %2110 = vmatprep.subr.mxu0 %v568
    %2111 = vmatpush2.msra.mxu0 %v567
    %2112 = vmatprep.subr.mxu0 %v560
    %2113 = vmatpush2.msra.mxu0 %v559
    %2114 = vmatprep.subr.mxu0 %v552
    %2115 = vmatpush2.msra.mxu0 %v551
    %2116 = vmatprep.mubr.f32.mxu0 %v1957
    %2117 = vmatmul.mubr.f32.gmra.mxu0 %v1980
    %v2118 = vpop.f32.mrf.mxu0
    %v2119 = vadd.f32 0.0, %v2118
    %v2120 = vpop.f32.mrf.mxu0
    %v2121 = vadd.f32 0.0, %v2120
    %2122 = vdwg.mxu0
    %2123 = vmatprep.subr.mxu0 %v546
    %2124 = vmatpush1.msra.mxu0 %v545
    %2125 = vmatprep.subr.mxu0 %v538
    %2126 = vmatpush1.msra.mxu0 %v537
    %2127 = vmatprep.subr.mxu0 %v530
    %2128 = vmatpush1.msra.mxu0 %v529
    %2129 = vmatprep.subr.mxu0 %v522
    %2130 = vmatpush1.msra.mxu0 %v521
    %2131 = vmatprep.subr.mxu0 %v514
    %2132 = vmatpush1.msra.mxu0 %v513
    %2133 = vmatprep.subr.mxu0 %v506
    %2134 = vmatpush1.msra.mxu0 %v505
    %2135 = vmatprep.subr.mxu0 %v498
    %2136 = vmatpush1.msra.mxu0 %v497
    %2137 = vmatprep.subr.mxu0 %v490
    %2138 = vmatpush1.msra.mxu0 %v489
    %2139 = vmatprep.subr.mxu0 %v482
    %2140 = vmatpush1.msra.mxu0 %v481
    %2141 = vmatprep.subr.mxu0 %v474
    %2142 = vmatpush1.msra.mxu0 %v473
    %2143 = vmatprep.subr.mxu0 %v466
    %2144 = vmatpush1.msra.mxu0 %v465
    %2145 = vmatprep.subr.mxu0 %v458
    %2146 = vmatpush1.msra.mxu0 %v457
    %2147 = vmatprep.subr.mxu0 %v450
    %2148 = vmatpush1.msra.mxu0 %v449
    %2149 = vmatprep.subr.mxu0 %v442
    %2150 = vmatpush1.msra.mxu0 %v441
    %2151 = vmatprep.subr.mxu0 %v434
    %2152 = vmatpush1.msra.mxu0 %v433
    %2153 = vmatprep.subr.mxu0 %v426
    %2154 = vmatpush1.msra.mxu0 %v425
    %2155 = vmatprep.subr.mxu0 %v674
    %2156 = vmatpush2.msra.mxu0 %v673
    %2157 = vmatprep.subr.mxu0 %v666
    %2158 = vmatpush2.msra.mxu0 %v665
    %2159 = vmatprep.subr.mxu0 %v658
    %2160 = vmatpush2.msra.mxu0 %v657
    %2161 = vmatprep.subr.mxu0 %v650
    %2162 = vmatpush2.msra.mxu0 %v649
    %2163 = vmatprep.subr.mxu0 %v642
    %2164 = vmatpush2.msra.mxu0 %v641
    %2165 = vmatprep.subr.mxu0 %v634
    %2166 = vmatpush2.msra.mxu0 %v633
    %2167 = vmatprep.subr.mxu0 %v626
    %2168 = vmatpush2.msra.mxu0 %v625
    %2169 = vmatprep.subr.mxu0 %v618
    %2170 = vmatpush2.msra.mxu0 %v617
    %2171 = vmatprep.subr.mxu0 %v610
    %2172 = vmatpush2.msra.mxu0 %v609
    %2173 = vmatprep.subr.mxu0 %v602
    %2174 = vmatpush2.msra.mxu0 %v601
    %2175 = vmatprep.subr.mxu0 %v594
    %2176 = vmatpush2.msra.mxu0 %v593
    %2177 = vmatprep.subr.mxu0 %v586
    %2178 = vmatpush2.msra.mxu0 %v585
    %2179 = vmatprep.subr.mxu0 %v578
    %2180 = vmatpush2.msra.mxu0 %v577
    %2181 = vmatprep.subr.mxu0 %v570
    %2182 = vmatpush2.msra.mxu0 %v569
    %2183 = vmatprep.subr.mxu0 %v562
    %2184 = vmatpush2.msra.mxu0 %v561
    %2185 = vmatprep.subr.mxu0 %v554
    %2186 = vmatpush2.msra.mxu0 %v553
    %2187 = vmatprep.mubr.f32.mxu0 %v1957
    %2188 = vmatmul.mubr.f32.gmra.mxu0 %v1980
    %v2189 = vpop.f32.mrf.mxu0
    %v2190 = vadd.f32 0.0, %v2189
    %v2191 = vpop.f32.mrf.mxu0
    %v2192 = vadd.f32 0.0, %v2191
    %2193 = vdwg.mxu0
    %2194 = vmatprep.subr.mxu0 %v548
    %2195 = vmatpush1.msra.mxu0 %v547
    %2196 = vmatprep.subr.mxu0 %v540
    %2197 = vmatpush1.msra.mxu0 %v539
    %2198 = vmatprep.subr.mxu0 %v532
    %2199 = vmatpush1.msra.mxu0 %v531
    %2200 = vmatprep.subr.mxu0 %v524
    %2201 = vmatpush1.msra.mxu0 %v523
    %2202 = vmatprep.subr.mxu0 %v516
    %2203 = vmatpush1.msra.mxu0 %v515
    %2204 = vmatprep.subr.mxu0 %v508
    %2205 = vmatpush1.msra.mxu0 %v507
    %2206 = vmatprep.subr.mxu0 %v500
    %2207 = vmatpush1.msra.mxu0 %v499
    %2208 = vmatprep.subr.mxu0 %v492
    %2209 = vmatpush1.msra.mxu0 %v491
    %2210 = vmatprep.subr.mxu0 %v484
    %2211 = vmatpush1.msra.mxu0 %v483
    %2212 = vmatprep.subr.mxu0 %v476
    %2213 = vmatpush1.msra.mxu0 %v475
    %2214 = vmatprep.subr.mxu0 %v468
    %2215 = vmatpush1.msra.mxu0 %v467
    %2216 = vmatprep.subr.mxu0 %v460
    %2217 = vmatpush1.msra.mxu0 %v459
    %2218 = vmatprep.subr.mxu0 %v452
    %2219 = vmatpush1.msra.mxu0 %v451
    %2220 = vmatprep.subr.mxu0 %v444
    %2221 = vmatpush1.msra.mxu0 %v443
    %2222 = vmatprep.subr.mxu0 %v436
    %2223 = vmatpush1.msra.mxu0 %v435
    %2224 = vmatprep.subr.mxu0 %v428
    %2225 = vmatpush1.msra.mxu0 %v427
    %2226 = vmatprep.subr.mxu0 %v676
    %2227 = vmatpush2.msra.mxu0 %v675
    %2228 = vmatprep.subr.mxu0 %v668
    %2229 = vmatpush2.msra.mxu0 %v667
    %2230 = vmatprep.subr.mxu0 %v660
    %2231 = vmatpush2.msra.mxu0 %v659
    %2232 = vmatprep.subr.mxu0 %v652
    %2233 = vmatpush2.msra.mxu0 %v651
    %2234 = vmatprep.subr.mxu0 %v644
    %2235 = vmatpush2.msra.mxu0 %v643
    %2236 = vmatprep.subr.mxu0 %v636
    %2237 = vmatpush2.msra.mxu0 %v635
    %2238 = vmatprep.subr.mxu0 %v628
    %2239 = vmatpush2.msra.mxu0 %v627
    %2240 = vmatprep.subr.mxu0 %v620
    %2241 = vmatpush2.msra.mxu0 %v619
    %2242 = vmatprep.subr.mxu0 %v612
    %2243 = vmatpush2.msra.mxu0 %v611
    %2244 = vmatprep.subr.mxu0 %v604
    %2245 = vmatpush2.msra.mxu0 %v603
    %2246 = vmatprep.subr.mxu0 %v596
    %2247 = vmatpush2.msra.mxu0 %v595
    %2248 = vmatprep.subr.mxu0 %v588
    %2249 = vmatpush2.msra.mxu0 %v587
    %2250 = vmatprep.subr.mxu0 %v580
    %2251 = vmatpush2.msra.mxu0 %v579
    %2252 = vmatprep.subr.mxu0 %v572
    %2253 = vmatpush2.msra.mxu0 %v571
    %2254 = vmatprep.subr.mxu0 %v564
    %2255 = vmatpush2.msra.mxu0 %v563
    %2256 = vmatprep.subr.mxu0 %v556
    %2257 = vmatpush2.msra.mxu0 %v555
    %2258 = vmatprep.mubr.f32.mxu0 %v1957
    %2259 = vmatmul.mubr.f32.gmra.mxu0 %v1980
    %v2260 = vpop.f32.mrf.mxu0
    %v2261 = vadd.f32 0.0, %v2260
    %v2262 = vpop.f32.mrf.mxu0
    %v2263 = vadd.f32 0.0, %v2262
    %2264 = vdwg.mxu0
    %v2265 = vadd.f32 %v2048, %v381
    %v2266 = vadd.f32 %v2050, %v385
    %v2267 = vadd.f32 %v2119, %v389
    %v2268 = vadd.f32 %v2121, %v393
    %v2269 = vtanh.pop %v2265
    %v2270 = vtanh.pop %v2266
    %v2271 = vtanh.pop %v2267
    %v2272 = vtanh.pop %v2268
    %v2273 = vmul.f32 %v2269, 0.5
    %v2274 = vmul.f32 %v2270, 0.5
    %v2275 = vmul.f32 %v2271, 0.5
    %v2276 = vadd.f32 %v2273, 0.5
    %v2277 = vadd.f32 %v2274, 0.5
    %v2278 = vadd.f32 %v2275, 0.5
    %v2279 = vmul.f32 %v2277, %v1955
    %v2280 = vmul.f32 %v2276, %v2272
    %v2281 = vadd.f32 %v2279, %v2280
    %v2282 = vtanh.pop %v2281
    %v2283 = vmul.f32 %v2278, %v2282
    %v2284 = vld [vmem:[#allocation2 + $0xa0] sm:$0xff]
    %v2285 = vld [vmem:[#allocation2 + $0xa8] sm:$0xff]
    %v2286 = vld [vmem:[#allocation2 + $0xb0] sm:$0xff]
    %v2287 = vld [vmem:[#allocation2 + $0xb8] sm:$0xff]
    %v2288 = vadd.f32 %v2284, %v2190
    %v2289 = vadd.f32 %v2285, %v2192
    %v2290 = vadd.f32 %v2286, %v2261
    %v2291 = vadd.f32 %v2287, %v2263
    %v2292 = vtanh.pop %v2288
    %v2293 = vtanh.pop %v2289
    %v2294 = vtanh.pop %v2290
    %v2295 = vtanh.pop %v2291
    %v2296 = vmul.f32 %v2292, 0.5
    %v2297 = vmul.f32 %v2293, 0.5
    %v2298 = vmul.f32 %v2294, 0.5
    %v2299 = vadd.f32 %v2296, 0.5
    %v2300 = vadd.f32 %v2297, 0.5
    %v2301 = vadd.f32 %v2298, 0.5
    %v2302 = vmul.f32 %v2300, %v1978
    %v2303 = vmul.f32 %v2299, %v2295
    %v2304 = vadd.f32 %v2302, %v2303
    %v2305 = vtanh.pop %v2304
    %v2306 = vmul.f32 %v2301, %v2305
    %2307 = vmatprep.subr.mxu0 %v542
    %2308 = vmatpush1.msra.mxu0 %v541
    %2309 = vmatprep.subr.mxu0 %v534
    %2310 = vmatpush1.msra.mxu0 %v533
    %2311 = vmatprep.subr.mxu0 %v526
    %2312 = vmatpush1.msra.mxu0 %v525
    %2313 = vmatprep.subr.mxu0 %v518
    %2314 = vmatpush1.msra.mxu0 %v517
    %2315 = vmatprep.subr.mxu0 %v510
    %2316 = vmatpush1.msra.mxu0 %v509
    %2317 = vmatprep.subr.mxu0 %v502
    %2318 = vmatpush1.msra.mxu0 %v501
    %2319 = vmatprep.subr.mxu0 %v494
    %2320 = vmatpush1.msra.mxu0 %v493
    %2321 = vmatprep.subr.mxu0 %v486
    %2322 = vmatpush1.msra.mxu0 %v485
    %2323 = vmatprep.subr.mxu0 %v478
    %2324 = vmatpush1.msra.mxu0 %v477
    %2325 = vmatprep.subr.mxu0 %v470
    %2326 = vmatpush1.msra.mxu0 %v469
    %2327 = vmatprep.subr.mxu0 %v462
    %2328 = vmatpush1.msra.mxu0 %v461
    %2329 = vmatprep.subr.mxu0 %v454
    %2330 = vmatpush1.msra.mxu0 %v453
    %2331 = vmatprep.subr.mxu0 %v446
    %2332 = vmatpush1.msra.mxu0 %v445
    %2333 = vmatprep.subr.mxu0 %v438
    %2334 = vmatpush1.msra.mxu0 %v437
    %2335 = vmatprep.subr.mxu0 %v430
    %2336 = vmatpush1.msra.mxu0 %v429
    %2337 = vmatprep.subr.mxu0 %v422
    %2338 = vmatpush1.msra.mxu0 %v421
    %2339 = vmatprep.subr.mxu0 %v670
    %2340 = vmatpush2.msra.mxu0 %v669
    %2341 = vmatprep.subr.mxu0 %v662
    %2342 = vmatpush2.msra.mxu0 %v661
    %2343 = vmatprep.subr.mxu0 %v654
    %2344 = vmatpush2.msra.mxu0 %v653
    %2345 = vmatprep.subr.mxu0 %v646
    %2346 = vmatpush2.msra.mxu0 %v645
    %2347 = vmatprep.subr.mxu0 %v638
    %2348 = vmatpush2.msra.mxu0 %v637
    %2349 = vmatprep.subr.mxu0 %v630
    %2350 = vmatpush2.msra.mxu0 %v629
    %2351 = vmatprep.subr.mxu0 %v622
    %2352 = vmatpush2.msra.mxu0 %v621
    %2353 = vmatprep.subr.mxu0 %v614
    %2354 = vmatpush2.msra.mxu0 %v613
    %2355 = vmatprep.subr.mxu0 %v606
    %2356 = vmatpush2.msra.mxu0 %v605
    %2357 = vmatprep.subr.mxu0 %v598
    %2358 = vmatpush2.msra.mxu0 %v597
    %2359 = vmatprep.subr.mxu0 %v590
    %2360 = vmatpush2.msra.mxu0 %v589
    %2361 = vmatprep.subr.mxu0 %v582
    %2362 = vmatpush2.msra.mxu0 %v581
    %2363 = vmatprep.subr.mxu0 %v574
    %2364 = vmatpush2.msra.mxu0 %v573
    %2365 = vmatprep.subr.mxu0 %v566
    %2366 = vmatpush2.msra.mxu0 %v565
    %2367 = vmatprep.subr.mxu0 %v558
    %2368 = vmatpush2.msra.mxu0 %v557
    %2369 = vmatprep.subr.mxu0 %v550
    %2370 = vmatpush2.msra.mxu0 %v549
    %2371 = vmatprep.mubr.f32.mxu0 %v2283
    %2372 = vmatmul.mubr.f32.gmra.mxu0 %v2306
    %v2373 = vpop.f32.mrf.mxu0
    %v2374 = vadd.f32 0.0, %v2373
    %v2375 = vpop.f32.mrf.mxu0
    %v2376 = vadd.f32 0.0, %v2375
    %2377 = vdwg.mxu0
    %2378 = vmatprep.subr.mxu0 %v544
    %2379 = vmatpush1.msra.mxu0 %v543
    %2380 = vmatprep.subr.mxu0 %v536
    %2381 = vmatpush1.msra.mxu0 %v535
    %2382 = vmatprep.subr.mxu0 %v528
    %2383 = vmatpush1.msra.mxu0 %v527
    %2384 = vmatprep.subr.mxu0 %v520
    %2385 = vmatpush1.msra.mxu0 %v519
    %2386 = vmatprep.subr.mxu0 %v512
    %2387 = vmatpush1.msra.mxu0 %v511
    %2388 = vmatprep.subr.mxu0 %v504
    %2389 = vmatpush1.msra.mxu0 %v503
    %2390 = vmatprep.subr.mxu0 %v496
    %2391 = vmatpush1.msra.mxu0 %v495
    %2392 = vmatprep.subr.mxu0 %v488
    %2393 = vmatpush1.msra.mxu0 %v487
    %2394 = vmatprep.subr.mxu0 %v480
    %2395 = vmatpush1.msra.mxu0 %v479
    %2396 = vmatprep.subr.mxu0 %v472
    %2397 = vmatpush1.msra.mxu0 %v471
    %2398 = vmatprep.subr.mxu0 %v464
    %2399 = vmatpush1.msra.mxu0 %v463
    %2400 = vmatprep.subr.mxu0 %v456
    %2401 = vmatpush1.msra.mxu0 %v455
    %2402 = vmatprep.subr.mxu0 %v448
    %2403 = vmatpush1.msra.mxu0 %v447
    %2404 = vmatprep.subr.mxu0 %v440
    %2405 = vmatpush1.msra.mxu0 %v439
    %2406 = vmatprep.subr.mxu0 %v432
    %2407 = vmatpush1.msra.mxu0 %v431
    %2408 = vmatprep.subr.mxu0 %v424
    %2409 = vmatpush1.msra.mxu0 %v423
    %2410 = vmatprep.subr.mxu0 %v672
    %2411 = vmatpush2.msra.mxu0 %v671
    %2412 = vmatprep.subr.mxu0 %v664
    %2413 = vmatpush2.msra.mxu0 %v663
    %2414 = vmatprep.subr.mxu0 %v656
    %2415 = vmatpush2.msra.mxu0 %v655
    %2416 = vmatprep.subr.mxu0 %v648
    %2417 = vmatpush2.msra.mxu0 %v647
    %2418 = vmatprep.subr.mxu0 %v640
    %2419 = vmatpush2.msra.mxu0 %v639
    %2420 = vmatprep.subr.mxu0 %v632
    %2421 = vmatpush2.msra.mxu0 %v631
    %2422 = vmatprep.subr.mxu0 %v624
    %2423 = vmatpush2.msra.mxu0 %v623
    %2424 = vmatprep.subr.mxu0 %v616
    %2425 = vmatpush2.msra.mxu0 %v615
    %2426 = vmatprep.subr.mxu0 %v608
    %2427 = vmatpush2.msra.mxu0 %v607
    %2428 = vmatprep.subr.mxu0 %v600
    %2429 = vmatpush2.msra.mxu0 %v599
    %2430 = vmatprep.subr.mxu0 %v592
    %2431 = vmatpush2.msra.mxu0 %v591
    %2432 = vmatprep.subr.mxu0 %v584
    %2433 = vmatpush2.msra.mxu0 %v583
    %2434 = vmatprep.subr.mxu0 %v576
    %2435 = vmatpush2.msra.mxu0 %v575
    %2436 = vmatprep.subr.mxu0 %v568
    %2437 = vmatpush2.msra.mxu0 %v567
    %2438 = vmatprep.subr.mxu0 %v560
    %2439 = vmatpush2.msra.mxu0 %v559
    %2440 = vmatprep.subr.mxu0 %v552
    %2441 = vmatpush2.msra.mxu0 %v551
    %2442 = vmatprep.mubr.f32.mxu0 %v2283
    %2443 = vmatmul.mubr.f32.gmra.mxu0 %v2306
    %v2444 = vpop.f32.mrf.mxu0
    %v2445 = vadd.f32 0.0, %v2444
    %v2446 = vpop.f32.mrf.mxu0
    %v2447 = vadd.f32 0.0, %v2446
    %2448 = vdwg.mxu0
    %2449 = vmatprep.subr.mxu0 %v546
    %2450 = vmatpush1.msra.mxu0 %v545
    %2451 = vmatprep.subr.mxu0 %v538
    %2452 = vmatpush1.msra.mxu0 %v537
    %2453 = vmatprep.subr.mxu0 %v530
    %2454 = vmatpush1.msra.mxu0 %v529
    %2455 = vmatprep.subr.mxu0 %v522
    %2456 = vmatpush1.msra.mxu0 %v521
    %2457 = vmatprep.subr.mxu0 %v514
    %2458 = vmatpush1.msra.mxu0 %v513
    %2459 = vmatprep.subr.mxu0 %v506
    %2460 = vmatpush1.msra.mxu0 %v505
    %2461 = vmatprep.subr.mxu0 %v498
    %2462 = vmatpush1.msra.mxu0 %v497
    %2463 = vmatprep.subr.mxu0 %v490
    %2464 = vmatpush1.msra.mxu0 %v489
    %2465 = vmatprep.subr.mxu0 %v482
    %2466 = vmatpush1.msra.mxu0 %v481
    %2467 = vmatprep.subr.mxu0 %v474
    %2468 = vmatpush1.msra.mxu0 %v473
    %2469 = vmatprep.subr.mxu0 %v466
    %2470 = vmatpush1.msra.mxu0 %v465
    %2471 = vmatprep.subr.mxu0 %v458
    %2472 = vmatpush1.msra.mxu0 %v457
    %2473 = vmatprep.subr.mxu0 %v450
    %2474 = vmatpush1.msra.mxu0 %v449
    %2475 = vmatprep.subr.mxu0 %v442
    %2476 = vmatpush1.msra.mxu0 %v441
    %2477 = vmatprep.subr.mxu0 %v434
    %2478 = vmatpush1.msra.mxu0 %v433
    %2479 = vmatprep.subr.mxu0 %v426
    %2480 = vmatpush1.msra.mxu0 %v425
    %2481 = vmatprep.subr.mxu0 %v674
    %2482 = vmatpush2.msra.mxu0 %v673
    %2483 = vmatprep.subr.mxu0 %v666
    %2484 = vmatpush2.msra.mxu0 %v665
    %2485 = vmatprep.subr.mxu0 %v658
    %2486 = vmatpush2.msra.mxu0 %v657
    %2487 = vmatprep.subr.mxu0 %v650
    %2488 = vmatpush2.msra.mxu0 %v649
    %2489 = vmatprep.subr.mxu0 %v642
    %2490 = vmatpush2.msra.mxu0 %v641
    %2491 = vmatprep.subr.mxu0 %v634
    %2492 = vmatpush2.msra.mxu0 %v633
    %2493 = vmatprep.subr.mxu0 %v626
    %2494 = vmatpush2.msra.mxu0 %v625
    %2495 = vmatprep.subr.mxu0 %v618
    %2496 = vmatpush2.msra.mxu0 %v617
    %2497 = vmatprep.subr.mxu0 %v610
    %2498 = vmatpush2.msra.mxu0 %v609
    %2499 = vmatprep.subr.mxu0 %v602
    %2500 = vmatpush2.msra.mxu0 %v601
    %2501 = vmatprep.subr.mxu0 %v594
    %2502 = vmatpush2.msra.mxu0 %v593
    %2503 = vmatprep.subr.mxu0 %v586
    %2504 = vmatpush2.msra.mxu0 %v585
    %2505 = vmatprep.subr.mxu0 %v578
    %2506 = vmatpush2.msra.mxu0 %v577
    %2507 = vmatprep.subr.mxu0 %v570
    %2508 = vmatpush2.msra.mxu0 %v569
    %2509 = vmatprep.subr.mxu0 %v562
    %2510 = vmatpush2.msra.mxu0 %v561
    %2511 = vmatprep.subr.mxu0 %v554
    %2512 = vmatpush2.msra.mxu0 %v553
    %2513 = vmatprep.mubr.f32.mxu0 %v2283
    %2514 = vmatmul.mubr.f32.gmra.mxu0 %v2306
    %v2515 = vpop.f32.mrf.mxu0
    %v2516 = vadd.f32 0.0, %v2515
    %v2517 = vpop.f32.mrf.mxu0
    %v2518 = vadd.f32 0.0, %v2517
    %2519 = vdwg.mxu0
    %2520 = vmatprep.subr.mxu0 %v548
    %2521 = vmatpush1.msra.mxu0 %v547
    %2522 = vmatprep.subr.mxu0 %v540
    %2523 = vmatpush1.msra.mxu0 %v539
    %2524 = vmatprep.subr.mxu0 %v532
    %2525 = vmatpush1.msra.mxu0 %v531
    %2526 = vmatprep.subr.mxu0 %v524
    %2527 = vmatpush1.msra.mxu0 %v523
    %2528 = vmatprep.subr.mxu0 %v516
    %2529 = vmatpush1.msra.mxu0 %v515
    %2530 = vmatprep.subr.mxu0 %v508
    %2531 = vmatpush1.msra.mxu0 %v507
    %2532 = vmatprep.subr.mxu0 %v500
    %2533 = vmatpush1.msra.mxu0 %v499
    %2534 = vmatprep.subr.mxu0 %v492
    %2535 = vmatpush1.msra.mxu0 %v491
    %2536 = vmatprep.subr.mxu0 %v484
    %2537 = vmatpush1.msra.mxu0 %v483
    %2538 = vmatprep.subr.mxu0 %v476
    %2539 = vmatpush1.msra.mxu0 %v475
    %2540 = vmatprep.subr.mxu0 %v468
    %2541 = vmatpush1.msra.mxu0 %v467
    %2542 = vmatprep.subr.mxu0 %v460
    %2543 = vmatpush1.msra.mxu0 %v459
    %2544 = vmatprep.subr.mxu0 %v452
    %2545 = vmatpush1.msra.mxu0 %v451
    %2546 = vmatprep.subr.mxu0 %v444
    %2547 = vmatpush1.msra.mxu0 %v443
    %2548 = vmatprep.subr.mxu0 %v436
    %2549 = vmatpush1.msra.mxu0 %v435
    %2550 = vmatprep.subr.mxu0 %v428
    %2551 = vmatpush1.msra.mxu0 %v427
    %2552 = vmatprep.subr.mxu0 %v676
    %2553 = vmatpush2.msra.mxu0 %v675
    %2554 = vmatprep.subr.mxu0 %v668
    %2555 = vmatpush2.msra.mxu0 %v667
    %2556 = vmatprep.subr.mxu0 %v660
    %2557 = vmatpush2.msra.mxu0 %v659
    %2558 = vmatprep.subr.mxu0 %v652
    %2559 = vmatpush2.msra.mxu0 %v651
    %2560 = vmatprep.subr.mxu0 %v644
    %2561 = vmatpush2.msra.mxu0 %v643
    %2562 = vmatprep.subr.mxu0 %v636
    %2563 = vmatpush2.msra.mxu0 %v635
    %2564 = vmatprep.subr.mxu0 %v628
    %2565 = vmatpush2.msra.mxu0 %v627
    %2566 = vmatprep.subr.mxu0 %v620
    %2567 = vmatpush2.msra.mxu0 %v619
    %2568 = vmatprep.subr.mxu0 %v612
    %2569 = vmatpush2.msra.mxu0 %v611
    %2570 = vmatprep.subr.mxu0 %v604
    %2571 = vmatpush2.msra.mxu0 %v603
    %2572 = vmatprep.subr.mxu0 %v596
    %2573 = vmatpush2.msra.mxu0 %v595
    %2574 = vmatprep.subr.mxu0 %v588
    %2575 = vmatpush2.msra.mxu0 %v587
    %2576 = vmatprep.subr.mxu0 %v580
    %2577 = vmatpush2.msra.mxu0 %v579
    %2578 = vmatprep.subr.mxu0 %v572
    %2579 = vmatpush2.msra.mxu0 %v571
    %2580 = vmatprep.subr.mxu0 %v564
    %2581 = vmatpush2.msra.mxu0 %v563
    %2582 = vmatprep.subr.mxu0 %v556
    %2583 = vmatpush2.msra.mxu0 %v555
    %2584 = vmatprep.mubr.f32.mxu0 %v2283
    %2585 = vmatmul.mubr.f32.gmra.mxu0 %v2306
    %v2586 = vpop.f32.mrf.mxu0
    %v2587 = vadd.f32 0.0, %v2586
    %v2588 = vpop.f32.mrf.mxu0
    %v2589 = vadd.f32 0.0, %v2588
    %2590 = vdwg.mxu0
    %v2591 = vadd.f32 %v2374, %v381
    %v2592 = vadd.f32 %v2376, %v385
    %v2593 = vadd.f32 %v2445, %v389
    %v2594 = vadd.f32 %v2447, %v393
    %v2595 = vtanh.pop %v2591
    %v2596 = vtanh.pop %v2592
    %v2597 = vtanh.pop %v2593
    %v2598 = vtanh.pop %v2594
    %v2599 = vmul.f32 %v2595, 0.5
    %v2600 = vmul.f32 %v2596, 0.5
    %v2601 = vmul.f32 %v2597, 0.5
    %v2602 = vadd.f32 %v2599, 0.5
    %v2603 = vadd.f32 %v2600, 0.5
    %v2604 = vadd.f32 %v2601, 0.5
    %v2605 = vmul.f32 %v2603, %v2281
    %v2606 = vmul.f32 %v2602, %v2598
    %v2607 = vadd.f32 %v2605, %v2606
    %v2608 = vtanh.pop %v2607
    %v2609 = vmul.f32 %v2604, %v2608
    %v2610 = vld [vmem:[#allocation2 + $0xc0] sm:$0xff]
    %v2611 = vld [vmem:[#allocation2 + $0xc8] sm:$0xff]
    %v2612 = vld [vmem:[#allocation2 + $0xd0] sm:$0xff]
    %v2613 = vld [vmem:[#allocation2 + $0xd8] sm:$0xff]
    %v2614 = vadd.f32 %v2610, %v2516
    %v2615 = vadd.f32 %v2611, %v2518
    %v2616 = vadd.f32 %v2612, %v2587
    %v2617 = vadd.f32 %v2613, %v2589
    %v2618 = vtanh.pop %v2614
    %v2619 = vtanh.pop %v2615
    %v2620 = vtanh.pop %v2616
    %v2621 = vtanh.pop %v2617
    %v2622 = vmul.f32 %v2618, 0.5
    %v2623 = vmul.f32 %v2619, 0.5
    %v2624 = vmul.f32 %v2620, 0.5
    %v2625 = vadd.f32 %v2622, 0.5
    %v2626 = vadd.f32 %v2623, 0.5
    %v2627 = vadd.f32 %v2624, 0.5
    %v2628 = vmul.f32 %v2626, %v2304
    %v2629 = vmul.f32 %v2625, %v2621
    %v2630 = vadd.f32 %v2628, %v2629
    %v2631 = vtanh.pop %v2630
    %v2632 = vmul.f32 %v2627, %v2631
    %2633 = vmatprep.subr.mxu0 %v542
    %2634 = vmatpush1.msra.mxu0 %v541
    %2635 = vmatprep.subr.mxu0 %v534
    %2636 = vmatpush1.msra.mxu0 %v533
    %2637 = vmatprep.subr.mxu0 %v526
    %2638 = vmatpush1.msra.mxu0 %v525
    %2639 = vmatprep.subr.mxu0 %v518
    %2640 = vmatpush1.msra.mxu0 %v517
    %2641 = vmatprep.subr.mxu0 %v510
    %2642 = vmatpush1.msra.mxu0 %v509
    %2643 = vmatprep.subr.mxu0 %v502
    %2644 = vmatpush1.msra.mxu0 %v501
    %2645 = vmatprep.subr.mxu0 %v494
    %2646 = vmatpush1.msra.mxu0 %v493
    %2647 = vmatprep.subr.mxu0 %v486
    %2648 = vmatpush1.msra.mxu0 %v485
    %2649 = vmatprep.subr.mxu0 %v478
    %2650 = vmatpush1.msra.mxu0 %v477
    %2651 = vmatprep.subr.mxu0 %v470
    %2652 = vmatpush1.msra.mxu0 %v469
    %2653 = vmatprep.subr.mxu0 %v462
    %2654 = vmatpush1.msra.mxu0 %v461
    %2655 = vmatprep.subr.mxu0 %v454
    %2656 = vmatpush1.msra.mxu0 %v453
    %2657 = vmatprep.subr.mxu0 %v446
    %2658 = vmatpush1.msra.mxu0 %v445
    %2659 = vmatprep.subr.mxu0 %v438
    %2660 = vmatpush1.msra.mxu0 %v437
    %2661 = vmatprep.subr.mxu0 %v430
    %2662 = vmatpush1.msra.mxu0 %v429
    %2663 = vmatprep.subr.mxu0 %v422
    %2664 = vmatpush1.msra.mxu0 %v421
    %2665 = vmatprep.subr.mxu0 %v670
    %2666 = vmatpush2.msra.mxu0 %v669
    %2667 = vmatprep.subr.mxu0 %v662
    %2668 = vmatpush2.msra.mxu0 %v661
    %2669 = vmatprep.subr.mxu0 %v654
    %2670 = vmatpush2.msra.mxu0 %v653
    %2671 = vmatprep.subr.mxu0 %v646
    %2672 = vmatpush2.msra.mxu0 %v645
    %2673 = vmatprep.subr.mxu0 %v638
    %2674 = vmatpush2.msra.mxu0 %v637
    %2675 = vmatprep.subr.mxu0 %v630
    %2676 = vmatpush2.msra.mxu0 %v629
    %2677 = vmatprep.subr.mxu0 %v622
    %2678 = vmatpush2.msra.mxu0 %v621
    %2679 = vmatprep.subr.mxu0 %v614
    %2680 = vmatpush2.msra.mxu0 %v613
    %2681 = vmatprep.subr.mxu0 %v606
    %2682 = vmatpush2.msra.mxu0 %v605
    %2683 = vmatprep.subr.mxu0 %v598
    %2684 = vmatpush2.msra.mxu0 %v597
    %2685 = vmatprep.subr.mxu0 %v590
    %2686 = vmatpush2.msra.mxu0 %v589
    %2687 = vmatprep.subr.mxu0 %v582
    %2688 = vmatpush2.msra.mxu0 %v581
    %2689 = vmatprep.subr.mxu0 %v574
    %2690 = vmatpush2.msra.mxu0 %v573
    %2691 = vmatprep.subr.mxu0 %v566
    %2692 = vmatpush2.msra.mxu0 %v565
    %2693 = vmatprep.subr.mxu0 %v558
    %2694 = vmatpush2.msra.mxu0 %v557
    %2695 = vmatprep.subr.mxu0 %v550
    %2696 = vmatpush2.msra.mxu0 %v549
    %2697 = vmatprep.mubr.f32.mxu0 %v2609
    %2698 = vmatmul.mubr.f32.gmra.mxu0 %v2632
    %v2699 = vpop.f32.mrf.mxu0
    %v2700 = vadd.f32 0.0, %v2699
    %v2701 = vpop.f32.mrf.mxu0
    %v2702 = vadd.f32 0.0, %v2701
    %2703 = vdwg.mxu0
    %2704 = vmatprep.subr.mxu0 %v544
    %2705 = vmatpush1.msra.mxu0 %v543
    %2706 = vmatprep.subr.mxu0 %v536
    %2707 = vmatpush1.msra.mxu0 %v535
    %2708 = vmatprep.subr.mxu0 %v528
    %2709 = vmatpush1.msra.mxu0 %v527
    %2710 = vmatprep.subr.mxu0 %v520
    %2711 = vmatpush1.msra.mxu0 %v519
    %2712 = vmatprep.subr.mxu0 %v512
    %2713 = vmatpush1.msra.mxu0 %v511
    %2714 = vmatprep.subr.mxu0 %v504
    %2715 = vmatpush1.msra.mxu0 %v503
    %2716 = vmatprep.subr.mxu0 %v496
    %2717 = vmatpush1.msra.mxu0 %v495
    %2718 = vmatprep.subr.mxu0 %v488
    %2719 = vmatpush1.msra.mxu0 %v487
    %2720 = vmatprep.subr.mxu0 %v480
    %2721 = vmatpush1.msra.mxu0 %v479
    %2722 = vmatprep.subr.mxu0 %v472
    %2723 = vmatpush1.msra.mxu0 %v471
    %2724 = vmatprep.subr.mxu0 %v464
    %2725 = vmatpush1.msra.mxu0 %v463
    %2726 = vmatprep.subr.mxu0 %v456
    %2727 = vmatpush1.msra.mxu0 %v455
    %2728 = vmatprep.subr.mxu0 %v448
    %2729 = vmatpush1.msra.mxu0 %v447
    %2730 = vmatprep.subr.mxu0 %v440
    %2731 = vmatpush1.msra.mxu0 %v439
    %2732 = vmatprep.subr.mxu0 %v432
    %2733 = vmatpush1.msra.mxu0 %v431
    %2734 = vmatprep.subr.mxu0 %v424
    %2735 = vmatpush1.msra.mxu0 %v423
    %2736 = vmatprep.subr.mxu0 %v672
    %2737 = vmatpush2.msra.mxu0 %v671
    %2738 = vmatprep.subr.mxu0 %v664
    %2739 = vmatpush2.msra.mxu0 %v663
    %2740 = vmatprep.subr.mxu0 %v656
    %2741 = vmatpush2.msra.mxu0 %v655
    %2742 = vmatprep.subr.mxu0 %v648
    %2743 = vmatpush2.msra.mxu0 %v647
    %2744 = vmatprep.subr.mxu0 %v640
    %2745 = vmatpush2.msra.mxu0 %v639
    %2746 = vmatprep.subr.mxu0 %v632
    %2747 = vmatpush2.msra.mxu0 %v631
    %2748 = vmatprep.subr.mxu0 %v624
    %2749 = vmatpush2.msra.mxu0 %v623
    %2750 = vmatprep.subr.mxu0 %v616
    %2751 = vmatpush2.msra.mxu0 %v615
    %2752 = vmatprep.subr.mxu0 %v608
    %2753 = vmatpush2.msra.mxu0 %v607
    %2754 = vmatprep.subr.mxu0 %v600
    %2755 = vmatpush2.msra.mxu0 %v599
    %2756 = vmatprep.subr.mxu0 %v592
    %2757 = vmatpush2.msra.mxu0 %v591
    %2758 = vmatprep.subr.mxu0 %v584
    %2759 = vmatpush2.msra.mxu0 %v583
    %2760 = vmatprep.subr.mxu0 %v576
    %2761 = vmatpush2.msra.mxu0 %v575
    %2762 = vmatprep.subr.mxu0 %v568
    %2763 = vmatpush2.msra.mxu0 %v567
    %2764 = vmatprep.subr.mxu0 %v560
    %2765 = vmatpush2.msra.mxu0 %v559
    %2766 = vmatprep.subr.mxu0 %v552
    %2767 = vmatpush2.msra.mxu0 %v551
    %2768 = vmatprep.mubr.f32.mxu0 %v2609
    %2769 = vmatmul.mubr.f32.gmra.mxu0 %v2632
    %v2770 = vpop.f32.mrf.mxu0
    %v2771 = vadd.f32 0.0, %v2770
    %v2772 = vpop.f32.mrf.mxu0
    %v2773 = vadd.f32 0.0, %v2772
    %2774 = vdwg.mxu0
    %2775 = vmatprep.subr.mxu0 %v546
    %2776 = vmatpush1.msra.mxu0 %v545
    %2777 = vmatprep.subr.mxu0 %v538
    %2778 = vmatpush1.msra.mxu0 %v537
    %2779 = vmatprep.subr.mxu0 %v530
    %2780 = vmatpush1.msra.mxu0 %v529
    %2781 = vmatprep.subr.mxu0 %v522
    %2782 = vmatpush1.msra.mxu0 %v521
    %2783 = vmatprep.subr.mxu0 %v514
    %2784 = vmatpush1.msra.mxu0 %v513
    %2785 = vmatprep.subr.mxu0 %v506
    %2786 = vmatpush1.msra.mxu0 %v505
    %2787 = vmatprep.subr.mxu0 %v498
    %2788 = vmatpush1.msra.mxu0 %v497
    %2789 = vmatprep.subr.mxu0 %v490
    %2790 = vmatpush1.msra.mxu0 %v489
    %2791 = vmatprep.subr.mxu0 %v482
    %2792 = vmatpush1.msra.mxu0 %v481
    %2793 = vmatprep.subr.mxu0 %v474
    %2794 = vmatpush1.msra.mxu0 %v473
    %2795 = vmatprep.subr.mxu0 %v466
    %2796 = vmatpush1.msra.mxu0 %v465
    %2797 = vmatprep.subr.mxu0 %v458
    %2798 = vmatpush1.msra.mxu0 %v457
    %2799 = vmatprep.subr.mxu0 %v450
    %2800 = vmatpush1.msra.mxu0 %v449
    %2801 = vmatprep.subr.mxu0 %v442
    %2802 = vmatpush1.msra.mxu0 %v441
    %2803 = vmatprep.subr.mxu0 %v434
    %2804 = vmatpush1.msra.mxu0 %v433
    %2805 = vmatprep.subr.mxu0 %v426
    %2806 = vmatpush1.msra.mxu0 %v425
    %2807 = vmatprep.subr.mxu0 %v674
    %2808 = vmatpush2.msra.mxu0 %v673
    %2809 = vmatprep.subr.mxu0 %v666
    %2810 = vmatpush2.msra.mxu0 %v665
    %2811 = vmatprep.subr.mxu0 %v658
    %2812 = vmatpush2.msra.mxu0 %v657
    %2813 = vmatprep.subr.mxu0 %v650
    %2814 = vmatpush2.msra.mxu0 %v649
    %2815 = vmatprep.subr.mxu0 %v642
    %2816 = vmatpush2.msra.mxu0 %v641
    %2817 = vmatprep.subr.mxu0 %v634
    %2818 = vmatpush2.msra.mxu0 %v633
    %2819 = vmatprep.subr.mxu0 %v626
    %2820 = vmatpush2.msra.mxu0 %v625
    %2821 = vmatprep.subr.mxu0 %v618
    %2822 = vmatpush2.msra.mxu0 %v617
    %2823 = vmatprep.subr.mxu0 %v610
    %2824 = vmatpush2.msra.mxu0 %v609
    %2825 = vmatprep.subr.mxu0 %v602
    %2826 = vmatpush2.msra.mxu0 %v601
    %2827 = vmatprep.subr.mxu0 %v594
    %2828 = vmatpush2.msra.mxu0 %v593
    %2829 = vmatprep.subr.mxu0 %v586
    %2830 = vmatpush2.msra.mxu0 %v585
    %2831 = vmatprep.subr.mxu0 %v578
    %2832 = vmatpush2.msra.mxu0 %v577
    %2833 = vmatprep.subr.mxu0 %v570
    %2834 = vmatpush2.msra.mxu0 %v569
    %2835 = vmatprep.subr.mxu0 %v562
    %2836 = vmatpush2.msra.mxu0 %v561
    %2837 = vmatprep.subr.mxu0 %v554
    %2838 = vmatpush2.msra.mxu0 %v553
    %2839 = vmatprep.mubr.f32.mxu0 %v2609
    %2840 = vmatmul.mubr.f32.gmra.mxu0 %v2632
    %v2841 = vpop.f32.mrf.mxu0
    %v2842 = vadd.f32 0.0, %v2841
    %v2843 = vpop.f32.mrf.mxu0
    %v2844 = vadd.f32 0.0, %v2843
    %2845 = vdwg.mxu0
    %2846 = vmatprep.subr.mxu0 %v548
    %2847 = vmatpush1.msra.mxu0 %v547
    %2848 = vmatprep.subr.mxu0 %v540
    %2849 = vmatpush1.msra.mxu0 %v539
    %2850 = vmatprep.subr.mxu0 %v532
    %2851 = vmatpush1.msra.mxu0 %v531
    %2852 = vmatprep.subr.mxu0 %v524
    %2853 = vmatpush1.msra.mxu0 %v523
    %2854 = vmatprep.subr.mxu0 %v516
    %2855 = vmatpush1.msra.mxu0 %v515
    %2856 = vmatprep.subr.mxu0 %v508
    %2857 = vmatpush1.msra.mxu0 %v507
    %2858 = vmatprep.subr.mxu0 %v500
    %2859 = vmatpush1.msra.mxu0 %v499
    %2860 = vmatprep.subr.mxu0 %v492
    %2861 = vmatpush1.msra.mxu0 %v491
    %2862 = vmatprep.subr.mxu0 %v484
    %2863 = vmatpush1.msra.mxu0 %v483
    %2864 = vmatprep.subr.mxu0 %v476
    %2865 = vmatpush1.msra.mxu0 %v475
    %2866 = vmatprep.subr.mxu0 %v468
    %2867 = vmatpush1.msra.mxu0 %v467
    %2868 = vmatprep.subr.mxu0 %v460
    %2869 = vmatpush1.msra.mxu0 %v459
    %2870 = vmatprep.subr.mxu0 %v452
    %2871 = vmatpush1.msra.mxu0 %v451
    %2872 = vmatprep.subr.mxu0 %v444
    %2873 = vmatpush1.msra.mxu0 %v443
    %2874 = vmatprep.subr.mxu0 %v436
    %2875 = vmatpush1.msra.mxu0 %v435
    %2876 = vmatprep.subr.mxu0 %v428
    %2877 = vmatpush1.msra.mxu0 %v427
    %2878 = vmatprep.subr.mxu0 %v676
    %2879 = vmatpush2.msra.mxu0 %v675
    %2880 = vmatprep.subr.mxu0 %v668
    %2881 = vmatpush2.msra.mxu0 %v667
    %2882 = vmatprep.subr.mxu0 %v660
    %2883 = vmatpush2.msra.mxu0 %v659
    %2884 = vmatprep.subr.mxu0 %v652
    %2885 = vmatpush2.msra.mxu0 %v651
    %2886 = vmatprep.subr.mxu0 %v644
    %2887 = vmatpush2.msra.mxu0 %v643
    %2888 = vmatprep.subr.mxu0 %v636
    %2889 = vmatpush2.msra.mxu0 %v635
    %2890 = vmatprep.subr.mxu0 %v628
    %2891 = vmatpush2.msra.mxu0 %v627
    %2892 = vmatprep.subr.mxu0 %v620
    %2893 = vmatpush2.msra.mxu0 %v619
    %2894 = vmatprep.subr.mxu0 %v612
    %2895 = vmatpush2.msra.mxu0 %v611
    %2896 = vmatprep.subr.mxu0 %v604
    %2897 = vmatpush2.msra.mxu0 %v603
    %2898 = vmatprep.subr.mxu0 %v596
    %2899 = vmatpush2.msra.mxu0 %v595
    %2900 = vmatprep.subr.mxu0 %v588
    %2901 = vmatpush2.msra.mxu0 %v587
    %2902 = vmatprep.subr.mxu0 %v580
    %2903 = vmatpush2.msra.mxu0 %v579
    %2904 = vmatprep.subr.mxu0 %v572
    %2905 = vmatpush2.msra.mxu0 %v571
    %2906 = vmatprep.subr.mxu0 %v564
    %2907 = vmatpush2.msra.mxu0 %v563
    %2908 = vmatprep.subr.mxu0 %v556
    %2909 = vmatpush2.msra.mxu0 %v555
    %2910 = vmatprep.mubr.f32.mxu0 %v2609
    %2911 = vmatmul.mubr.f32.gmra.mxu0 %v2632
    %v2912 = vpop.f32.mrf.mxu0
    %v2913 = vadd.f32 0.0, %v2912
    %v2914 = vpop.f32.mrf.mxu0
    %v2915 = vadd.f32 0.0, %v2914
    %2916 = vdwg.mxu0
    %v2917 = vadd.f32 %v2700, %v381
    %v2918 = vadd.f32 %v2702, %v385
    %v2919 = vadd.f32 %v2771, %v389
    %v2920 = vadd.f32 %v2773, %v393
    %v2921 = vtanh.pop %v2917
    %v2922 = vtanh.pop %v2918
    %v2923 = vtanh.pop %v2919
    %v2924 = vtanh.pop %v2920
    %v2925 = vmul.f32 %v2921, 0.5
    %v2926 = vmul.f32 %v2922, 0.5
    %v2927 = vmul.f32 %v2923, 0.5
    %v2928 = vadd.f32 %v2925, 0.5
    %v2929 = vadd.f32 %v2926, 0.5
    %v2930 = vadd.f32 %v2927, 0.5
    %v2931 = vmul.f32 %v2929, %v2607
    %v2932 = vmul.f32 %v2928, %v2924
    %v2933 = vadd.f32 %v2931, %v2932
    %v2934 = vtanh.pop %v2933
    %v2935 = vmul.f32 %v2930, %v2934
    %v2936 = vld [vmem:[#allocation2 + $0xe0] sm:$0xff]
    %v2937 = vld [vmem:[#allocation2 + $0xe8] sm:$0xff]
    %v2938 = vld [vmem:[#allocation2 + $0xf0] sm:$0xff]
    %v2939 = vld [vmem:[#allocation2 + $0xf8] sm:$0xff]
    %v2940 = vadd.f32 %v2936, %v2842
    %v2941 = vadd.f32 %v2937, %v2844
    %v2942 = vadd.f32 %v2938, %v2913
    %v2943 = vadd.f32 %v2939, %v2915
    %v2944 = vtanh.pop %v2940
    %v2945 = vtanh.pop %v2941
    %v2946 = vtanh.pop %v2942
    %v2947 = vtanh.pop %v2943
    %v2948 = vmul.f32 %v2944, 0.5
    %v2949 = vmul.f32 %v2945, 0.5
    %v2950 = vmul.f32 %v2946, 0.5
    %v2951 = vadd.f32 %v2948, 0.5
    %v2952 = vadd.f32 %v2949, 0.5
    %v2953 = vadd.f32 %v2950, 0.5
    %v2954 = vmul.f32 %v2952, %v2630
    %v2955 = vmul.f32 %v2951, %v2947
    %v2956 = vadd.f32 %v2954, %v2955
    %v2957 = vtanh.pop %v2956
    %v2958 = vmul.f32 %v2953, %v2957
    %v2959 = vld [vmem:[#allocation4] sm:$0xff]
    %v2960 = vld [vmem:[#allocation4 + $0x8] sm:$0xff]
    %v2961 = vld [vmem:[#allocation4 + $0x10] sm:$0xff]
    %v2962 = vld [vmem:[#allocation4 + $0x18] sm:$0xff]
    %v2963 = vld [vmem:[#allocation4 + $0x40] sm:$0xff]
    %v2964 = vld [vmem:[#allocation4 + $0x48] sm:$0xff]
    %v2965 = vld [vmem:[#allocation4 + $0x50] sm:$0xff]
    %v2966 = vld [vmem:[#allocation4 + $0x58] sm:$0xff]
    %v2967 = vld [vmem:[#allocation4 + $0x80] sm:$0xff]
    %v2968 = vld [vmem:[#allocation4 + $0x88] sm:$0xff]
    %v2969 = vld [vmem:[#allocation4 + $0x90] sm:$0xff]
    %v2970 = vld [vmem:[#allocation4 + $0x98] sm:$0xff]
    %v2971 = vld [vmem:[#allocation4 + $0xc0] sm:$0xff]
    %v2972 = vld [vmem:[#allocation4 + $0xc8] sm:$0xff]
    %v2973 = vld [vmem:[#allocation4 + $0xd0] sm:$0xff]
    %v2974 = vld [vmem:[#allocation4 + $0xd8] sm:$0xff]
    %v2975 = vld [vmem:[#allocation4 + $0x100] sm:$0xff]
    %v2976 = vld [vmem:[#allocation4 + $0x108] sm:$0xff]
    %v2977 = vld [vmem:[#allocation4 + $0x110] sm:$0xff]
    %v2978 = vld [vmem:[#allocation4 + $0x118] sm:$0xff]
    %v2979 = vld [vmem:[#allocation4 + $0x140] sm:$0xff]
    %v2980 = vld [vmem:[#allocation4 + $0x148] sm:$0xff]
    %v2981 = vld [vmem:[#allocation4 + $0x150] sm:$0xff]
    %v2982 = vld [vmem:[#allocation4 + $0x158] sm:$0xff]
    %v2983 = vld [vmem:[#allocation4 + $0x180] sm:$0xff]
    %v2984 = vld [vmem:[#allocation4 + $0x188] sm:$0xff]
    %v2985 = vld [vmem:[#allocation4 + $0x190] sm:$0xff]
    %v2986 = vld [vmem:[#allocation4 + $0x198] sm:$0xff]
    %v2987 = vld [vmem:[#allocation4 + $0x1c0] sm:$0xff]
    %v2988 = vld [vmem:[#allocation4 + $0x1c8] sm:$0xff]
    %v2989 = vld [vmem:[#allocation4 + $0x1d0] sm:$0xff]
    %v2990 = vld [vmem:[#allocation4 + $0x1d8] sm:$0xff]
    %v2991 = vld [vmem:[#allocation4 + $0x200] sm:$0xff]
    %v2992 = vld [vmem:[#allocation4 + $0x208] sm:$0xff]
    %v2993 = vld [vmem:[#allocation4 + $0x210] sm:$0xff]
    %v2994 = vld [vmem:[#allocation4 + $0x218] sm:$0xff]
    %v2995 = vld [vmem:[#allocation4 + $0x240] sm:$0xff]
    %v2996 = vld [vmem:[#allocation4 + $0x248] sm:$0xff]
    %v2997 = vld [vmem:[#allocation4 + $0x250] sm:$0xff]
    %v2998 = vld [vmem:[#allocation4 + $0x258] sm:$0xff]
    %v2999 = vld [vmem:[#allocation4 + $0x280] sm:$0xff]
    %v3000 = vld [vmem:[#allocation4 + $0x288] sm:$0xff]
    %v3001 = vld [vmem:[#allocation4 + $0x290] sm:$0xff]
    %v3002 = vld [vmem:[#allocation4 + $0x298] sm:$0xff]
    %v3003 = vld [vmem:[#allocation4 + $0x2c0] sm:$0xff]
    %v3004 = vld [vmem:[#allocation4 + $0x2c8] sm:$0xff]
    %v3005 = vld [vmem:[#allocation4 + $0x2d0] sm:$0xff]
    %v3006 = vld [vmem:[#allocation4 + $0x2d8] sm:$0xff]
    %v3007 = vld [vmem:[#allocation4 + $0x300] sm:$0xff]
    %v3008 = vld [vmem:[#allocation4 + $0x308] sm:$0xff]
    %v3009 = vld [vmem:[#allocation4 + $0x310] sm:$0xff]
    %v3010 = vld [vmem:[#allocation4 + $0x318] sm:$0xff]
    %v3011 = vld [vmem:[#allocation4 + $0x340] sm:$0xff]
    %v3012 = vld [vmem:[#allocation4 + $0x348] sm:$0xff]
    %v3013 = vld [vmem:[#allocation4 + $0x350] sm:$0xff]
    %v3014 = vld [vmem:[#allocation4 + $0x358] sm:$0xff]
    %v3015 = vld [vmem:[#allocation4 + $0x380] sm:$0xff]
    %v3016 = vld [vmem:[#allocation4 + $0x388] sm:$0xff]
    %v3017 = vld [vmem:[#allocation4 + $0x390] sm:$0xff]
    %v3018 = vld [vmem:[#allocation4 + $0x398] sm:$0xff]
    %v3019 = vld [vmem:[#allocation4 + $0x3c0] sm:$0xff]
    %v3020 = vld [vmem:[#allocation4 + $0x3c8] sm:$0xff]
    %v3021 = vld [vmem:[#allocation4 + $0x3d0] sm:$0xff]
    %v3022 = vld [vmem:[#allocation4 + $0x3d8] sm:$0xff]
    %v3023 = vld [vmem:[#allocation4 + $0x400] sm:$0xff]
    %v3024 = vld [vmem:[#allocation4 + $0x408] sm:$0xff]
    %v3025 = vld [vmem:[#allocation4 + $0x410] sm:$0xff]
    %v3026 = vld [vmem:[#allocation4 + $0x418] sm:$0xff]
    %v3027 = vld [vmem:[#allocation4 + $0x440] sm:$0xff]
    %v3028 = vld [vmem:[#allocation4 + $0x448] sm:$0xff]
    %v3029 = vld [vmem:[#allocation4 + $0x450] sm:$0xff]
    %v3030 = vld [vmem:[#allocation4 + $0x458] sm:$0xff]
    %v3031 = vld [vmem:[#allocation4 + $0x480] sm:$0xff]
    %v3032 = vld [vmem:[#allocation4 + $0x488] sm:$0xff]
    %v3033 = vld [vmem:[#allocation4 + $0x490] sm:$0xff]
    %v3034 = vld [vmem:[#allocation4 + $0x498] sm:$0xff]
    %v3035 = vld [vmem:[#allocation4 + $0x4c0] sm:$0xff]
    %v3036 = vld [vmem:[#allocation4 + $0x4c8] sm:$0xff]
    %v3037 = vld [vmem:[#allocation4 + $0x4d0] sm:$0xff]
    %v3038 = vld [vmem:[#allocation4 + $0x4d8] sm:$0xff]
    %v3039 = vld [vmem:[#allocation4 + $0x500] sm:$0xff]
    %v3040 = vld [vmem:[#allocation4 + $0x508] sm:$0xff]
    %v3041 = vld [vmem:[#allocation4 + $0x510] sm:$0xff]
    %v3042 = vld [vmem:[#allocation4 + $0x518] sm:$0xff]
    %v3043 = vld [vmem:[#allocation4 + $0x540] sm:$0xff]
    %v3044 = vld [vmem:[#allocation4 + $0x548] sm:$0xff]
    %v3045 = vld [vmem:[#allocation4 + $0x550] sm:$0xff]
    %v3046 = vld [vmem:[#allocation4 + $0x558] sm:$0xff]
    %v3047 = vld [vmem:[#allocation4 + $0x580] sm:$0xff]
    %v3048 = vld [vmem:[#allocation4 + $0x588] sm:$0xff]
    %v3049 = vld [vmem:[#allocation4 + $0x590] sm:$0xff]
    %v3050 = vld [vmem:[#allocation4 + $0x598] sm:$0xff]
    %v3051 = vld [vmem:[#allocation4 + $0x5c0] sm:$0xff]
    %v3052 = vld [vmem:[#allocation4 + $0x5c8] sm:$0xff]
    %v3053 = vld [vmem:[#allocation4 + $0x5d0] sm:$0xff]
    %v3054 = vld [vmem:[#allocation4 + $0x5d8] sm:$0xff]
    %v3055 = vld [vmem:[#allocation4 + $0x600] sm:$0xff]
    %v3056 = vld [vmem:[#allocation4 + $0x608] sm:$0xff]
    %v3057 = vld [vmem:[#allocation4 + $0x610] sm:$0xff]
    %v3058 = vld [vmem:[#allocation4 + $0x618] sm:$0xff]
    %v3059 = vld [vmem:[#allocation4 + $0x640] sm:$0xff]
    %v3060 = vld [vmem:[#allocation4 + $0x648] sm:$0xff]
    %v3061 = vld [vmem:[#allocation4 + $0x650] sm:$0xff]
    %v3062 = vld [vmem:[#allocation4 + $0x658] sm:$0xff]
    %v3063 = vld [vmem:[#allocation4 + $0x680] sm:$0xff]
    %v3064 = vld [vmem:[#allocation4 + $0x688] sm:$0xff]
    %v3065 = vld [vmem:[#allocation4 + $0x690] sm:$0xff]
    %v3066 = vld [vmem:[#allocation4 + $0x698] sm:$0xff]
    %v3067 = vld [vmem:[#allocation4 + $0x6c0] sm:$0xff]
    %v3068 = vld [vmem:[#allocation4 + $0x6c8] sm:$0xff]
    %v3069 = vld [vmem:[#allocation4 + $0x6d0] sm:$0xff]
    %v3070 = vld [vmem:[#allocation4 + $0x6d8] sm:$0xff]
    %v3071 = vld [vmem:[#allocation4 + $0x700] sm:$0xff]
    %v3072 = vld [vmem:[#allocation4 + $0x708] sm:$0xff]
    %v3073 = vld [vmem:[#allocation4 + $0x710] sm:$0xff]
    %v3074 = vld [vmem:[#allocation4 + $0x718] sm:$0xff]
    %v3075 = vld [vmem:[#allocation4 + $0x740] sm:$0xff]
    %v3076 = vld [vmem:[#allocation4 + $0x748] sm:$0xff]
    %v3077 = vld [vmem:[#allocation4 + $0x750] sm:$0xff]
    %v3078 = vld [vmem:[#allocation4 + $0x758] sm:$0xff]
    %v3079 = vld [vmem:[#allocation4 + $0x780] sm:$0xff]
    %v3080 = vld [vmem:[#allocation4 + $0x788] sm:$0xff]
    %v3081 = vld [vmem:[#allocation4 + $0x790] sm:$0xff]
    %v3082 = vld [vmem:[#allocation4 + $0x798] sm:$0xff]
    %v3083 = vld [vmem:[#allocation4 + $0x7c0] sm:$0xff]
    %v3084 = vld [vmem:[#allocation4 + $0x7c8] sm:$0xff]
    %v3085 = vld [vmem:[#allocation4 + $0x7d0] sm:$0xff]
    %v3086 = vld [vmem:[#allocation4 + $0x7d8] sm:$0xff]
    %3087 = vmatprep.subr.mxu0 %v3020
    %3088 = vmatpush1.msra.mxu0 %v3019
    %3089 = vmatprep.subr.mxu0 %v3016
    %3090 = vmatpush1.msra.mxu0 %v3015
    %3091 = vmatprep.subr.mxu0 %v3012
    %3092 = vmatpush1.msra.mxu0 %v3011
    %3093 = vmatprep.subr.mxu0 %v3008
    %3094 = vmatpush1.msra.mxu0 %v3007
    %3095 = vmatprep.subr.mxu0 %v3004
    %3096 = vmatpush1.msra.mxu0 %v3003
    %3097 = vmatprep.subr.mxu0 %v3000
    %3098 = vmatpush1.msra.mxu0 %v2999
    %3099 = vmatprep.subr.mxu0 %v2996
    %3100 = vmatpush1.msra.mxu0 %v2995
    %3101 = vmatprep.subr.mxu0 %v2992
    %3102 = vmatpush1.msra.mxu0 %v2991
    %3103 = vmatprep.subr.mxu0 %v2988
    %3104 = vmatpush1.msra.mxu0 %v2987
    %3105 = vmatprep.subr.mxu0 %v2984
    %3106 = vmatpush1.msra.mxu0 %v2983
    %3107 = vmatprep.subr.mxu0 %v2980
    %3108 = vmatpush1.msra.mxu0 %v2979
    %3109 = vmatprep.subr.mxu0 %v2976
    %3110 = vmatpush1.msra.mxu0 %v2975
    %3111 = vmatprep.subr.mxu0 %v2972
    %3112 = vmatpush1.msra.mxu0 %v2971
    %3113 = vmatprep.subr.mxu0 %v2968
    %3114 = vmatpush1.msra.mxu0 %v2967
    %3115 = vmatprep.subr.mxu0 %v2964
    %3116 = vmatpush1.msra.mxu0 %v2963
    %3117 = vmatprep.subr.mxu0 %v2960
    %3118 = vmatpush1.msra.mxu0 %v2959
    %3119 = vmatprep.subr.mxu0 %v3084
    %3120 = vmatpush2.msra.mxu0 %v3083
    %3121 = vmatprep.subr.mxu0 %v3080
    %3122 = vmatpush2.msra.mxu0 %v3079
    %3123 = vmatprep.subr.mxu0 %v3076
    %3124 = vmatpush2.msra.mxu0 %v3075
    %3125 = vmatprep.subr.mxu0 %v3072
    %3126 = vmatpush2.msra.mxu0 %v3071
    %3127 = vmatprep.subr.mxu0 %v3068
    %3128 = vmatpush2.msra.mxu0 %v3067
    %3129 = vmatprep.subr.mxu0 %v3064
    %3130 = vmatpush2.msra.mxu0 %v3063
    %3131 = vmatprep.subr.mxu0 %v3060
    %3132 = vmatpush2.msra.mxu0 %v3059
    %3133 = vmatprep.subr.mxu0 %v3056
    %3134 = vmatpush2.msra.mxu0 %v3055
    %3135 = vmatprep.subr.mxu0 %v3052
    %3136 = vmatpush2.msra.mxu0 %v3051
    %3137 = vmatprep.subr.mxu0 %v3048
    %3138 = vmatpush2.msra.mxu0 %v3047
    %3139 = vmatprep.subr.mxu0 %v3044
    %3140 = vmatpush2.msra.mxu0 %v3043
    %3141 = vmatprep.subr.mxu0 %v3040
    %3142 = vmatpush2.msra.mxu0 %v3039
    %3143 = vmatprep.subr.mxu0 %v3036
    %3144 = vmatpush2.msra.mxu0 %v3035
    %3145 = vmatprep.subr.mxu0 %v3032
    %3146 = vmatpush2.msra.mxu0 %v3031
    %3147 = vmatprep.subr.mxu0 %v3028
    %3148 = vmatpush2.msra.mxu0 %v3027
    %3149 = vmatprep.subr.mxu0 %v3024
    %3150 = vmatpush2.msra.mxu0 %v3023
    %3151 = vmatprep.mubr.f32.mxu0 %v2935
    %3152 = vmatmul.mubr.f32.gmra.mxu0 %v2958
    %v3153 = vpop.f32.mrf.mxu0
    %v3154 = vadd.f32 %v381, %v3153
    %v3155 = vpop.f32.mrf.mxu0
    %v3156 = vadd.f32 %v385, %v3155
    %3157 = vdwg.mxu0
    %3158 = vmatprep.subr.mxu0 %v3022
    %3159 = vmatpush1.msra.mxu0 %v3021
    %3160 = vmatprep.subr.mxu0 %v3018
    %3161 = vmatpush1.msra.mxu0 %v3017
    %3162 = vmatprep.subr.mxu0 %v3014
    %3163 = vmatpush1.msra.mxu0 %v3013
    %3164 = vmatprep.subr.mxu0 %v3010
    %3165 = vmatpush1.msra.mxu0 %v3009
    %3166 = vmatprep.subr.mxu0 %v3006
    %3167 = vmatpush1.msra.mxu0 %v3005
    %3168 = vmatprep.subr.mxu0 %v3002
    %3169 = vmatpush1.msra.mxu0 %v3001
    %3170 = vmatprep.subr.mxu0 %v2998
    %3171 = vmatpush1.msra.mxu0 %v2997
    %3172 = vmatprep.subr.mxu0 %v2994
    %3173 = vmatpush1.msra.mxu0 %v2993
    %3174 = vmatprep.subr.mxu0 %v2990
    %3175 = vmatpush1.msra.mxu0 %v2989
    %3176 = vmatprep.subr.mxu0 %v2986
    %3177 = vmatpush1.msra.mxu0 %v2985
    %3178 = vmatprep.subr.mxu0 %v2982
    %3179 = vmatpush1.msra.mxu0 %v2981
    %3180 = vmatprep.subr.mxu0 %v2978
    %3181 = vmatpush1.msra.mxu0 %v2977
    %3182 = vmatprep.subr.mxu0 %v2974
    %3183 = vmatpush1.msra.mxu0 %v2973
    %3184 = vmatprep.subr.mxu0 %v2970
    %3185 = vmatpush1.msra.mxu0 %v2969
    %3186 = vmatprep.subr.mxu0 %v2966
    %3187 = vmatpush1.msra.mxu0 %v2965
    %3188 = vmatprep.subr.mxu0 %v2962
    %3189 = vmatpush1.msra.mxu0 %v2961
    %3190 = vmatprep.subr.mxu0 %v3086
    %3191 = vmatpush2.msra.mxu0 %v3085
    %3192 = vmatprep.subr.mxu0 %v3082
    %3193 = vmatpush2.msra.mxu0 %v3081
    %3194 = vmatprep.subr.mxu0 %v3078
    %3195 = vmatpush2.msra.mxu0 %v3077
    %3196 = vmatprep.subr.mxu0 %v3074
    %3197 = vmatpush2.msra.mxu0 %v3073
    %3198 = vmatprep.subr.mxu0 %v3070
    %3199 = vmatpush2.msra.mxu0 %v3069
    %3200 = vmatprep.subr.mxu0 %v3066
    %3201 = vmatpush2.msra.mxu0 %v3065
    %3202 = vmatprep.subr.mxu0 %v3062
    %3203 = vmatpush2.msra.mxu0 %v3061
    %3204 = vmatprep.subr.mxu0 %v3058
    %3205 = vmatpush2.msra.mxu0 %v3057
    %3206 = vmatprep.subr.mxu0 %v3054
    %3207 = vmatpush2.msra.mxu0 %v3053
    %3208 = vmatprep.subr.mxu0 %v3050
    %3209 = vmatpush2.msra.mxu0 %v3049
    %3210 = vmatprep.subr.mxu0 %v3046
    %3211 = vmatpush2.msra.mxu0 %v3045
    %3212 = vmatprep.subr.mxu0 %v3042
    %3213 = vmatpush2.msra.mxu0 %v3041
    %3214 = vmatprep.subr.mxu0 %v3038
    %3215 = vmatpush2.msra.mxu0 %v3037
    %3216 = vmatprep.subr.mxu0 %v3034
    %3217 = vmatpush2.msra.mxu0 %v3033
    %3218 = vmatprep.subr.mxu0 %v3030
    %3219 = vmatpush2.msra.mxu0 %v3029
    %3220 = vmatprep.subr.mxu0 %v3026
    %3221 = vmatpush2.msra.mxu0 %v3025
    %3222 = vmatprep.mubr.f32.mxu0 %v2935
    %3223 = vmatmul.mubr.f32.gmra.mxu0 %v2958
    %v3224 = vpop.f32.mrf.mxu0
    %v3225 = vadd.f32 %v389, %v3224
    %v3226 = vpop.f32.mrf.mxu0
    %v3227 = vadd.f32 %v393, %v3226
    %3228 = vdwg.mxu0
    %v3229 = vtanh.pop %v3154
    %v3230 = vtanh.pop %v3156
    %v3231 = vtanh.pop %v3225
    %v3232 = vtanh.pop %v3227
    %v3233 = vmul.f32 %v3229, 0.5
    %v3234 = vmul.f32 %v3230, 0.5
    %v3235 = vmul.f32 %v3231, 0.5
    %v3236 = vadd.f32 %v3233, 0.5
    %v3237 = vadd.f32 %v3234, 0.5
    %v3238 = vadd.f32 %v3235, 0.5
    %v3239 = vmul.f32 %v3237, %v2933
    %v3240 = vmul.f32 %v3236, %v3232
    %v3241 = vadd.f32 %v3239, %v3240
    %v3242 = vtanh.pop %v3241
    %v3243 = vmul.f32 %v3238, %v3242
    %v3244 = vld [vmem:[%s5] sm:$0x1]
    %v3246 = vlaneseq
    %v3247 = vshrl.u32 %v3246, 7
    %v3248 = vsub.s32 0, %v3247
    %v3249 = vrot.slane %v3244, %v3248
    %v3251 = vmul.f32 %v3243, %v3249
    %3252 = vadd.xlane.f32.xlu0 %v3251
    %v3253 = vpop.xlane.xlu0 %3252
    %v3254 = vld [vmem:[#allocation3] sm:$0x1]
    %v3256 = vlaneseq
    %v3257 = vshrl.u32 %v3256, 7
    %v3258 = vsub.s32 0, %v3257
    %v3259 = vrot.slane %v3254, %v3258
    %v3261 = vadd.f32 %v3253, %v3259
    %v3262 = vtanh.pop %v3261
    %v3263 = vmul.f32 %v3262, 0.5
    %v3264 = vadd.f32 %v3263, 0.5
    %vm3265 = vcmask 7168
    %3266 = vst.msk [vmem:[%s7] sm:$0xff] %vm3265, %v3264
    // Predicated region
    $region34: #{rnn_forward.1} parent=1 // pred_check
      _
    $region35: #{rnn_forward.1} parent=1 // pred_check_branch
      %3268 = sbr.rel (0) target = $region37
    $region36: #{rnn_forward.1} parent=1 // pred_region
      _
    $region37: #{rnn_forward.1} parent=1 // pred_fallthru
      _
    // Predicated region
    $region38: #{rnn_forward.1} parent=1 // pred_check
      _
    $region39: #{rnn_forward.1} parent=1 // pred_check_branch
      %3270 = sbr.rel (0) target = $region41
    $region40: #{rnn_forward.1} parent=1 // pred_region
      _
    $region41: #{rnn_forward.1} parent=1 // pred_fallthru
      _
    %3271 = vsyncpa [#allocation5], 1

</llo_original>
